<compile_context>
chip_gen: v6e
topology: v6e:2x2x1
jax: 0.10.0
libtpu: 0.0.40
codegen_flags: <defaults>
</compile_context>

<pallas_src>
import functools

import jax
import jax.numpy as jnp
from jax import lax
from jax.experimental import pallas as pl
from jax.experimental.pallas import tpu as pltpu


LANE = 128   # lane width: pad all feature dims to a multiple of this
SUB = 8      # sublane width: pad small row counts to a multiple of this


def _rup(x, m):
    return ((x + m - 1) // m) * m


def _pad2(x, rows, cols):
    return jnp.pad(x, ((0, rows - x.shape[0]), (0, cols - x.shape[1])))


# ----------------------------------------------------------------------------
# Kernel 1: message passing + scatter_mean + node/feature update (fused)
# ----------------------------------------------------------------------------

def _gcn_node_feat_kernel(
    # inputs
    src_row_ref, dst_row_ref, src_col_ref, dst_col_ref, edge_ref,
    node_ref, feat_ref,
    p_src_n_ref, p_src_e_ref, b_p_src_ref,
    p_dst_n_ref, p_dst_e_ref, b_p_dst_ref,
    q_src_self_ref, q_src_neigh_ref, b_node_ref,
    q_dst_self_ref, q_dst_neigh_ref, b_feat_ref,
    # outputs
    node_out_ref, feat_out_ref,
    # scratch (VMEM-resident across the whole grid)
    msg_acc, msgf_acc, cnt_src, cnt_dst):

    t = pl.program_id(0)
    nt = pl.num_programs(0)

    @pl.when(t == 0)
    def _init():
        msg_acc[...] = jnp.zeros_like(msg_acc)
        msgf_acc[...] = jnp.zeros_like(msgf_acc)
        cnt_src[...] = jnp.zeros_like(cnt_src)
        cnt_dst[...] = jnp.zeros_like(cnt_dst)

    te = edge_ref.shape[0]
    b_pad = node_ref.shape[0]
    f_pad = feat_ref.shape[0]

    edge = edge_ref[...]                 # (TE, DE) bf16
    src_col = src_col_ref[...]           # (TE, 1)  int32   (-1 for pad edges)
    dst_col = dst_col_ref[...]           # (TE, 1)  int32
    src_row = src_row_ref[...]           # (1, TE)  int32
    dst_row = dst_row_ref[...]           # (1, TE)  int32

    # ---- msg path: gather feature_emb[dst] -> linear -> leaky_relu -> scatter over src
    oh_g_dst = (dst_col == lax.broadcasted_iota(jnp.int32, (te, f_pad), 1)
                ).astype(jnp.bfloat16)                                   # (TE, F)
    feat_g = jnp.dot(oh_g_dst, feat_ref[...],
                     preferred_element_type=jnp.float32)                 # (TE, DN)
    m = (jnp.dot(feat_g.astype(jnp.bfloat16), p_src_n_ref[...],
                 preferred_element_type=jnp.float32)
         + jnp.dot(edge, p_src_e_ref[...], preferred_element_type=jnp.float32)
         + b_p_src_ref[...])
    m = jnp.where(m > 0, m, 0.01 * m)                                    # leaky_relu (f32)

    mask_sT = src_row == lax.broadcasted_iota(jnp.int32, (b_pad, te), 0)  # (B, TE)
    msg_acc[...] += jnp.dot(mask_sT.astype(jnp.bfloat16), m.astype(jnp.bfloat16),
                            preferred_element_type=jnp.float32)
    cnt_src[...] += jnp.sum(mask_sT.astype(jnp.float32), axis=1, keepdims=True)

    # ---- msg_f path: gather node_emb[src] -> linear -> leaky_relu -> scatter over dst
    oh_g_src = (src_col == lax.broadcasted_iota(jnp.int32, (te, b_pad), 1)
                ).astype(jnp.bfloat16)                                   # (TE, B)
    node_g = jnp.dot(oh_g_src, node_ref[...],
                     preferred_element_type=jnp.float32)                 # (TE, DN)
    mf = (jnp.dot(node_g.astype(jnp.bfloat16), p_dst_n_ref[...],
                  preferred_element_type=jnp.float32)
          + jnp.dot(edge, p_dst_e_ref[...], preferred_element_type=jnp.float32)
          + b_p_dst_ref[...])
    mf = jnp.where(mf > 0, mf, 0.01 * mf)

    mask_dT = dst_row == lax.broadcasted_iota(jnp.int32, (f_pad, te), 0)  # (F, TE)
    msgf_acc[...] += jnp.dot(mask_dT.astype(jnp.bfloat16), mf.astype(jnp.bfloat16),
                             preferred_element_type=jnp.float32)
    cnt_dst[...] += jnp.sum(mask_dT.astype(jnp.float32), axis=1, keepdims=True)

    # ---- finalize: scatter_mean normalize + fused dual-linear node/feature update
    @pl.when(t == nt - 1)
    def _finalize():
        msg_mean = msg_acc[...] / jnp.maximum(cnt_src[...], 1.0)    # (B, DM)
        msgf_mean = msgf_acc[...] / jnp.maximum(cnt_dst[...], 1.0)  # (F, DM)

        node_out = (jnp.dot(node_ref[...], q_src_self_ref[...],
                            preferred_element_type=jnp.float32)
                    + jnp.dot(msg_mean.astype(jnp.bfloat16), q_src_neigh_ref[...],
                              preferred_element_type=jnp.float32)
                    + b_node_ref[...])
        feat_out = (jnp.dot(feat_ref[...], q_dst_self_ref[...],
                            preferred_element_type=jnp.float32)
                    + jnp.dot(msgf_mean.astype(jnp.bfloat16), q_dst_neigh_ref[...],
                              preferred_element_type=jnp.float32)
                    + b_feat_ref[...])
        node_out_ref[...] = node_out
        feat_out_ref[...] = feat_out


# ----------------------------------------------------------------------------
# Kernel 2: edge update (per-edge-tile, fully parallel)
# ----------------------------------------------------------------------------

def _gcn_edge_kernel(src_col_ref, dst_col_ref, edge_ref,
                     node_out_ref, feat_out_ref,
                     w_e_ref, w_n_ref, w_f_ref, b_w_ref,
                     edge_out_ref):
    te = edge_ref.shape[0]
    b_pad = node_out_ref.shape[0]
    f_pad = feat_out_ref.shape[0]

    oh_src = (src_col_ref[...] == lax.broadcasted_iota(jnp.int32, (te, b_pad), 1)
              ).astype(jnp.bfloat16)
    ng = jnp.dot(oh_src, node_out_ref[...], preferred_element_type=jnp.float32)
    oh_dst = (dst_col_ref[...] == lax.broadcasted_iota(jnp.int32, (te, f_pad), 1)
              ).astype(jnp.bfloat16)
    fg = jnp.dot(oh_dst, feat_out_ref[...], preferred_element_type=jnp.float32)

    y = (jnp.dot(edge_ref[...], w_e_ref[...], preferred_element_type=jnp.float32)
         + jnp.dot(ng.astype(jnp.bfloat16), w_n_ref[...],
                   preferred_element_type=jnp.float32)
         + jnp.dot(fg.astype(jnp.bfloat16), w_f_ref[...],
                   preferred_element_type=jnp.float32)
         + b_w_ref[...])
    edge_out_ref[...] = y


# ----------------------------------------------------------------------------
# Parameters + forward wrapper
# ----------------------------------------------------------------------------

def _xavier_normal(key, shape):
    fan_out, fan_in = shape[0], shape[1]
    std = (2.0 / (fan_in + fan_out)) ** 0.5
    return std * jax.random.normal(key, shape, dtype=jnp.float32)


def init_gcn_block_params(key, in_node, out_node, in_edge, out_edge, msg):
    ks = jax.random.split(key, 7)
    return {
        "P_src": _xavier_normal(ks[0], (in_node + in_edge, msg)),
        "b_P_src": jnp.zeros((msg,), jnp.float32),
        "P_dst": _xavier_normal(ks[1], (in_node + in_edge, msg)),
        "b_P_dst": jnp.zeros((msg,), jnp.float32),
        "Q_src_self": _xavier_normal(ks[2], (in_node, out_node)),
        "b_Q_src_self": jnp.zeros((out_node,), jnp.float32),
        "Q_src_neigh": _xavier_normal(ks[3], (msg, out_node)),
        "b_Q_src_neigh": jnp.zeros((out_node,), jnp.float32),
        "Q_dst_self": _xavier_normal(ks[4], (in_node, out_node)),
        "b_Q_dst_self": jnp.zeros((out_node,), jnp.float32),
        "Q_dst_neigh": _xavier_normal(ks[5], (msg, out_node)),
        "b_Q_dst_neigh": jnp.zeros((out_node,), jnp.float32),
        "W": _xavier_normal(ks[6], (in_edge + out_node + out_node, out_edge)),
        "b_W": jnp.zeros((out_edge,), jnp.float32),
    }


def gcn_block_forward(params, node_emb, edge_emb, feature_emb, edge_index,
                      *, tile_e=128):
    f32, bf16 = jnp.float32, jnp.bfloat16

    src = edge_index[0].astype(jnp.int32)
    dst = edge_index[1].astype(jnp.int32)
    bs, dn = node_emb.shape
    nf = feature_emb.shape[0]
    ne, de = edge_emb.shape
    dm = params["P_src"].shape[1]
    do = params["Q_src_self"].shape[1]
    deo = params["W"].shape[1]

    # Padded sizes: lane dims -> 128 multiples (dense stores, MXU-friendly),
    # row counts -> sublane multiples, edges -> tile multiples.
    B, F = _rup(bs, SUB), _rup(nf, SUB)
    E = _rup(ne, tile_e)
    DN, DE, DM = _rup(dn, LANE), _rup(de, LANE), _rup(dm, LANE)
    DO, DEO = _rup(do, LANE), _rup(deo, LANE)

    node_p = _pad2(node_emb.astype(f32), B, DN).astype(bf16)
    feat_p = _pad2(feature_emb.astype(f32), F, DN).astype(bf16)
    edge_p = _pad2(edge_emb.astype(f32), E, DE).astype(bf16)

    # Pad edge indices with -1 (matches no segment -> zero one-hot row/col).
    pad_idx = -jnp.ones((E - ne,), jnp.int32)
    src_p = jnp.concatenate([src, pad_idx])
    dst_p = jnp.concatenate([dst, pad_idx])
    src_row, dst_row = src_p.reshape(1, E), dst_p.reshape(1, E)
    src_col, dst_col = src_p.reshape(E, 1), dst_p.reshape(E, 1)

    # Split-weight identity: concat([a, b]) @ W == a @ W[:da] + b @ W[da:]
    P_src, P_dst, W = params["P_src"], params["P_dst"], params["W"]
    p_src_n = _pad2(P_src[:dn], DN, DM).astype(bf16)
    p_src_e = _pad2(P_src[dn:], DE, DM).astype(bf16)
    p_dst_n = _pad2(P_dst[:dn], DN, DM).astype(bf16)
    p_dst_e = _pad2(P_dst[dn:], DE, DM).astype(bf16)
    b_p_src = _pad2(params["b_P_src"].reshape(1, dm), 1, DM).astype(f32)
    b_p_dst = _pad2(params["b_P_dst"].reshape(1, dm), 1, DM).astype(f32)

    q_src_self = _pad2(params["Q_src_self"], DN, DO).astype(bf16)
    q_src_neigh = _pad2(params["Q_src_neigh"], DM, DO).astype(bf16)
    q_dst_self = _pad2(params["Q_dst_self"], DN, DO).astype(bf16)
    q_dst_neigh = _pad2(params["Q_dst_neigh"], DM, DO).astype(bf16)
    b_node = _pad2((params["b_Q_src_self"] + params["b_Q_src_neigh"]
                    ).reshape(1, do), 1, DO).astype(f32)
    b_feat = _pad2((params["b_Q_dst_self"] + params["b_Q_dst_neigh"]
                    ).reshape(1, do), 1, DO).astype(f32)

    w_e = _pad2(W[:de], DE, DEO).astype(bf16)
    w_n = _pad2(W[de:de + do], DO, DEO).astype(bf16)
    w_f = _pad2(W[de + do:], DO, DEO).astype(bf16)
    b_w = _pad2(params["b_W"].reshape(1, deo), 1, DEO).astype(f32)

    n_tiles = E // tile_e

    def full(shape):
        return pl.BlockSpec(shape, lambda t: (0, 0))

    row_spec = pl.BlockSpec((1, tile_e), lambda t: (0, t))
    col_spec = pl.BlockSpec((tile_e, 1), lambda t: (t, 0))
    edge_spec = pl.BlockSpec((tile_e, DE), lambda t: (t, 0))

    cparams_acc = pltpu.CompilerParams(
        dimension_semantics=("arbitrary",),            # output resident across grid
        vmem_limit_bytes=32 * 1024 * 1024)
    cparams_par = pltpu.CompilerParams(
        dimension_semantics=("parallel",),             # v7x: shard across 2 TCs
        vmem_limit_bytes=32 * 1024 * 1024)

    node_out_p, feat_out_p = pl.pallas_call(
        _gcn_node_feat_kernel,
        grid=(n_tiles,),
        in_specs=[row_spec, row_spec, col_spec, col_spec, edge_spec,
                  full((B, DN)), full((F, DN)),
                  full((DN, DM)), full((DE, DM)), full((1, DM)),
                  full((DN, DM)), full((DE, DM)), full((1, DM)),
                  full((DN, DO)), full((DM, DO)), full((1, DO)),
                  full((DN, DO)), full((DM, DO)), full((1, DO))],
        out_specs=[pl.BlockSpec((B, DO), lambda t: (0, 0)),
                   pl.BlockSpec((F, DO), lambda t: (0, 0))],
        out_shape=[jax.ShapeDtypeStruct((B, DO), f32),
                   jax.ShapeDtypeStruct((F, DO), f32)],
        scratch_shapes=[pltpu.VMEM((B, DM), f32),   # msg scatter-sum accumulator
                        pltpu.VMEM((F, DM), f32),   # msg_f scatter-sum accumulator
                        pltpu.VMEM((B, 1), f32),    # src counts
                        pltpu.VMEM((F, 1), f32)],   # dst counts
        compiler_params=cparams_acc,
    )(src_row, dst_row, src_col, dst_col, edge_p,
      node_p, feat_p,
      p_src_n, p_src_e, b_p_src,
      p_dst_n, p_dst_e, b_p_dst,
      q_src_self, q_src_neigh, b_node,
      q_dst_self, q_dst_neigh, b_feat)

    edge_out_p = pl.pallas_call(
        _gcn_edge_kernel,
        grid=(n_tiles,),
        in_specs=[col_spec, col_spec, edge_spec,
                  full((B, DO)), full((F, DO)),
                  full((DE, DEO)), full((DO, DEO)), full((DO, DEO)),
                  full((1, DEO))],
        out_specs=pl.BlockSpec((tile_e, DEO), lambda t: (t, 0)),
        out_shape=jax.ShapeDtypeStruct((E, DEO), f32),
        compiler_params=cparams_par,
    )(src_col, dst_col, edge_p,
      node_out_p.astype(bf16), feat_out_p.astype(bf16),
      w_e, w_n, w_f, b_w)

    return (node_out_p[:bs, :do],
            edge_out_p[:ne, :deo],
            feat_out_p[:nf, :do])


# ----------------------------------------------------------------------------
# Pure-JAX f32 reference for correctness sanity check
# ----------------------------------------------------------------------------

def _ref_forward(params, node_emb, edge_emb, feature_emb, edge_index):
    src, dst = edge_index[0], edge_index[1]
    bs, nf = node_emb.shape[0], feature_emb.shape[0]

    def leaky(x):
        return jnp.where(x > 0, x, 0.01 * x)

    def scatter_mean(x, idx, n):
        s = jnp.zeros((n, x.shape[1]), x.dtype).at[idx].add(x)
        c = jnp.zeros((n,), x.dtype).at[idx].add(1.0)
        return s / jnp.maximum(c, 1.0)[:, None]

    msg = leaky(jnp.concatenate([feature_emb[dst], edge_emb], 1) @ params["P_src"]
                + params["b_P_src"])
    msg = scatter_mean(msg, src, bs)
    msg_f = leaky(jnp.concatenate([node_emb[src], edge_emb], 1) @ params["P_dst"]
                  + params["b_P_dst"])
    msg_f = scatter_mean(msg_f, dst, nf)
    node_out = (node_emb @ params["Q_src_self"] + params["b_Q_src_self"]
                + msg @ params["Q_src_neigh"] + params["b_Q_src_neigh"])
    feat_out = (feature_emb @ params["Q_dst_self"] + params["b_Q_dst_self"]
                + msg_f @ params["Q_dst_neigh"] + params["b_Q_dst_neigh"])
    edge_out = (jnp.concatenate([edge_emb, node_out[src], feat_out[dst]], 1)
                @ params["W"] + params["b_W"])
    return node_out, edge_out, feat_out


def _rel_err(a, b):
    return float(jnp.linalg.norm(a - b) / (jnp.linalg.norm(b) + 1e-12))


# ----------------------------------------------------------------------------
# main
# ----------------------------------------------------------------------------

if __name__ == "__main__":
    bs = 8
    num_features = 16
    num_edges = 200          # pads to 256 -> 2 edge tiles of 128 (exercises the grid)
    in_node_emb_size = 16
    out_node_emb_size = 32
    in_edge_emb_size = 8
    out_edge_emb_size = 16
    msg_emb_size = 32

    key = jax.random.PRNGKey(0)
    kp, kn, ke, kf, ks, kd = jax.random.split(key, 6)

    params = init_gcn_block_params(kp, in_node_emb_size, out_node_emb_size,
                                   in_edge_emb_size, out_edge_emb_size,
                                   msg_emb_size)

    node_emb = jax.random.normal(kn, (bs, in_node_emb_size), dtype=jnp.float32)
    edge_emb = jax.random.normal(ke, (num_edges, in_edge_emb_size), dtype=jnp.float32)
    feature_emb = jax.random.normal(kf, (num_features, in_node_emb_size),
                                    dtype=jnp.float32)

    # Every node / feature id appears at least once so scatter_mean output
    # sizes match the PyTorch (index.max()+1) convention.
    src = jnp.concatenate([
        jnp.arange(bs, dtype=jnp.int32),
        jax.random.randint(ks, (num_edges - bs,), 0, bs, dtype=jnp.int32)])
    dst = jnp.concatenate([
        jnp.arange(num_features, dtype=jnp.int32),
        jax.random.randint(kd, (num_edges - num_features,), 0, num_features,
                           dtype=jnp.int32)])
    edge_index = jnp.stack([src, dst], axis=0)

    fwd = jax.jit(gcn_block_forward)
    node_out, edge_out, feature_out = jax.block_until_ready(
        fwd(params, node_emb, edge_emb, feature_emb, edge_index))

    # Correctness check against a pure-JAX f32 reference (kernel uses bf16 MXU
    # operands with f32 accumulation -> check relative Frobenius error).
    rn, re, rf = _ref_forward(params, node_emb, edge_emb, feature_emb, edge_index)
    assert node_out.shape == (bs, out_node_emb_size)
    assert edge_out.shape == (num_edges, out_edge_emb_size)
    assert feature_out.shape == (num_features, out_node_emb_size)
    assert _rel_err(node_out, rn) < 2.5e-2, _rel_err(node_out, rn)
    assert _rel_err(edge_out, re) < 2.5e-2, _rel_err(edge_out, re)
    assert _rel_err(feature_out, rf) < 2.5e-2, _rel_err(feature_out, rf)

    print("KERNEL_OK")
</pallas_src>

<mosaic_0001>
module attributes {stable_mosaic.version = 11 : i64} {
  func.func @_gcn_node_feat_kernel(%arg0: i32, %arg1: memref<1x128xi32, #tpu.memory_space<vmem>>, %arg2: memref<1x128xi32, #tpu.memory_space<vmem>>, %arg3: memref<128x1xi32, #tpu.memory_space<vmem>>, %arg4: memref<128x1xi32, #tpu.memory_space<vmem>>, %arg5: memref<128x128xbf16, #tpu.memory_space<vmem>>, %arg6: memref<8x128xbf16, #tpu.memory_space<vmem>>, %arg7: memref<16x128xbf16, #tpu.memory_space<vmem>>, %arg8: memref<128x128xbf16, #tpu.memory_space<vmem>>, %arg9: memref<128x128xbf16, #tpu.memory_space<vmem>>, %arg10: memref<1x128xf32, #tpu.memory_space<vmem>>, %arg11: memref<128x128xbf16, #tpu.memory_space<vmem>>, %arg12: memref<128x128xbf16, #tpu.memory_space<vmem>>, %arg13: memref<1x128xf32, #tpu.memory_space<vmem>>, %arg14: memref<128x128xbf16, #tpu.memory_space<vmem>>, %arg15: memref<128x128xbf16, #tpu.memory_space<vmem>>, %arg16: memref<1x128xf32, #tpu.memory_space<vmem>>, %arg17: memref<128x128xbf16, #tpu.memory_space<vmem>>, %arg18: memref<128x128xbf16, #tpu.memory_space<vmem>>, %arg19: memref<1x128xf32, #tpu.memory_space<vmem>>, %arg20: memref<8x128xf32, #tpu.memory_space<vmem>>, %arg21: memref<16x128xf32, #tpu.memory_space<vmem>>, %arg22: memref<8x128xf32, #tpu.memory_space<vmem>>, %arg23: memref<16x128xf32, #tpu.memory_space<vmem>>, %arg24: memref<8x1xf32, #tpu.memory_space<vmem>>, %arg25: memref<16x1xf32, #tpu.memory_space<vmem>>) attributes {dimension_semantics = [#tpu.dimension_semantics<arbitrary>], iteration_bounds = array<i64: 2>, scalar_prefetch = 0 : i64, scratch_operands = 4 : i64, tpu.core_type = #tpu.core_type<tc>, window_params = [{transform_indices = @transform_0, window_bounds = array<i64: 1, 128>}, {transform_indices = @transform_1, window_bounds = array<i64: 1, 128>}, {transform_indices = @transform_2, window_bounds = array<i64: 128, 1>}, {transform_indices = @transform_3, window_bounds = array<i64: 128, 1>}, {transform_indices = @transform_4, window_bounds = array<i64: 128, 128>}, {pipeline_mode = #tpu.pipeline_mode<synchronous>, transform_indices = @transform_5, window_bounds = array<i64: 8, 128>}, {pipeline_mode = #tpu.pipeline_mode<synchronous>, transform_indices = @transform_6, window_bounds = array<i64: 16, 128>}, {pipeline_mode = #tpu.pipeline_mode<synchronous>, transform_indices = @transform_7, window_bounds = array<i64: 128, 128>}, {pipeline_mode = #tpu.pipeline_mode<synchronous>, transform_indices = @transform_8, window_bounds = array<i64: 128, 128>}, {pipeline_mode = #tpu.pipeline_mode<synchronous>, transform_indices = @transform_9, window_bounds = array<i64: 1, 128>}, {pipeline_mode = #tpu.pipeline_mode<synchronous>, transform_indices = @transform_10, window_bounds = array<i64: 128, 128>}, {pipeline_mode = #tpu.pipeline_mode<synchronous>, transform_indices = @transform_11, window_bounds = array<i64: 128, 128>}, {pipeline_mode = #tpu.pipeline_mode<synchronous>, transform_indices = @transform_12, window_bounds = array<i64: 1, 128>}, {pipeline_mode = #tpu.pipeline_mode<synchronous>, transform_indices = @transform_13, window_bounds = array<i64: 128, 128>}, {pipeline_mode = #tpu.pipeline_mode<synchronous>, transform_indices = @transform_14, window_bounds = array<i64: 128, 128>}, {pipeline_mode = #tpu.pipeline_mode<synchronous>, transform_indices = @transform_15, window_bounds = array<i64: 1, 128>}, {pipeline_mode = #tpu.pipeline_mode<synchronous>, transform_indices = @transform_16, window_bounds = array<i64: 128, 128>}, {pipeline_mode = #tpu.pipeline_mode<synchronous>, transform_indices = @transform_17, window_bounds = array<i64: 128, 128>}, {pipeline_mode = #tpu.pipeline_mode<synchronous>, transform_indices = @transform_18, window_bounds = array<i64: 1, 128>}, {pipeline_mode = #tpu.pipeline_mode<synchronous>, transform_indices = @transform_19, window_bounds = array<i64: 8, 128>}, {pipeline_mode = #tpu.pipeline_mode<synchronous>, transform_indices = @transform_20, window_bounds = array<i64: 16, 128>}]} {
    %c0_i32 = arith.constant 0 : i32
    %0 = arith.cmpi eq, %arg0, %c0_i32 : i32
    %1 = arith.extui %0 : i1 to i32
    %c0_i32_0 = arith.constant 0 : i32
    %2 = arith.cmpi ne, %1, %c0_i32_0 : i32
    scf.if %2 {
      %cst_56 = arith.constant 0.000000e+00 : f32
      %91 = vector.broadcast %cst_56 : f32 to vector<8x128xf32>
      %c0_57 = arith.constant 0 : index
      %c0_58 = arith.constant 0 : index
      %92 = vector.load %arg22[%c0_57, %c0_58] : memref<8x128xf32, #tpu.memory_space<vmem>>, vector<8x128xf32>
      tpu.vector_store %arg22[%c0_57, %c0_58], %91 {strides = array<i32>} : memref<8x128xf32, #tpu.memory_space<vmem>>, vector<8x128xf32>,
      %cst_59 = arith.constant 0.000000e+00 : f32
      %93 = vector.broadcast %cst_59 : f32 to vector<16x128xf32>
      %c0_60 = arith.constant 0 : index
      %c0_61 = arith.constant 0 : index
      %94 = vector.load %arg23[%c0_60, %c0_61] : memref<16x128xf32, #tpu.memory_space<vmem>>, vector<16x128xf32>
      tpu.vector_store %arg23[%c0_60, %c0_61], %93 {strides = array<i32>} : memref<16x128xf32, #tpu.memory_space<vmem>>, vector<16x128xf32>,
      %cst_62 = arith.constant 0.000000e+00 : f32
      %95 = vector.broadcast %cst_62 : f32 to vector<8x1xf32>
      %c0_63 = arith.constant 0 : index
      %c0_64 = arith.constant 0 : index
      %96 = vector.load %arg24[%c0_63, %c0_64] : memref<8x1xf32, #tpu.memory_space<vmem>>, vector<8x1xf32>
      tpu.vector_store %arg24[%c0_63, %c0_64], %95 {strides = array<i32>} : memref<8x1xf32, #tpu.memory_space<vmem>>, vector<8x1xf32>,
      %cst_65 = arith.constant 0.000000e+00 : f32
      %97 = vector.broadcast %cst_65 : f32 to vector<16x1xf32>
      %c0_66 = arith.constant 0 : index
      %c0_67 = arith.constant 0 : index
      %98 = vector.load %arg25[%c0_66, %c0_67] : memref<16x1xf32, #tpu.memory_space<vmem>>, vector<16x1xf32>
      tpu.vector_store %arg25[%c0_66, %c0_67], %97 {strides = array<i32>} : memref<16x1xf32, #tpu.memory_space<vmem>>, vector<16x1xf32>,
    } else {
    }
    %c0 = arith.constant 0 : index
    %c0_1 = arith.constant 0 : index
    %3 = vector.load %arg5[%c0, %c0_1] : memref<128x128xbf16, #tpu.memory_space<vmem>>, vector<128x128xbf16>
    %c0_2 = arith.constant 0 : index
    %c0_3 = arith.constant 0 : index
    %4 = vector.load %arg3[%c0_2, %c0_3] : memref<128x1xi32, #tpu.memory_space<vmem>>, vector<128x1xi32>
    %c0_4 = arith.constant 0 : index
    %c0_5 = arith.constant 0 : index
    %5 = vector.load %arg4[%c0_4, %c0_5] : memref<128x1xi32, #tpu.memory_space<vmem>>, vector<128x1xi32>
    %c0_6 = arith.constant 0 : index
    %c0_7 = arith.constant 0 : index
    %6 = vector.load %arg1[%c0_6, %c0_7] : memref<1x128xi32, #tpu.memory_space<vmem>>, vector<1x128xi32>
    %c0_8 = arith.constant 0 : index
    %c0_9 = arith.constant 0 : index
    %7 = vector.load %arg2[%c0_8, %c0_9] : memref<1x128xi32, #tpu.memory_space<vmem>>, vector<1x128xi32>
    %8 = tpu.iota {dimensions = array<i32: 1>} : vector<128x16xi32>
    %9 = vector.broadcast %5 : vector<128x1xi32> to vector<128x16xi32>
    %10 = arith.cmpi eq, %9, %8 : vector<128x16xi32>
    %11 = arith.extui %10 : vector<128x16xi1> to vector<128x16xi32>
    %12 = arith.sitofp %11 : vector<128x16xi32> to vector<128x16xf32>
    %13 = arith.truncf %12 : vector<128x16xf32> to vector<128x16xbf16>
    %c0_10 = arith.constant 0 : index
    %c0_11 = arith.constant 0 : index
    %14 = vector.load %arg7[%c0_10, %c0_11] : memref<16x128xbf16, #tpu.memory_space<vmem>>, vector<16x128xbf16>
    %cst = arith.constant dense<0.000000e+00> : vector<128x128xf32>
    %15 = tpu.matmul %13, %14, %cst {dimension_numbers = #tpu.dot_dimension_numbers<[1], [0], [0], [1], [0, 0, 1, 1], [], []>} : vector<128x16xbf16>, vector<16x128xbf16>, vector<128x128xf32> -> vector<128x128xf32>
    %16 = arith.truncf %15 : vector<128x128xf32> to vector<128x128xbf16>
    %c0_12 = arith.constant 0 : index
    %c0_13 = arith.constant 0 : index
    %17 = vector.load %arg8[%c0_12, %c0_13] : memref<128x128xbf16, #tpu.memory_space<vmem>>, vector<128x128xbf16>
    %cst_14 = arith.constant dense<0.000000e+00> : vector<128x128xf32>
    %18 = tpu.matmul %16, %17, %cst_14 {dimension_numbers = #tpu.dot_dimension_numbers<[1], [0], [0], [1], [0, 0, 1, 1], [], []>} : vector<128x128xbf16>, vector<128x128xbf16>, vector<128x128xf32> -> vector<128x128xf32>
    %c0_15 = arith.constant 0 : index
    %c0_16 = arith.constant 0 : index
    %19 = vector.load %arg9[%c0_15, %c0_16] : memref<128x128xbf16, #tpu.memory_space<vmem>>, vector<128x128xbf16>
    %cst_17 = arith.constant dense<0.000000e+00> : vector<128x128xf32>
    %20 = tpu.matmul %3, %19, %cst_17 {dimension_numbers = #tpu.dot_dimension_numbers<[1], [0], [0], [1], [0, 0, 1, 1], [], []>} : vector<128x128xbf16>, vector<128x128xbf16>, vector<128x128xf32> -> vector<128x128xf32>
    %21 = arith.addf %18, %20 : vector<128x128xf32>
    %c0_18 = arith.constant 0 : index
    %c0_19 = arith.constant 0 : index
    %22 = vector.load %arg10[%c0_18, %c0_19] : memref<1x128xf32, #tpu.memory_space<vmem>>, vector<1x128xf32>
    %23 = vector.broadcast %22 : vector<1x128xf32> to vector<128x128xf32>
    %24 = arith.addf %21, %23 : vector<128x128xf32>
    %cst_20 = arith.constant 0.000000e+00 : f32
    %25 = vector.broadcast %cst_20 : f32 to vector<128x128xf32>
    %26 = arith.cmpf ogt, %24, %25 : vector<128x128xf32>
    %cst_21 = arith.constant 0.00999999977 : f32
    %27 = vector.broadcast %cst_21 : f32 to vector<128x128xf32>
    %28 = arith.mulf %27, %24 : vector<128x128xf32>
    %29 = arith.select %26, %24, %28 : vector<128x128xi1>, vector<128x128xf32>
    %30 = tpu.iota {dimensions = array<i32: 0>} : vector<8x128xi32>
    %31 = vector.broadcast %6 : vector<1x128xi32> to vector<8x128xi32>
    %32 = arith.cmpi eq, %31, %30 : vector<8x128xi32>
    %c0_22 = arith.constant 0 : index
    %c0_23 = arith.constant 0 : index
    %33 = vector.load %arg22[%c0_22, %c0_23] : memref<8x128xf32, #tpu.memory_space<vmem>>, vector<8x128xf32>
    %34 = arith.extui %32 : vector<8x128xi1> to vector<8x128xi32>
    %35 = arith.sitofp %34 : vector<8x128xi32> to vector<8x128xf32>
    %36 = arith.truncf %35 : vector<8x128xf32> to vector<8x128xbf16>
    %37 = arith.truncf %29 : vector<128x128xf32> to vector<128x128xbf16>
    %cst_24 = arith.constant dense<0.000000e+00> : vector<8x128xf32>
    %38 = tpu.matmul %36, %37, %cst_24 {dimension_numbers = #tpu.dot_dimension_numbers<[1], [0], [0], [1], [0, 0, 1, 1], [], []>} : vector<8x128xbf16>, vector<128x128xbf16>, vector<8x128xf32> -> vector<8x128xf32>
    %39 = arith.addf %33, %38 : vector<8x128xf32>
    %c0_25 = arith.constant 0 : index
    %c0_26 = arith.constant 0 : index
    %40 = vector.load %arg22[%c0_25, %c0_26] : memref<8x128xf32, #tpu.memory_space<vmem>>, vector<8x128xf32>
    tpu.vector_store %arg22[%c0_25, %c0_26], %39 {strides = array<i32>} : memref<8x128xf32, #tpu.memory_space<vmem>>, vector<8x128xf32>,
    %c0_27 = arith.constant 0 : index
    %c0_28 = arith.constant 0 : index
    %41 = vector.load %arg24[%c0_27, %c0_28] : memref<8x1xf32, #tpu.memory_space<vmem>>, vector<8x1xf32>
    %42 = arith.extui %32 : vector<8x128xi1> to vector<8x128xi32>
    %43 = arith.sitofp %42 : vector<8x128xi32> to vector<8x128xf32>
    %cst_29 = arith.constant dense<0.000000e+00> : vector<8xf32>
    %44 = vector.multi_reduction <add>, %43, %cst_29 [1] : vector<8x128xf32> to vector<8xf32>
    %45 = vector.shape_cast %44 : vector<8xf32> to vector<8x1xf32>
    %46 = arith.addf %41, %45 : vector<8x1xf32>
    %c0_30 = arith.constant 0 : index
    %c0_31 = arith.constant 0 : index
    %47 = vector.load %arg24[%c0_30, %c0_31] : memref<8x1xf32, #tpu.memory_space<vmem>>, vector<8x1xf32>
    tpu.vector_store %arg24[%c0_30, %c0_31], %46 {strides = array<i32>} : memref<8x1xf32, #tpu.memory_space<vmem>>, vector<8x1xf32>,
    %48 = tpu.iota {dimensions = array<i32: 1>} : vector<128x8xi32>
    %49 = vector.broadcast %4 : vector<128x1xi32> to vector<128x8xi32>
    %50 = arith.cmpi eq, %49, %48 : vector<128x8xi32>
    %51 = arith.extui %50 : vector<128x8xi1> to vector<128x8xi32>
    %52 = arith.sitofp %51 : vector<128x8xi32> to vector<128x8xf32>
    %53 = arith.truncf %52 : vector<128x8xf32> to vector<128x8xbf16>
    %c0_32 = arith.constant 0 : index
    %c0_33 = arith.constant 0 : index
    %54 = vector.load %arg6[%c0_32, %c0_33] : memref<8x128xbf16, #tpu.memory_space<vmem>>, vector<8x128xbf16>
    %cst_34 = arith.constant dense<0.000000e+00> : vector<128x128xf32>
    %55 = tpu.matmul %53, %54, %cst_34 {dimension_numbers = #tpu.dot_dimension_numbers<[1], [0], [0], [1], [0, 0, 1, 1], [], []>} : vector<128x8xbf16>, vector<8x128xbf16>, vector<128x128xf32> -> vector<128x128xf32>
    %56 = arith.truncf %55 : vector<128x128xf32> to vector<128x128xbf16>
    %c0_35 = arith.constant 0 : index
    %c0_36 = arith.constant 0 : index
    %57 = vector.load %arg11[%c0_35, %c0_36] : memref<128x128xbf16, #tpu.memory_space<vmem>>, vector<128x128xbf16>
    %cst_37 = arith.constant dense<0.000000e+00> : vector<128x128xf32>
    %58 = tpu.matmul %56, %57, %cst_37 {dimension_numbers = #tpu.dot_dimension_numbers<[1], [0], [0], [1], [0, 0, 1, 1], [], []>} : vector<128x128xbf16>, vector<128x128xbf16>, vector<128x128xf32> -> vector<128x128xf32>
    %c0_38 = arith.constant 0 : index
    %c0_39 = arith.constant 0 : index
    %59 = vector.load %arg12[%c0_38, %c0_39] : memref<128x128xbf16, #tpu.memory_space<vmem>>, vector<128x128xbf16>
    %cst_40 = arith.constant dense<0.000000e+00> : vector<128x128xf32>
    %60 = tpu.matmul %3, %59, %cst_40 {dimension_numbers = #tpu.dot_dimension_numbers<[1], [0], [0], [1], [0, 0, 1, 1], [], []>} : vector<128x128xbf16>, vector<128x128xbf16>, vector<128x128xf32> -> vector<128x128xf32>
    %61 = arith.addf %58, %60 : vector<128x128xf32>
    %c0_41 = arith.constant 0 : index
    %c0_42 = arith.constant 0 : index
    %62 = vector.load %arg13[%c0_41, %c0_42] : memref<1x128xf32, #tpu.memory_space<vmem>>, vector<1x128xf32>
    %63 = vector.broadcast %62 : vector<1x128xf32> to vector<128x128xf32>
    %64 = arith.addf %61, %63 : vector<128x128xf32>
    %cst_43 = arith.constant 0.000000e+00 : f32
    %65 = vector.broadcast %cst_43 : f32 to vector<128x128xf32>
    %66 = arith.cmpf ogt, %64, %65 : vector<128x128xf32>
    %cst_44 = arith.constant 0.00999999977 : f32
    %67 = vector.broadcast %cst_44 : f32 to vector<128x128xf32>
    %68 = arith.mulf %67, %64 : vector<128x128xf32>
    %69 = arith.select %66, %64, %68 : vector<128x128xi1>, vector<128x128xf32>
    %70 = tpu.iota {dimensions = array<i32: 0>} : vector<16x128xi32>
    %71 = vector.broadcast %7 : vector<1x128xi32> to vector<16x128xi32>
    %72 = arith.cmpi eq, %71, %70 : vector<16x128xi32>
    %c0_45 = arith.constant 0 : index
    %c0_46 = arith.constant 0 : index
    %73 = vector.load %arg23[%c0_45, %c0_46] : memref<16x128xf32, #tpu.memory_space<vmem>>, vector<16x128xf32>
    %74 = arith.extui %72 : vector<16x128xi1> to vector<16x128xi32>
    %75 = arith.sitofp %74 : vector<16x128xi32> to vector<16x128xf32>
    %76 = arith.truncf %75 : vector<16x128xf32> to vector<16x128xbf16>
    %77 = arith.truncf %69 : vector<128x128xf32> to vector<128x128xbf16>
    %cst_47 = arith.constant dense<0.000000e+00> : vector<16x128xf32>
    %78 = tpu.matmul %76, %77, %cst_47 {dimension_numbers = #tpu.dot_dimension_numbers<[1], [0], [0], [1], [0, 0, 1, 1], [], []>} : vector<16x128xbf16>, vector<128x128xbf16>, vector<16x128xf32> -> vector<16x128xf32>
    %79 = arith.addf %73, %78 : vector<16x128xf32>
    %c0_48 = arith.constant 0 : index
    %c0_49 = arith.constant 0 : index
    %80 = vector.load %arg23[%c0_48, %c0_49] : memref<16x128xf32, #tpu.memory_space<vmem>>, vector<16x128xf32>
    tpu.vector_store %arg23[%c0_48, %c0_49], %79 {strides = array<i32>} : memref<16x128xf32, #tpu.memory_space<vmem>>, vector<16x128xf32>,
    %c0_50 = arith.constant 0 : index
    %c0_51 = arith.constant 0 : index
    %81 = vector.load %arg25[%c0_50, %c0_51] : memref<16x1xf32, #tpu.memory_space<vmem>>, vector<16x1xf32>
    %82 = arith.extui %72 : vector<16x128xi1> to vector<16x128xi32>
    %83 = arith.sitofp %82 : vector<16x128xi32> to vector<16x128xf32>
    %cst_52 = arith.constant dense<0.000000e+00> : vector<16xf32>
    %84 = vector.multi_reduction <add>, %83, %cst_52 [1] : vector<16x128xf32> to vector<16xf32>
    %85 = vector.shape_cast %84 : vector<16xf32> to vector<16x1xf32>
    %86 = arith.addf %81, %85 : vector<16x1xf32>
    %c0_53 = arith.constant 0 : index
    %c0_54 = arith.constant 0 : index
    %87 = vector.load %arg25[%c0_53, %c0_54] : memref<16x1xf32, #tpu.memory_space<vmem>>, vector<16x1xf32>
    tpu.vector_store %arg25[%c0_53, %c0_54], %86 {strides = array<i32>} : memref<16x1xf32, #tpu.memory_space<vmem>>, vector<16x1xf32>,
    %c1_i32 = arith.constant 1 : i32
    %88 = arith.cmpi eq, %arg0, %c1_i32 : i32
    %89 = arith.extui %88 : i1 to i32
    %c0_i32_55 = arith.constant 0 : i32
    %90 = arith.cmpi ne, %89, %c0_i32_55 : i32
    scf.if %90 {
      %c0_56 = arith.constant 0 : index
      %c0_57 = arith.constant 0 : index
      %91 = vector.load %arg22[%c0_56, %c0_57] : memref<8x128xf32, #tpu.memory_space<vmem>>, vector<8x128xf32>
      %c0_58 = arith.constant 0 : index
      %c0_59 = arith.constant 0 : index
      %92 = vector.load %arg24[%c0_58, %c0_59] : memref<8x1xf32, #tpu.memory_space<vmem>>, vector<8x1xf32>
      %cst_60 = arith.constant 1.000000e+00 : f32
      %93 = vector.broadcast %cst_60 : f32 to vector<8x1xf32>
      %94 = arith.maximumf %92, %93 : vector<8x1xf32>
      %95 = vector.broadcast %94 : vector<8x1xf32> to vector<8x128xf32>
      %96 = arith.divf %91, %95 : vector<8x128xf32>
      %c0_61 = arith.constant 0 : index
      %c0_62 = arith.constant 0 : index
      %97 = vector.load %arg23[%c0_61, %c0_62] : memref<16x128xf32, #tpu.memory_space<vmem>>, vector<16x128xf32>
      %c0_63 = arith.constant 0 : index
      %c0_64 = arith.constant 0 : index
      %98 = vector.load %arg25[%c0_63, %c0_64] : memref<16x1xf32, #tpu.memory_space<vmem>>, vector<16x1xf32>
      %cst_65 = arith.constant 1.000000e+00 : f32
      %99 = vector.broadcast %cst_65 : f32 to vector<16x1xf32>
      %100 = arith.maximumf %98, %99 : vector<16x1xf32>
      %101 = vector.broadcast %100 : vector<16x1xf32> to vector<16x128xf32>
      %102 = arith.divf %97, %101 : vector<16x128xf32>
      %c0_66 = arith.constant 0 : index
      %c0_67 = arith.constant 0 : index
      %103 = vector.load %arg6[%c0_66, %c0_67] : memref<8x128xbf16, #tpu.memory_space<vmem>>, vector<8x128xbf16>
      %c0_68 = arith.constant 0 : index
      %c0_69 = arith.constant 0 : index
      %104 = vector.load %arg14[%c0_68, %c0_69] : memref<128x128xbf16, #tpu.memory_space<vmem>>, vector<128x128xbf16>
      %cst_70 = arith.constant dense<0.000000e+00> : vector<8x128xf32>
      %105 = tpu.matmul %103, %104, %cst_70 {dimension_numbers = #tpu.dot_dimension_numbers<[1], [0], [0], [1], [0, 0, 1, 1], [], []>} : vector<8x128xbf16>, vector<128x128xbf16>, vector<8x128xf32> -> vector<8x128xf32>
      %106 = arith.truncf %96 : vector<8x128xf32> to vector<8x128xbf16>
      %c0_71 = arith.constant 0 : index
      %c0_72 = arith.constant 0 : index
      %107 = vector.load %arg15[%c0_71, %c0_72] : memref<128x128xbf16, #tpu.memory_space<vmem>>, vector<128x128xbf16>
      %cst_73 = arith.constant dense<0.000000e+00> : vector<8x128xf32>
      %108 = tpu.matmul %106, %107, %cst_73 {dimension_numbers = #tpu.dot_dimension_numbers<[1], [0], [0], [1], [0, 0, 1, 1], [], []>} : vector<8x128xbf16>, vector<128x128xbf16>, vector<8x128xf32> -> vector<8x128xf32>
      %109 = arith.addf %105, %108 : vector<8x128xf32>
      %c0_74 = arith.constant 0 : index
      %c0_75 = arith.constant 0 : index
      %110 = vector.load %arg16[%c0_74, %c0_75] : memref<1x128xf32, #tpu.memory_space<vmem>>, vector<1x128xf32>
      %111 = vector.broadcast %110 : vector<1x128xf32> to vector<8x128xf32>
      %112 = arith.addf %109, %111 : vector<8x128xf32>
      %c0_76 = arith.constant 0 : index
      %c0_77 = arith.constant 0 : index
      %113 = vector.load %arg7[%c0_76, %c0_77] : memref<16x128xbf16, #tpu.memory_space<vmem>>, vector<16x128xbf16>
      %c0_78 = arith.constant 0 : index
      %c0_79 = arith.constant 0 : index
      %114 = vector.load %arg17[%c0_78, %c0_79] : memref<128x128xbf16, #tpu.memory_space<vmem>>, vector<128x128xbf16>
      %cst_80 = arith.constant dense<0.000000e+00> : vector<16x128xf32>
      %115 = tpu.matmul %113, %114, %cst_80 {dimension_numbers = #tpu.dot_dimension_numbers<[1], [0], [0], [1], [0, 0, 1, 1], [], []>} : vector<16x128xbf16>, vector<128x128xbf16>, vector<16x128xf32> -> vector<16x128xf32>
      %116 = arith.truncf %102 : vector<16x128xf32> to vector<16x128xbf16>
      %c0_81 = arith.constant 0 : index
      %c0_82 = arith.constant 0 : index
      %117 = vector.load %arg18[%c0_81, %c0_82] : memref<128x128xbf16, #tpu.memory_space<vmem>>, vector<128x128xbf16>
      %cst_83 = arith.constant dense<0.000000e+00> : vector<16x128xf32>
      %118 = tpu.matmul %116, %117, %cst_83 {dimension_numbers = #tpu.dot_dimension_numbers<[1], [0], [0], [1], [0, 0, 1, 1], [], []>} : vector<16x128xbf16>, vector<128x128xbf16>, vector<16x128xf32> -> vector<16x128xf32>
      %119 = arith.addf %115, %118 : vector<16x128xf32>
      %c0_84 = arith.constant 0 : index
      %c0_85 = arith.constant 0 : index
      %120 = vector.load %arg19[%c0_84, %c0_85] : memref<1x128xf32, #tpu.memory_space<vmem>>, vector<1x128xf32>
      %121 = vector.broadcast %120 : vector<1x128xf32> to vector<16x128xf32>
      %122 = arith.addf %119, %121 : vector<16x128xf32>
      %c0_86 = arith.constant 0 : index
      %c0_87 = arith.constant 0 : index
      %123 = vector.load %arg20[%c0_86, %c0_87] : memref<8x128xf32, #tpu.memory_space<vmem>>, vector<8x128xf32>
      tpu.vector_store %arg20[%c0_86, %c0_87], %112 {strides = array<i32>} : memref<8x128xf32, #tpu.memory_space<vmem>>, vector<8x128xf32>,
      %c0_88 = arith.constant 0 : index
      %c0_89 = arith.constant 0 : index
      %124 = vector.load %arg21[%c0_88, %c0_89] : memref<16x128xf32, #tpu.memory_space<vmem>>, vector<16x128xf32>
      tpu.vector_store %arg21[%c0_88, %c0_89], %122 {strides = array<i32>} : memref<16x128xf32, #tpu.memory_space<vmem>>, vector<16x128xf32>,
    } else {
    }
    return
  }
  func.func @transform_0(%arg0: i32) -> (i32, i32) {
    %c0_i32 = arith.constant 0 : i32
    %c0_i32_0 = arith.constant 0 : i32
    return %c0_i32, %arg0 : i32, i32
  }
  func.func @transform_1(%arg0: i32) -> (i32, i32) {
    %c0_i32 = arith.constant 0 : i32
    %c0_i32_0 = arith.constant 0 : i32
    return %c0_i32, %arg0 : i32, i32
  }
  func.func @transform_2(%arg0: i32) -> (i32, i32) {
    %c0_i32 = arith.constant 0 : i32
    %c0_i32_0 = arith.constant 0 : i32
    return %arg0, %c0_i32 : i32, i32
  }
  func.func @transform_3(%arg0: i32) -> (i32, i32) {
    %c0_i32 = arith.constant 0 : i32
    %c0_i32_0 = arith.constant 0 : i32
    return %arg0, %c0_i32 : i32, i32
  }
  func.func @transform_4(%arg0: i32) -> (i32, i32) {
    %c0_i32 = arith.constant 0 : i32
    %c0_i32_0 = arith.constant 0 : i32
    return %arg0, %c0_i32 : i32, i32
  }
  func.func @transform_5(%arg0: i32) -> (i32, i32) {
    %c0_i32 = arith.constant 0 : i32
    %c0_i32_0 = arith.constant 0 : i32
    %c0_i32_1 = arith.constant 0 : i32
    return %c0_i32, %c0_i32_0 : i32, i32
  }
  func.func @transform_6(%arg0: i32) -> (i32, i32) {
    %c0_i32 = arith.constant 0 : i32
    %c0_i32_0 = arith.constant 0 : i32
    %c0_i32_1 = arith.constant 0 : i32
    return %c0_i32, %c0_i32_0 : i32, i32
  }
  func.func @transform_7(%arg0: i32) -> (i32, i32) {
    %c0_i32 = arith.constant 0 : i32
    %c0_i32_0 = arith.constant 0 : i32
    %c0_i32_1 = arith.constant 0 : i32
    return %c0_i32, %c0_i32_0 : i32, i32
  }
  func.func @transform_8(%arg0: i32) -> (i32, i32) {
    %c0_i32 = arith.constant 0 : i32
    %c0_i32_0 = arith.constant 0 : i32
    %c0_i32_1 = arith.constant 0 : i32
    return %c0_i32, %c0_i32_0 : i32, i32
  }
  func.func @transform_9(%arg0: i32) -> (i32, i32) {
    %c0_i32 = arith.constant 0 : i32
    %c0_i32_0 = arith.constant 0 : i32
    %c0_i32_1 = arith.constant 0 : i32
    return %c0_i32, %c0_i32_0 : i32, i32
  }
  func.func @transform_10(%arg0: i32) -> (i32, i32) {
    %c0_i32 = arith.constant 0 : i32
    %c0_i32_0 = arith.constant 0 : i32
    %c0_i32_1 = arith.constant 0 : i32
    return %c0_i32, %c0_i32_0 : i32, i32
  }
  func.func @transform_11(%arg0: i32) -> (i32, i32) {
    %c0_i32 = arith.constant 0 : i32
    %c0_i32_0 = arith.constant 0 : i32
    %c0_i32_1 = arith.constant 0 : i32
    return %c0_i32, %c0_i32_0 : i32, i32
  }
  func.func @transform_12(%arg0: i32) -> (i32, i32) {
    %c0_i32 = arith.constant 0 : i32
    %c0_i32_0 = arith.constant 0 : i32
    %c0_i32_1 = arith.constant 0 : i32
    return %c0_i32, %c0_i32_0 : i32, i32
  }
  func.func @transform_13(%arg0: i32) -> (i32, i32) {
    %c0_i32 = arith.constant 0 : i32
    %c0_i32_0 = arith.constant 0 : i32
    %c0_i32_1 = arith.constant 0 : i32
    return %c0_i32, %c0_i32_0 : i32, i32
  }
  func.func @transform_14(%arg0: i32) -> (i32, i32) {
    %c0_i32 = arith.constant 0 : i32
    %c0_i32_0 = arith.constant 0 : i32
    %c0_i32_1 = arith.constant 0 : i32
    return %c0_i32, %c0_i32_0 : i32, i32
  }
  func.func @transform_15(%arg0: i32) -> (i32, i32) {
    %c0_i32 = arith.constant 0 : i32
    %c0_i32_0 = arith.constant 0 : i32
    %c0_i32_1 = arith.constant 0 : i32
    return %c0_i32, %c0_i32_0 : i32, i32
  }
  func.func @transform_16(%arg0: i32) -> (i32, i32) {
    %c0_i32 = arith.constant 0 : i32
    %c0_i32_0 = arith.constant 0 : i32
    %c0_i32_1 = arith.constant 0 : i32
    return %c0_i32, %c0_i32_0 : i32, i32
  }
  func.func @transform_17(%arg0: i32) -> (i32, i32) {
    %c0_i32 = arith.constant 0 : i32
    %c0_i32_0 = arith.constant 0 : i32
    %c0_i32_1 = arith.constant 0 : i32
    return %c0_i32, %c0_i32_0 : i32, i32
  }
  func.func @transform_18(%arg0: i32) -> (i32, i32) {
    %c0_i32 = arith.constant 0 : i32
    %c0_i32_0 = arith.constant 0 : i32
    %c0_i32_1 = arith.constant 0 : i32
    return %c0_i32, %c0_i32_0 : i32, i32
  }
  func.func @transform_19(%arg0: i32) -> (i32, i32) {
    %c0_i32 = arith.constant 0 : i32
    %c0_i32_0 = arith.constant 0 : i32
    %c0_i32_1 = arith.constant 0 : i32
    return %c0_i32, %c0_i32_0 : i32, i32
  }
  func.func @transform_20(%arg0: i32) -> (i32, i32) {
    %c0_i32 = arith.constant 0 : i32
    %c0_i32_0 = arith.constant 0 : i32
    %c0_i32_1 = arith.constant 0 : i32
    return %c0_i32, %c0_i32_0 : i32, i32
  }
}

module attributes {stable_mosaic.version = 11 : i64} {
  func.func @_gcn_edge_kernel(%arg0: i32, %arg1: memref<128x1xi32, #tpu.memory_space<vmem>>, %arg2: memref<128x1xi32, #tpu.memory_space<vmem>>, %arg3: memref<128x128xbf16, #tpu.memory_space<vmem>>, %arg4: memref<8x128xbf16, #tpu.memory_space<vmem>>, %arg5: memref<16x128xbf16, #tpu.memory_space<vmem>>, %arg6: memref<128x128xbf16, #tpu.memory_space<vmem>>, %arg7: memref<128x128xbf16, #tpu.memory_space<vmem>>, %arg8: memref<128x128xbf16, #tpu.memory_space<vmem>>, %arg9: memref<1x128xf32, #tpu.memory_space<vmem>>, %arg10: memref<128x128xf32, #tpu.memory_space<vmem>>) attributes {dimension_semantics = [#tpu.dimension_semantics<parallel>], iteration_bounds = array<i64: 2>, scalar_prefetch = 0 : i64, scratch_operands = 0 : i64, tpu.core_type = #tpu.core_type<tc>, window_params = [{transform_indices = @transform_0, window_bounds = array<i64: 128, 1>}, {transform_indices = @transform_1, window_bounds = array<i64: 128, 1>}, {transform_indices = @transform_2, window_bounds = array<i64: 128, 128>}, {pipeline_mode = #tpu.pipeline_mode<synchronous>, transform_indices = @transform_3, window_bounds = array<i64: 8, 128>}, {pipeline_mode = #tpu.pipeline_mode<synchronous>, transform_indices = @transform_4, window_bounds = array<i64: 16, 128>}, {pipeline_mode = #tpu.pipeline_mode<synchronous>, transform_indices = @transform_5, window_bounds = array<i64: 128, 128>}, {pipeline_mode = #tpu.pipeline_mode<synchronous>, transform_indices = @transform_6, window_bounds = array<i64: 128, 128>}, {pipeline_mode = #tpu.pipeline_mode<synchronous>, transform_indices = @transform_7, window_bounds = array<i64: 128, 128>}, {pipeline_mode = #tpu.pipeline_mode<synchronous>, transform_indices = @transform_8, window_bounds = array<i64: 1, 128>}, {transform_indices = @transform_9, window_bounds = array<i64: 128, 128>}]} {
    %c0 = arith.constant 0 : index
    %c0_0 = arith.constant 0 : index
    %0 = vector.load %arg1[%c0, %c0_0] : memref<128x1xi32, #tpu.memory_space<vmem>>, vector<128x1xi32>
    %1 = tpu.iota {dimensions = array<i32: 1>} : vector<128x8xi32>
    %2 = vector.broadcast %0 : vector<128x1xi32> to vector<128x8xi32>
    %3 = arith.cmpi eq, %2, %1 : vector<128x8xi32>
    %4 = arith.extui %3 : vector<128x8xi1> to vector<128x8xi32>
    %5 = arith.sitofp %4 : vector<128x8xi32> to vector<128x8xf32>
    %6 = arith.truncf %5 : vector<128x8xf32> to vector<128x8xbf16>
    %c0_1 = arith.constant 0 : index
    %c0_2 = arith.constant 0 : index
    %7 = vector.load %arg4[%c0_1, %c0_2] : memref<8x128xbf16, #tpu.memory_space<vmem>>, vector<8x128xbf16>
    %cst = arith.constant dense<0.000000e+00> : vector<128x128xf32>
    %8 = tpu.matmul %6, %7, %cst {dimension_numbers = #tpu.dot_dimension_numbers<[1], [0], [0], [1], [0, 0, 1, 1], [], []>} : vector<128x8xbf16>, vector<8x128xbf16>, vector<128x128xf32> -> vector<128x128xf32>
    %c0_3 = arith.constant 0 : index
    %c0_4 = arith.constant 0 : index
    %9 = vector.load %arg2[%c0_3, %c0_4] : memref<128x1xi32, #tpu.memory_space<vmem>>, vector<128x1xi32>
    %10 = tpu.iota {dimensions = array<i32: 1>} : vector<128x16xi32>
    %11 = vector.broadcast %9 : vector<128x1xi32> to vector<128x16xi32>
    %12 = arith.cmpi eq, %11, %10 : vector<128x16xi32>
    %13 = arith.extui %12 : vector<128x16xi1> to vector<128x16xi32>
    %14 = arith.sitofp %13 : vector<128x16xi32> to vector<128x16xf32>
    %15 = arith.truncf %14 : vector<128x16xf32> to vector<128x16xbf16>
    %c0_5 = arith.constant 0 : index
    %c0_6 = arith.constant 0 : index
    %16 = vector.load %arg5[%c0_5, %c0_6] : memref<16x128xbf16, #tpu.memory_space<vmem>>, vector<16x128xbf16>
    %cst_7 = arith.constant dense<0.000000e+00> : vector<128x128xf32>
    %17 = tpu.matmul %15, %16, %cst_7 {dimension_numbers = #tpu.dot_dimension_numbers<[1], [0], [0], [1], [0, 0, 1, 1], [], []>} : vector<128x16xbf16>, vector<16x128xbf16>, vector<128x128xf32> -> vector<128x128xf32>
    %c0_8 = arith.constant 0 : index
    %c0_9 = arith.constant 0 : index
    %18 = vector.load %arg3[%c0_8, %c0_9] : memref<128x128xbf16, #tpu.memory_space<vmem>>, vector<128x128xbf16>
    %c0_10 = arith.constant 0 : index
    %c0_11 = arith.constant 0 : index
    %19 = vector.load %arg6[%c0_10, %c0_11] : memref<128x128xbf16, #tpu.memory_space<vmem>>, vector<128x128xbf16>
    %cst_12 = arith.constant dense<0.000000e+00> : vector<128x128xf32>
    %20 = tpu.matmul %18, %19, %cst_12 {dimension_numbers = #tpu.dot_dimension_numbers<[1], [0], [0], [1], [0, 0, 1, 1], [], []>} : vector<128x128xbf16>, vector<128x128xbf16>, vector<128x128xf32> -> vector<128x128xf32>
    %21 = arith.truncf %8 : vector<128x128xf32> to vector<128x128xbf16>
    %c0_13 = arith.constant 0 : index
    %c0_14 = arith.constant 0 : index
    %22 = vector.load %arg7[%c0_13, %c0_14] : memref<128x128xbf16, #tpu.memory_space<vmem>>, vector<128x128xbf16>
    %cst_15 = arith.constant dense<0.000000e+00> : vector<128x128xf32>
    %23 = tpu.matmul %21, %22, %cst_15 {dimension_numbers = #tpu.dot_dimension_numbers<[1], [0], [0], [1], [0, 0, 1, 1], [], []>} : vector<128x128xbf16>, vector<128x128xbf16>, vector<128x128xf32> -> vector<128x128xf32>
    %24 = arith.addf %20, %23 : vector<128x128xf32>
    %25 = arith.truncf %17 : vector<128x128xf32> to vector<128x128xbf16>
    %c0_16 = arith.constant 0 : index
    %c0_17 = arith.constant 0 : index
    %26 = vector.load %arg8[%c0_16, %c0_17] : memref<128x128xbf16, #tpu.memory_space<vmem>>, vector<128x128xbf16>
    %cst_18 = arith.constant dense<0.000000e+00> : vector<128x128xf32>
    %27 = tpu.matmul %25, %26, %cst_18 {dimension_numbers = #tpu.dot_dimension_numbers<[1], [0], [0], [1], [0, 0, 1, 1], [], []>} : vector<128x128xbf16>, vector<128x128xbf16>, vector<128x128xf32> -> vector<128x128xf32>
    %28 = arith.addf %24, %27 : vector<128x128xf32>
    %c0_19 = arith.constant 0 : index
    %c0_20 = arith.constant 0 : index
    %29 = vector.load %arg9[%c0_19, %c0_20] : memref<1x128xf32, #tpu.memory_space<vmem>>, vector<1x128xf32>
    %30 = vector.broadcast %29 : vector<1x128xf32> to vector<128x128xf32>
    %31 = arith.addf %28, %30 : vector<128x128xf32>
    %c0_21 = arith.constant 0 : index
    %c0_22 = arith.constant 0 : index
    %32 = vector.load %arg10[%c0_21, %c0_22] : memref<128x128xf32, #tpu.memory_space<vmem>>, vector<128x128xf32>
    tpu.vector_store %arg10[%c0_21, %c0_22], %31 {strides = array<i32>} : memref<128x128xf32, #tpu.memory_space<vmem>>, vector<128x128xf32>,
    return
  }
  func.func @transform_0(%arg0: i32) -> (i32, i32) {
    %c0_i32 = arith.constant 0 : i32
    %c0_i32_0 = arith.constant 0 : i32
    return %arg0, %c0_i32 : i32, i32
  }
  func.func @transform_1(%arg0: i32) -> (i32, i32) {
    %c0_i32 = arith.constant 0 : i32
    %c0_i32_0 = arith.constant 0 : i32
    return %arg0, %c0_i32 : i32, i32
  }
  func.func @transform_2(%arg0: i32) -> (i32, i32) {
    %c0_i32 = arith.constant 0 : i32
    %c0_i32_0 = arith.constant 0 : i32
    return %arg0, %c0_i32 : i32, i32
  }
  func.func @transform_3(%arg0: i32) -> (i32, i32) {
    %c0_i32 = arith.constant 0 : i32
    %c0_i32_0 = arith.constant 0 : i32
    %c0_i32_1 = arith.constant 0 : i32
    return %c0_i32, %c0_i32_0 : i32, i32
  }
  func.func @transform_4(%arg0: i32) -> (i32, i32) {
    %c0_i32 = arith.constant 0 : i32
    %c0_i32_0 = arith.constant 0 : i32
    %c0_i32_1 = arith.constant 0 : i32
    return %c0_i32, %c0_i32_0 : i32, i32
  }
  func.func @transform_5(%arg0: i32) -> (i32, i32) {
    %c0_i32 = arith.constant 0 : i32
    %c0_i32_0 = arith.constant 0 : i32
    %c0_i32_1 = arith.constant 0 : i32
    return %c0_i32, %c0_i32_0 : i32, i32
  }
  func.func @transform_6(%arg0: i32) -> (i32, i32) {
    %c0_i32 = arith.constant 0 : i32
    %c0_i32_0 = arith.constant 0 : i32
    %c0_i32_1 = arith.constant 0 : i32
    return %c0_i32, %c0_i32_0 : i32, i32
  }
  func.func @transform_7(%arg0: i32) -> (i32, i32) {
    %c0_i32 = arith.constant 0 : i32
    %c0_i32_0 = arith.constant 0 : i32
    %c0_i32_1 = arith.constant 0 : i32
    return %c0_i32, %c0_i32_0 : i32, i32
  }
  func.func @transform_8(%arg0: i32) -> (i32, i32) {
    %c0_i32 = arith.constant 0 : i32
    %c0_i32_0 = arith.constant 0 : i32
    %c0_i32_1 = arith.constant 0 : i32
    return %c0_i32, %c0_i32_0 : i32, i32
  }
  func.func @transform_9(%arg0: i32) -> (i32, i32) {
    %c0_i32 = arith.constant 0 : i32
    %c0_i32_0 = arith.constant 0 : i32
    return %arg0, %c0_i32 : i32, i32
  }
}

</mosaic_0001>

<llo_original>
// kernel: gcn_block_forward.3
$region0: #{gcn_block_forward.3}
  #allocation0 [shape = 'u32[]', space=smem, size = 0x4, offset = 0x4, fixed_abs, tag = 'smem constant byte address 0x4 - core index']
  #allocation1 [shape = 'u32[144,128]{1,0:T(1,128)}', space=vmem, size = 0x12000, scoped, tag = 'internal scratch']
  %s0 = inlined_call_operand.vmem [shape: s32[256,1], index: 0, kind: input, shape index: {}]
  %s1 = inlined_call_operand.vmem [shape: s32[256,1], index: 1, kind: input, shape index: {}]
  %s2 = inlined_call_operand.vmem [shape: bf16[256,128], index: 2, kind: input, shape index: {}]
  %s3 = inlined_call_operand.vmem [shape: bf16[8,128], index: 3, kind: input, shape index: {}]
  %s4 = inlined_call_operand.vmem [shape: bf16[16,128], index: 4, kind: input, shape index: {}]
  %s5 = inlined_call_operand.vmem [shape: bf16[128,128], index: 5, kind: input, shape index: {}]
  %s6 = inlined_call_operand.vmem [shape: bf16[128,128], index: 6, kind: input, shape index: {}]
  %s7 = inlined_call_operand.vmem [shape: bf16[128,128], index: 7, kind: input, shape index: {}]
  %s8 = inlined_call_operand.vmem [shape: f32[1,128], index: 8, kind: input, shape index: {}]
  %s9 = inlined_call_operand.vmem [shape: f32[256,128], index: 9, kind: output, shape index: {}]
  %s10 = sld [smem:[#allocation0]]
  $region69: #{gcn_block_forward.3} parent=0
    _
  %s12 = ssub.s32 1, %s10
  %s13 = scalar_select 0, %s12, %s10
  loop: start=0, step=1, limit=4
  $region2: #{gcn_block_forward.3} parent=0 // loop_pre_header
    _
  $region3: #{gcn_block_forward.3} parent=0 // loop_header
    %s15 = sphi 0, %s19
    %p16 = scmp.ge.s32.totalorder %s15, 4
    %s25 = sphi 0, %s27
    %s28 = sphi 0, %s25
    %s29 = sphi 0, %s28
    %s45 = sphi 0, %s29
    %s51 = sphi 0, %s53
    %s54 = sphi 0, %s51
    %s55 = sphi 0, %s54
    %s71 = sphi 0, %s55
    %s77 = sphi 0, %s79
    %s80 = sphi 0, %s77
    %s81 = sphi 0, %s80
    %s97 = sphi 0, %s81
    %s101 = sphi 0, %s101
    %s103 = sphi 0, %s101
    %s104 = sphi 0, %s103
    %s118 = sphi 0, %s104
    %s122 = sphi 0, %s122
    %s124 = sphi 0, %s122
    %s125 = sphi 0, %s124
    %s139 = sphi 0, %s125
    %s143 = sphi 0, %s143
    %s145 = sphi 0, %s143
    %s146 = sphi 0, %s145
    %s160 = sphi 0, %s146
    %s164 = sphi 0, %s164
    %s166 = sphi 0, %s164
    %s167 = sphi 0, %s166
    %s181 = sphi 0, %s167
    %s185 = sphi 0, %s185
    %s187 = sphi 0, %s185
    %s188 = sphi 0, %s187
    %s202 = sphi 0, %s188
    %s206 = sphi 0, %s206
    %s208 = sphi 0, %s206
    %s209 = sphi 0, %s208
    %s223 = sphi 0, %s209
    %s229 = sphi 0, %s231
    %s232 = sphi 0, %s229
    %s233 = sphi 0, %s232
    %s249 = sphi 0, %s233
  $region4: #{gcn_block_forward.3} parent=0 // loop_header_branch
    %18 = sbr.rel (%p16) target = $region8
  $region5: #{gcn_block_forward.3} parent=0 // loop_body
    %s20 = ssub.s32 %s15, 1
    %s21 = ssub.s32 %s15, 2
    %s22 = sadd.s32 %s15, 1
    %s23 = ssub.s32 %s15, %s22
    %p24 = scmp.eq.s32.totalorder %s23, 0
    %s26 = sadd.s32 %s25, 1
    %s27 = scalar_select %p24, %s25, %s26
    %p30 = pneg %p24
    %p31 = scmp.eq.s32.totalorder %s15, 1
    %p32 = por %p30, %p31
    %p33 = scmp.ne.s32.totalorder %s25, %s28
    %p34 = scmp.eq.s32.totalorder %s15, 0
    %p35 = por %p33, %p34
    %p36 = scmp.ne.s32.totalorder %s25, %s28
    %p37 = scmp.eq.s32.totalorder %s20, 1
    %p38 = por %p36, %p37
    %p39 = scmp.ne.s32.totalorder %s28, %s29
    %p40 = scmp.eq.s32.totalorder %s20, 0
    %p41 = por %p39, %p40
    %p42 = scmp.ne.s32.totalorder %s28, %s29
    %p43 = scmp.eq.s32.totalorder %s21, 1
    %p44 = por %p42, %p43
    %p46 = scmp.ne.s32.totalorder %s29, %s45
    %p47 = scmp.eq.s32.totalorder %s21, 0
    %p48 = por %p46, %p47
    %s49 = ssub.s32 %s15, %s22
    %p50 = scmp.eq.s32.totalorder %s49, 0
    %s52 = sadd.s32 %s51, 1
    %s53 = scalar_select %p50, %s51, %s52
    %p56 = pneg %p50
    %p57 = scmp.eq.s32.totalorder %s15, 1
    %p58 = por %p56, %p57
    %p59 = scmp.ne.s32.totalorder %s51, %s54
    %p60 = scmp.eq.s32.totalorder %s15, 0
    %p61 = por %p59, %p60
    %p62 = scmp.ne.s32.totalorder %s51, %s54
    %p63 = scmp.eq.s32.totalorder %s20, 1
    %p64 = por %p62, %p63
    %p65 = scmp.ne.s32.totalorder %s54, %s55
    %p66 = scmp.eq.s32.totalorder %s20, 0
    %p67 = por %p65, %p66
    %p68 = scmp.ne.s32.totalorder %s54, %s55
    %p69 = scmp.eq.s32.totalorder %s21, 1
    %p70 = por %p68, %p69
    %p72 = scmp.ne.s32.totalorder %s55, %s71
    %p73 = scmp.eq.s32.totalorder %s21, 0
    %p74 = por %p72, %p73
    %s75 = ssub.s32 %s15, %s22
    %p76 = scmp.eq.s32.totalorder %s75, 0
    %s78 = sadd.s32 %s77, 1
    %s79 = scalar_select %p76, %s77, %s78
    %p82 = pneg %p76
    %p83 = scmp.eq.s32.totalorder %s15, 1
    %p84 = por %p82, %p83
    %p85 = scmp.ne.s32.totalorder %s77, %s80
    %p86 = scmp.eq.s32.totalorder %s15, 0
    %p87 = por %p85, %p86
    %p88 = scmp.ne.s32.totalorder %s77, %s80
    %p89 = scmp.eq.s32.totalorder %s20, 1
    %p90 = por %p88, %p89
    %p91 = scmp.ne.s32.totalorder %s80, %s81
    %p92 = scmp.eq.s32.totalorder %s20, 0
    %p93 = por %p91, %p92
    %p94 = scmp.ne.s32.totalorder %s80, %s81
    %p95 = scmp.eq.s32.totalorder %s21, 1
    %p96 = por %p94, %p95
    %p98 = scmp.ne.s32.totalorder %s81, %s97
    %p99 = scmp.eq.s32.totalorder %s21, 0
    %p100 = por %p98, %p99
    %s102 = sadd.s32 %s101, 1
    %p105 = scmp.eq.s32.totalorder %s15, 1
    %p106 = scmp.ne.s32.totalorder %s101, %s103
    %p107 = scmp.eq.s32.totalorder %s15, 0
    %p108 = por %p106, %p107
    %p109 = scmp.ne.s32.totalorder %s101, %s103
    %p110 = scmp.eq.s32.totalorder %s20, 1
    %p111 = por %p109, %p110
    %p112 = scmp.ne.s32.totalorder %s103, %s104
    %p113 = scmp.eq.s32.totalorder %s20, 0
    %p114 = por %p112, %p113
    %p115 = scmp.ne.s32.totalorder %s103, %s104
    %p116 = scmp.eq.s32.totalorder %s21, 1
    %p117 = por %p115, %p116
    %p119 = scmp.ne.s32.totalorder %s104, %s118
    %p120 = scmp.eq.s32.totalorder %s21, 0
    %p121 = por %p119, %p120
    %s123 = sadd.s32 %s122, 1
    %p126 = scmp.eq.s32.totalorder %s15, 1
    %p127 = scmp.ne.s32.totalorder %s122, %s124
    %p128 = scmp.eq.s32.totalorder %s15, 0
    %p129 = por %p127, %p128
    %p130 = scmp.ne.s32.totalorder %s122, %s124
    %p131 = scmp.eq.s32.totalorder %s20, 1
    %p132 = por %p130, %p131
    %p133 = scmp.ne.s32.totalorder %s124, %s125
    %p134 = scmp.eq.s32.totalorder %s20, 0
    %p135 = por %p133, %p134
    %p136 = scmp.ne.s32.totalorder %s124, %s125
    %p137 = scmp.eq.s32.totalorder %s21, 1
    %p138 = por %p136, %p137
    %p140 = scmp.ne.s32.totalorder %s125, %s139
    %p141 = scmp.eq.s32.totalorder %s21, 0
    %p142 = por %p140, %p141
    %s144 = sadd.s32 %s143, 1
    %p147 = scmp.eq.s32.totalorder %s15, 1
    %p148 = scmp.ne.s32.totalorder %s143, %s145
    %p149 = scmp.eq.s32.totalorder %s15, 0
    %p150 = por %p148, %p149
    %p151 = scmp.ne.s32.totalorder %s143, %s145
    %p152 = scmp.eq.s32.totalorder %s20, 1
    %p153 = por %p151, %p152
    %p154 = scmp.ne.s32.totalorder %s145, %s146
    %p155 = scmp.eq.s32.totalorder %s20, 0
    %p156 = por %p154, %p155
    %p157 = scmp.ne.s32.totalorder %s145, %s146
    %p158 = scmp.eq.s32.totalorder %s21, 1
    %p159 = por %p157, %p158
    %p161 = scmp.ne.s32.totalorder %s146, %s160
    %p162 = scmp.eq.s32.totalorder %s21, 0
    %p163 = por %p161, %p162
    %s165 = sadd.s32 %s164, 1
    %p168 = scmp.eq.s32.totalorder %s15, 1
    %p169 = scmp.ne.s32.totalorder %s164, %s166
    %p170 = scmp.eq.s32.totalorder %s15, 0
    %p171 = por %p169, %p170
    %p172 = scmp.ne.s32.totalorder %s164, %s166
    %p173 = scmp.eq.s32.totalorder %s20, 1
    %p174 = por %p172, %p173
    %p175 = scmp.ne.s32.totalorder %s166, %s167
    %p176 = scmp.eq.s32.totalorder %s20, 0
    %p177 = por %p175, %p176
    %p178 = scmp.ne.s32.totalorder %s166, %s167
    %p179 = scmp.eq.s32.totalorder %s21, 1
    %p180 = por %p178, %p179
    %p182 = scmp.ne.s32.totalorder %s167, %s181
    %p183 = scmp.eq.s32.totalorder %s21, 0
    %p184 = por %p182, %p183
    %s186 = sadd.s32 %s185, 1
    %p189 = scmp.eq.s32.totalorder %s15, 1
    %p190 = scmp.ne.s32.totalorder %s185, %s187
    %p191 = scmp.eq.s32.totalorder %s15, 0
    %p192 = por %p190, %p191
    %p193 = scmp.ne.s32.totalorder %s185, %s187
    %p194 = scmp.eq.s32.totalorder %s20, 1
    %p195 = por %p193, %p194
    %p196 = scmp.ne.s32.totalorder %s187, %s188
    %p197 = scmp.eq.s32.totalorder %s20, 0
    %p198 = por %p196, %p197
    %p199 = scmp.ne.s32.totalorder %s187, %s188
    %p200 = scmp.eq.s32.totalorder %s21, 1
    %p201 = por %p199, %p200
    %p203 = scmp.ne.s32.totalorder %s188, %s202
    %p204 = scmp.eq.s32.totalorder %s21, 0
    %p205 = por %p203, %p204
    %s207 = sadd.s32 %s206, 1
    %p210 = scmp.eq.s32.totalorder %s15, 1
    %p211 = scmp.ne.s32.totalorder %s206, %s208
    %p212 = scmp.eq.s32.totalorder %s15, 0
    %p213 = por %p211, %p212
    %p214 = scmp.ne.s32.totalorder %s206, %s208
    %p215 = scmp.eq.s32.totalorder %s20, 1
    %p216 = por %p214, %p215
    %p217 = scmp.ne.s32.totalorder %s208, %s209
    %p218 = scmp.eq.s32.totalorder %s20, 0
    %p219 = por %p217, %p218
    %p220 = scmp.ne.s32.totalorder %s208, %s209
    %p221 = scmp.eq.s32.totalorder %s21, 1
    %p222 = por %p220, %p221
    %p224 = scmp.ne.s32.totalorder %s209, %s223
    %p225 = scmp.eq.s32.totalorder %s21, 0
    %p226 = por %p224, %p225
    %s227 = ssub.s32 %s15, %s22
    %p228 = scmp.eq.s32.totalorder %s227, 0
    %s230 = sadd.s32 %s229, 1
    %s231 = scalar_select %p228, %s229, %s230
    %p234 = pneg %p228
    %p235 = scmp.eq.s32.totalorder %s15, 1
    %p236 = por %p234, %p235
    %p237 = scmp.ne.s32.totalorder %s229, %s232
    %p238 = scmp.eq.s32.totalorder %s15, 0
    %p239 = por %p237, %p238
    %p240 = scmp.ne.s32.totalorder %s229, %s232
    %p241 = scmp.eq.s32.totalorder %s20, 1
    %p242 = por %p240, %p241
    %p243 = scmp.ne.s32.totalorder %s232, %s233
    %p244 = scmp.eq.s32.totalorder %s20, 0
    %p245 = por %p243, %p244
    %p246 = scmp.ne.s32.totalorder %s232, %s233
    %p247 = scmp.eq.s32.totalorder %s21, 1
    %p248 = por %p246, %p247
    %p250 = scmp.ne.s32.totalorder %s233, %s249
    %p251 = scmp.eq.s32.totalorder %s21, 0
    %p252 = por %p250, %p251
    %p253 = scmp.le.s32.totalorder 1, %s15
    %p254 = scmp.lt.s32.totalorder %s15, 3
    %p255 = pnand %p253, %p254
    %p256 = pneg %p255
    // Predicated region
    $region9: #{gcn_block_forward.3} parent=5 // pred_check
      _
    $region10: #{gcn_block_forward.3} parent=5 // pred_check_branch
      %258 = sbr.rel (%p255) target = $region12
    $region11: #{gcn_block_forward.3} parent=5 // pred_region
      %s259 = ssub.s32 %s15, 1
      // Predicated region
      $region13: #{gcn_block_forward.3} parent=11 // pred_check
        %p260 = pneg %p114
      $region14: #{gcn_block_forward.3} parent=11 // pred_check_branch
        %262 = sbr.rel (%p260) target = $region16
      $region15: #{gcn_block_forward.3} parent=11 // pred_region
        _
      $region16: #{gcn_block_forward.3} parent=11 // pred_fallthru
        _
      // Predicated region
      $region17: #{gcn_block_forward.3} parent=11 // pred_check
        %p263 = pneg %p135
      $region18: #{gcn_block_forward.3} parent=11 // pred_check_branch
        %265 = sbr.rel (%p263) target = $region20
      $region19: #{gcn_block_forward.3} parent=11 // pred_region
        _
      $region20: #{gcn_block_forward.3} parent=11 // pred_fallthru
        _
      // Predicated region
      $region21: #{gcn_block_forward.3} parent=11 // pred_check
        %p266 = pneg %p156
      $region22: #{gcn_block_forward.3} parent=11 // pred_check_branch
        %268 = sbr.rel (%p266) target = $region24
      $region23: #{gcn_block_forward.3} parent=11 // pred_region
        _
      $region24: #{gcn_block_forward.3} parent=11 // pred_fallthru
        _
      // Predicated region
      $region25: #{gcn_block_forward.3} parent=11 // pred_check
        %p269 = pneg %p177
      $region26: #{gcn_block_forward.3} parent=11 // pred_check_branch
        %271 = sbr.rel (%p269) target = $region28
      $region27: #{gcn_block_forward.3} parent=11 // pred_region
        _
      $region28: #{gcn_block_forward.3} parent=11 // pred_fallthru
        _
      // Predicated region
      $region29: #{gcn_block_forward.3} parent=11 // pred_check
        %p272 = pneg %p198
      $region30: #{gcn_block_forward.3} parent=11 // pred_check_branch
        %274 = sbr.rel (%p272) target = $region32
      $region31: #{gcn_block_forward.3} parent=11 // pred_region
        _
      $region32: #{gcn_block_forward.3} parent=11 // pred_fallthru
        _
      // Predicated region
      $region33: #{gcn_block_forward.3} parent=11 // pred_check
        %p275 = pneg %p219
      $region34: #{gcn_block_forward.3} parent=11 // pred_check_branch
        %277 = sbr.rel (%p275) target = $region36
      $region35: #{gcn_block_forward.3} parent=11 // pred_region
        _
      $region36: #{gcn_block_forward.3} parent=11 // pred_fallthru
        _
    $region12: #{gcn_block_forward.3} parent=5 // pred_fallthru
      _
    %p278 = scmp.lt.s32.totalorder %s15, 2
    // Predicated region
    $region37: #{gcn_block_forward.3} parent=5 // pred_check
      %p279 = pneg %p278
    $region38: #{gcn_block_forward.3} parent=5 // pred_check_branch
      %281 = sbr.rel (%p279) target = $region40
    $region39: #{gcn_block_forward.3} parent=5 // pred_region
      // Predicated region
      $region41: #{gcn_block_forward.3} parent=39 // pred_check
        %p282 = pneg %p35
      $region42: #{gcn_block_forward.3} parent=39 // pred_check_branch
        %284 = sbr.rel (%p282) target = $region44
      $region43: #{gcn_block_forward.3} parent=39 // pred_region
        %s285 = smul.u32 16, %s15
        %p286 = scmp.lt.s32.totalorder %s285, 31
        %s287 = scalar_select %p286, %s285, 31
        %s288 = smul.addr %s287, 8
        %s289 = scalar_lea.vmem %s0, %s288
        %s290 = smul.u32 16, %s15
      $region44: #{gcn_block_forward.3} parent=39 // pred_fallthru
        _
      // Predicated region
      $region45: #{gcn_block_forward.3} parent=39 // pred_check
        %p291 = pneg %p61
      $region46: #{gcn_block_forward.3} parent=39 // pred_check_branch
        %293 = sbr.rel (%p291) target = $region48
      $region47: #{gcn_block_forward.3} parent=39 // pred_region
        %s294 = smul.u32 16, %s15
        %p295 = scmp.lt.s32.totalorder %s294, 31
        %s296 = scalar_select %p295, %s294, 31
        %s297 = smul.addr %s296, 8
        %s298 = scalar_lea.vmem %s1, %s297
        %s299 = smul.u32 16, %s15
      $region48: #{gcn_block_forward.3} parent=39 // pred_fallthru
        _
      // Predicated region
      $region49: #{gcn_block_forward.3} parent=39 // pred_check
        %p300 = pneg %p87
      $region50: #{gcn_block_forward.3} parent=39 // pred_check_branch
        %302 = sbr.rel (%p300) target = $region52
      $region51: #{gcn_block_forward.3} parent=39 // pred_region
        %s303 = smul.u32 16, %s15
        %p304 = scmp.lt.s32.totalorder %s303, 31
        %s305 = scalar_select %p304, %s303, 31
        %s306 = smul.addr %s305, 4
        %s307 = scalar_lea.vmem %s2, %s306
        %s308 = smul.u32 16, %s15
      $region52: #{gcn_block_forward.3} parent=39 // pred_fallthru
        _
    $region40: #{gcn_block_forward.3} parent=5 // pred_fallthru
      _
    %p309 = scmp.le.s32.totalorder 1, %s15
    %p310 = scmp.lt.s32.totalorder %s15, 3
    %p311 = pnand %p309, %p310
    %p312 = pneg %p311
    // Predicated region
    $region53: #{gcn_block_forward.3} parent=5 // pred_check
      _
    $region54: #{gcn_block_forward.3} parent=5 // pred_check_branch
      %314 = sbr.rel (%p311) target = $region56
    $region55: #{gcn_block_forward.3} parent=5 // pred_region
      %s315 = ssub.s32 %s15, 1
      %s316 = smul.u32 16, %s20
      %p317 = scmp.lt.s32.totalorder %s316, 31
      %s318 = scalar_select %p317, %s316, 31
      %s319 = smul.addr %s318, 8
      %s320 = scalar_lea.vmem %s0, %s319
      %p321 = pneg %p41
      %p322 = pneg %p38
      %s323 = smul.u32 16, %s20
      %p324 = scmp.lt.s32.totalorder %s323, 31
      %s325 = scalar_select %p324, %s323, 31
      %s326 = smul.addr %s325, 8
      %s327 = scalar_lea.vmem %s1, %s326
      %p328 = pneg %p67
      %p329 = pneg %p64
      %s330 = smul.u32 16, %s20
      %p331 = scmp.lt.s32.totalorder %s330, 31
      %s332 = scalar_select %p331, %s330, 31
      %s333 = smul.addr %s332, 4
      %s334 = scalar_lea.vmem %s2, %s333
      %p335 = pneg %p93
      %p336 = pneg %p90
      %p337 = pneg %p114
      %p338 = pneg %p111
      %p339 = pneg %p135
      %p340 = pneg %p132
      %p341 = pneg %p156
      %p342 = pneg %p153
      %p343 = pneg %p177
      %p344 = pneg %p174
      %p345 = pneg %p198
      %p346 = pneg %p195
      %p347 = pneg %p219
      %p348 = pneg %p216
      %p349 = pneg %p245
      %p350 = pneg %p242
      %s351 = smul.u32 16, %s20
      %p352 = scmp.lt.s32.totalorder %s351, 31
      %s353 = scalar_select %p352, %s351, 31
      %s354 = smul.addr %s353, 8
      %s355 = scalar_lea.vmem %s9, %s354
      %s356 = smul.u32 16, %s20
      %p357 = scmp.lt.s32.totalorder %s356, 31
      %s358 = scalar_select %p357, %s356, 31
      %s359 = smul.addr %s358, 8
      %s360 = scalar_lea.vmem %s0, %s359
      %s361 = smul.u32 16, %s20
      %s362 = smul.u32 16, %s20
      %p363 = scmp.lt.s32.totalorder %s362, 31
      %s364 = scalar_select %p363, %s362, 31
      %s365 = smul.addr %s364, 8
      %s366 = scalar_lea.vmem %s1, %s365
      %s367 = smul.u32 16, %s20
      %s368 = smul.u32 16, %s20
      %p369 = scmp.lt.s32.totalorder %s368, 31
      %s370 = scalar_select %p369, %s368, 31
      %s371 = smul.addr %s370, 4
      %s372 = scalar_lea.vmem %s2, %s371
      %s373 = smul.u32 16, %s20
      %s374 = smul.u32 16, %s20
      %p375 = scmp.lt.s32.totalorder %s374, 31
      %s376 = scalar_select %p375, %s374, 31
      %s377 = smul.addr %s376, 8
      %s378 = scalar_lea.vmem %s9, %s377
      %s379 = smul.u32 16, %s20
      %v381 = vld [vmem:[%s360] sm:$0xff]
      %v382 = vld [vmem:[%s360 + $0x8] sm:$0xff]
      %v383 = vld [vmem:[%s360 + $0x10] sm:$0xff]
      %v384 = vld [vmem:[%s360 + $0x18] sm:$0xff]
      %v385 = vld [vmem:[%s360 + $0x20] sm:$0xff]
      %v386 = vld [vmem:[%s360 + $0x28] sm:$0xff]
      %v387 = vld [vmem:[%s360 + $0x30] sm:$0xff]
      %v388 = vld [vmem:[%s360 + $0x38] sm:$0xff]
      %v389 = vld [vmem:[%s360 + $0x40] sm:$0xff]
      %v390 = vld [vmem:[%s360 + $0x48] sm:$0xff]
      %v391 = vld [vmem:[%s360 + $0x50] sm:$0xff]
      %v392 = vld [vmem:[%s360 + $0x58] sm:$0xff]
      %v393 = vld [vmem:[%s360 + $0x60] sm:$0xff]
      %v394 = vld [vmem:[%s360 + $0x68] sm:$0xff]
      %v395 = vld [vmem:[%s360 + $0x70] sm:$0xff]
      %v396 = vld [vmem:[%s360 + $0x78] sm:$0xff]
      %v397 = vlaneseq
      %v398 = vand.u32 %v397, 127
      %399 = vset.pattern.permute.xlu0 0
      %400 = vperm.xlu0 %399, %v381
      %v401 = vpop.permute.xlu0 %400
      %402 = vset.pattern.permute.xlu0 0
      %403 = vperm.xlu0 %402, %v382
      %v404 = vpop.permute.xlu0 %403
      %405 = vset.pattern.permute.xlu0 0
      %406 = vperm.xlu0 %405, %v383
      %v407 = vpop.permute.xlu0 %406
      %408 = vset.pattern.permute.xlu0 0
      %409 = vperm.xlu0 %408, %v384
      %v410 = vpop.permute.xlu0 %409
      %411 = vset.pattern.permute.xlu0 0
      %412 = vperm.xlu0 %411, %v385
      %v413 = vpop.permute.xlu0 %412
      %414 = vset.pattern.permute.xlu0 0
      %415 = vperm.xlu0 %414, %v386
      %v416 = vpop.permute.xlu0 %415
      %417 = vset.pattern.permute.xlu0 0
      %418 = vperm.xlu0 %417, %v387
      %v419 = vpop.permute.xlu0 %418
      %420 = vset.pattern.permute.xlu0 0
      %421 = vperm.xlu0 %420, %v388
      %v422 = vpop.permute.xlu0 %421
      %423 = vset.pattern.permute.xlu0 0
      %424 = vperm.xlu0 %423, %v389
      %v425 = vpop.permute.xlu0 %424
      %426 = vset.pattern.permute.xlu0 0
      %427 = vperm.xlu0 %426, %v390
      %v428 = vpop.permute.xlu0 %427
      %429 = vset.pattern.permute.xlu0 0
      %430 = vperm.xlu0 %429, %v391
      %v431 = vpop.permute.xlu0 %430
      %432 = vset.pattern.permute.xlu0 0
      %433 = vperm.xlu0 %432, %v392
      %v434 = vpop.permute.xlu0 %433
      %435 = vset.pattern.permute.xlu0 0
      %436 = vperm.xlu0 %435, %v393
      %v437 = vpop.permute.xlu0 %436
      %438 = vset.pattern.permute.xlu0 0
      %439 = vperm.xlu0 %438, %v394
      %v440 = vpop.permute.xlu0 %439
      %441 = vset.pattern.permute.xlu0 0
      %442 = vperm.xlu0 %441, %v395
      %v443 = vpop.permute.xlu0 %442
      %444 = vset.pattern.permute.xlu0 0
      %445 = vperm.xlu0 %444, %v396
      %v446 = vpop.permute.xlu0 %445
      %vm447 = vcmp.eq.s32.totalorder %v401, %v398
      %vm448 = vcmp.eq.s32.totalorder %v404, %v398
      %vm449 = vcmp.eq.s32.totalorder %v407, %v398
      %vm450 = vcmp.eq.s32.totalorder %v410, %v398
      %vm451 = vcmp.eq.s32.totalorder %v413, %v398
      %vm452 = vcmp.eq.s32.totalorder %v416, %v398
      %vm453 = vcmp.eq.s32.totalorder %v419, %v398
      %vm454 = vcmp.eq.s32.totalorder %v422, %v398
      %vm455 = vcmp.eq.s32.totalorder %v425, %v398
      %vm456 = vcmp.eq.s32.totalorder %v428, %v398
      %vm457 = vcmp.eq.s32.totalorder %v431, %v398
      %vm458 = vcmp.eq.s32.totalorder %v434, %v398
      %vm459 = vcmp.eq.s32.totalorder %v437, %v398
      %vm460 = vcmp.eq.s32.totalorder %v440, %v398
      %vm461 = vcmp.eq.s32.totalorder %v443, %v398
      %vm462 = vcmp.eq.s32.totalorder %v446, %v398
      %v463 = vsel %vm447, 1, 0
      %v464 = vsel %vm448, 1, 0
      %v465 = vsel %vm449, 1, 0
      %v466 = vsel %vm450, 1, 0
      %v467 = vsel %vm451, 1, 0
      %v468 = vsel %vm452, 1, 0
      %v469 = vsel %vm453, 1, 0
      %v470 = vsel %vm454, 1, 0
      %v471 = vsel %vm455, 1, 0
      %v472 = vsel %vm456, 1, 0
      %v473 = vsel %vm457, 1, 0
      %v474 = vsel %vm458, 1, 0
      %v475 = vsel %vm459, 1, 0
      %v476 = vsel %vm460, 1, 0
      %v477 = vsel %vm461, 1, 0
      %v478 = vsel %vm462, 1, 0
      %v479 = vcvt.s32.f32 %v463
      %v480 = vcvt.s32.f32 %v464
      %v481 = vcvt.s32.f32 %v465
      %v482 = vcvt.s32.f32 %v466
      %v483 = vcvt.s32.f32 %v467
      %v484 = vcvt.s32.f32 %v468
      %v485 = vcvt.s32.f32 %v469
      %v486 = vcvt.s32.f32 %v470
      %v487 = vcvt.s32.f32 %v471
      %v488 = vcvt.s32.f32 %v472
      %v489 = vcvt.s32.f32 %v473
      %v490 = vcvt.s32.f32 %v474
      %v491 = vcvt.s32.f32 %v475
      %v492 = vcvt.s32.f32 %v476
      %v493 = vcvt.s32.f32 %v477
      %v494 = vcvt.s32.f32 %v478
      %v495 = vpack.c.bf16 %v480, %v479
      %v496 = vpack.c.bf16 %v482, %v481
      %v497 = vpack.c.bf16 %v484, %v483
      %v498 = vpack.c.bf16 %v486, %v485
      %v499 = vpack.c.bf16 %v488, %v487
      %v500 = vpack.c.bf16 %v490, %v489
      %v501 = vpack.c.bf16 %v492, %v491
      %v502 = vpack.c.bf16 %v494, %v493
      %v503 = vld [vmem:[%s3] sm:$0xf]
      %vm504 = vcmask 64512
      %v506 = vsel %vm504, %v495, 0
      %v509 = vsel %vm504, %v496, 0
      %v512 = vsel %vm504, %v497, 0
      %v515 = vsel %vm504, %v498, 0
      %v518 = vsel %vm504, %v499, 0
      %v521 = vsel %vm504, %v500, 0
      %v524 = vsel %vm504, %v501, 0
      %v527 = vsel %vm504, %v502, 0
      %vm529 = vcmask 1043456
      %v531 = vsel %vm529, %v503, 0
      %533 = vmatprep.subr.bf16.mxu0 0
      %534 = vmatpush1.bf16.msra.mxu0 0
      %535 = vmatprep.subr.bf16.mxu0 0
      %536 = vmatpush1.bf16.msra.mxu0 0
      %537 = vmatprep.subr.bf16.mxu0 0
      %538 = vmatpush1.bf16.msra.mxu0 0
      %539 = vmatprep.subr.bf16.mxu0 0
      %540 = vmatpush1.bf16.msra.mxu0 0
      %541 = vmatprep.subr.bf16.mxu0 0
      %542 = vmatpush1.bf16.msra.mxu0 0
      %543 = vmatprep.subr.bf16.mxu0 0
      %544 = vmatpush1.bf16.msra.mxu0 0
      %545 = vmatprep.subr.bf16.mxu0 0
      %546 = vmatpush1.bf16.msra.mxu0 0
      %547 = vmatprep.subr.bf16.mxu0 0
      %548 = vmatpush1.bf16.msra.mxu0 %v531
      %549 = vmatprep.subr.bf16.mxu0 0
      %550 = vmatpush2.bf16.msra.mxu0 0
      %551 = vmatprep.subr.bf16.mxu0 0
      %552 = vmatpush2.bf16.msra.mxu0 0
      %553 = vmatprep.subr.bf16.mxu0 0
      %554 = vmatpush2.bf16.msra.mxu0 0
      %555 = vmatprep.subr.bf16.mxu0 0
      %556 = vmatpush2.bf16.msra.mxu0 0
      %557 = vmatprep.subr.bf16.mxu0 0
      %558 = vmatpush2.bf16.msra.mxu0 0
      %559 = vmatprep.subr.bf16.mxu0 0
      %560 = vmatpush2.bf16.msra.mxu0 0
      %561 = vmatprep.subr.bf16.mxu0 0
      %562 = vmatpush2.bf16.msra.mxu0 0
      %563 = vmatprep.subr.bf16.mxu0 0
      %564 = vmatpush2.bf16.msra.mxu0 0
      %565 = vmatprep.mubr.bf16.mxu0 0
      %566 = vmatmul.mubr.bf16.gmra.mxu0 %v506
      %v567 = vpop.f32.mrf.mxu0
      %v568 = vadd.f32 0.0, %v567
      %v569 = vpop.f32.mrf.mxu0
      %v570 = vpop.f32.mrf.mxu0
      %v571 = vadd.f32 0.0, %v570
      %v572 = vpop.f32.mrf.mxu0
      %573 = vmatprep.mubr.bf16.mxu0 0
      %574 = vmatmul.mubr.bf16.gmra.mxu0 %v509
      %v575 = vpop.f32.mrf.mxu0
      %v576 = vadd.f32 0.0, %v575
      %v577 = vpop.f32.mrf.mxu0
      %v578 = vpop.f32.mrf.mxu0
      %v579 = vadd.f32 0.0, %v578
      %v580 = vpop.f32.mrf.mxu0
      %581 = vmatprep.mubr.bf16.mxu0 0
      %582 = vmatmul.mubr.bf16.gmra.mxu0 %v512
      %v583 = vpop.f32.mrf.mxu0
      %v584 = vadd.f32 0.0, %v583
      %v585 = vpop.f32.mrf.mxu0
      %v586 = vpop.f32.mrf.mxu0
      %v587 = vadd.f32 0.0, %v586
      %v588 = vpop.f32.mrf.mxu0
      %589 = vmatprep.mubr.bf16.mxu0 0
      %590 = vmatmul.mubr.bf16.gmra.mxu0 %v515
      %v591 = vpop.f32.mrf.mxu0
      %v592 = vadd.f32 0.0, %v591
      %v593 = vpop.f32.mrf.mxu0
      %v594 = vpop.f32.mrf.mxu0
      %v595 = vadd.f32 0.0, %v594
      %v596 = vpop.f32.mrf.mxu0
      %597 = vmatprep.mubr.bf16.mxu0 0
      %598 = vmatmul.mubr.bf16.gmra.mxu0 %v518
      %v599 = vpop.f32.mrf.mxu0
      %v600 = vadd.f32 0.0, %v599
      %v601 = vpop.f32.mrf.mxu0
      %v602 = vpop.f32.mrf.mxu0
      %v603 = vadd.f32 0.0, %v602
      %v604 = vpop.f32.mrf.mxu0
      %605 = vmatprep.mubr.bf16.mxu0 0
      %606 = vmatmul.mubr.bf16.gmra.mxu0 %v521
      %v607 = vpop.f32.mrf.mxu0
      %v608 = vadd.f32 0.0, %v607
      %v609 = vpop.f32.mrf.mxu0
      %v610 = vpop.f32.mrf.mxu0
      %v611 = vadd.f32 0.0, %v610
      %v612 = vpop.f32.mrf.mxu0
      %613 = vmatprep.mubr.bf16.mxu0 0
      %614 = vmatmul.mubr.bf16.gmra.mxu0 %v524
      %v615 = vpop.f32.mrf.mxu0
      %v616 = vadd.f32 0.0, %v615
      %v617 = vpop.f32.mrf.mxu0
      %v618 = vpop.f32.mrf.mxu0
      %v619 = vadd.f32 0.0, %v618
      %v620 = vpop.f32.mrf.mxu0
      %621 = vmatprep.mubr.bf16.mxu0 0
      %622 = vmatmul.mubr.bf16.gmra.mxu0 %v527
      %v623 = vpop.f32.mrf.mxu0
      %v624 = vadd.f32 0.0, %v623
      %v625 = vpop.f32.mrf.mxu0
      %v626 = vpop.f32.mrf.mxu0
      %v627 = vadd.f32 0.0, %v626
      %v628 = vpop.f32.mrf.mxu0
      %629 = vdwg.mxu0
      %v630 = vld [vmem:[%s366] sm:$0xff]
      %v631 = vld [vmem:[%s366 + $0x8] sm:$0xff]
      %v632 = vld [vmem:[%s366 + $0x10] sm:$0xff]
      %v633 = vld [vmem:[%s366 + $0x18] sm:$0xff]
      %v634 = vld [vmem:[%s366 + $0x20] sm:$0xff]
      %v635 = vld [vmem:[%s366 + $0x28] sm:$0xff]
      %v636 = vld [vmem:[%s366 + $0x30] sm:$0xff]
      %v637 = vld [vmem:[%s366 + $0x38] sm:$0xff]
      %v638 = vld [vmem:[%s366 + $0x40] sm:$0xff]
      %v639 = vld [vmem:[%s366 + $0x48] sm:$0xff]
      %v640 = vld [vmem:[%s366 + $0x50] sm:$0xff]
      %v641 = vld [vmem:[%s366 + $0x58] sm:$0xff]
      %v642 = vld [vmem:[%s366 + $0x60] sm:$0xff]
      %v643 = vld [vmem:[%s366 + $0x68] sm:$0xff]
      %v644 = vld [vmem:[%s366 + $0x70] sm:$0xff]
      %v645 = vld [vmem:[%s366 + $0x78] sm:$0xff]
      %646 = vset.pattern.permute.xlu0 0
      %647 = vperm.xlu0 %646, %v630
      %v648 = vpop.permute.xlu0 %647
      %649 = vset.pattern.permute.xlu0 0
      %650 = vperm.xlu0 %649, %v631
      %v651 = vpop.permute.xlu0 %650
      %652 = vset.pattern.permute.xlu0 0
      %653 = vperm.xlu0 %652, %v632
      %v654 = vpop.permute.xlu0 %653
      %655 = vset.pattern.permute.xlu0 0
      %656 = vperm.xlu0 %655, %v633
      %v657 = vpop.permute.xlu0 %656
      %658 = vset.pattern.permute.xlu0 0
      %659 = vperm.xlu0 %658, %v634
      %v660 = vpop.permute.xlu0 %659
      %661 = vset.pattern.permute.xlu0 0
      %662 = vperm.xlu0 %661, %v635
      %v663 = vpop.permute.xlu0 %662
      %664 = vset.pattern.permute.xlu0 0
      %665 = vperm.xlu0 %664, %v636
      %v666 = vpop.permute.xlu0 %665
      %667 = vset.pattern.permute.xlu0 0
      %668 = vperm.xlu0 %667, %v637
      %v669 = vpop.permute.xlu0 %668
      %670 = vset.pattern.permute.xlu0 0
      %671 = vperm.xlu0 %670, %v638
      %v672 = vpop.permute.xlu0 %671
      %673 = vset.pattern.permute.xlu0 0
      %674 = vperm.xlu0 %673, %v639
      %v675 = vpop.permute.xlu0 %674
      %676 = vset.pattern.permute.xlu0 0
      %677 = vperm.xlu0 %676, %v640
      %v678 = vpop.permute.xlu0 %677
      %679 = vset.pattern.permute.xlu0 0
      %680 = vperm.xlu0 %679, %v641
      %v681 = vpop.permute.xlu0 %680
      %682 = vset.pattern.permute.xlu0 0
      %683 = vperm.xlu0 %682, %v642
      %v684 = vpop.permute.xlu0 %683
      %685 = vset.pattern.permute.xlu0 0
      %686 = vperm.xlu0 %685, %v643
      %v687 = vpop.permute.xlu0 %686
      %688 = vset.pattern.permute.xlu0 0
      %689 = vperm.xlu0 %688, %v644
      %v690 = vpop.permute.xlu0 %689
      %691 = vset.pattern.permute.xlu0 0
      %692 = vperm.xlu0 %691, %v645
      %v693 = vpop.permute.xlu0 %692
      %vm694 = vcmp.eq.s32.totalorder %v648, %v398
      %vm695 = vcmp.eq.s32.totalorder %v651, %v398
      %vm696 = vcmp.eq.s32.totalorder %v654, %v398
      %vm697 = vcmp.eq.s32.totalorder %v657, %v398
      %vm698 = vcmp.eq.s32.totalorder %v660, %v398
      %vm699 = vcmp.eq.s32.totalorder %v663, %v398
      %vm700 = vcmp.eq.s32.totalorder %v666, %v398
      %vm701 = vcmp.eq.s32.totalorder %v669, %v398
      %vm702 = vcmp.eq.s32.totalorder %v672, %v398
      %vm703 = vcmp.eq.s32.totalorder %v675, %v398
      %vm704 = vcmp.eq.s32.totalorder %v678, %v398
      %vm705 = vcmp.eq.s32.totalorder %v681, %v398
      %vm706 = vcmp.eq.s32.totalorder %v684, %v398
      %vm707 = vcmp.eq.s32.totalorder %v687, %v398
      %vm708 = vcmp.eq.s32.totalorder %v690, %v398
      %vm709 = vcmp.eq.s32.totalorder %v693, %v398
      %v710 = vsel %vm694, 1, 0
      %v711 = vsel %vm695, 1, 0
      %v712 = vsel %vm696, 1, 0
      %v713 = vsel %vm697, 1, 0
      %v714 = vsel %vm698, 1, 0
      %v715 = vsel %vm699, 1, 0
      %v716 = vsel %vm700, 1, 0
      %v717 = vsel %vm701, 1, 0
      %v718 = vsel %vm702, 1, 0
      %v719 = vsel %vm703, 1, 0
      %v720 = vsel %vm704, 1, 0
      %v721 = vsel %vm705, 1, 0
      %v722 = vsel %vm706, 1, 0
      %v723 = vsel %vm707, 1, 0
      %v724 = vsel %vm708, 1, 0
      %v725 = vsel %vm709, 1, 0
      %v726 = vcvt.s32.f32 %v710
      %v727 = vcvt.s32.f32 %v711
      %v728 = vcvt.s32.f32 %v712
      %v729 = vcvt.s32.f32 %v713
      %v730 = vcvt.s32.f32 %v714
      %v731 = vcvt.s32.f32 %v715
      %v732 = vcvt.s32.f32 %v716
      %v733 = vcvt.s32.f32 %v717
      %v734 = vcvt.s32.f32 %v718
      %v735 = vcvt.s32.f32 %v719
      %v736 = vcvt.s32.f32 %v720
      %v737 = vcvt.s32.f32 %v721
      %v738 = vcvt.s32.f32 %v722
      %v739 = vcvt.s32.f32 %v723
      %v740 = vcvt.s32.f32 %v724
      %v741 = vcvt.s32.f32 %v725
      %v742 = vpack.c.bf16 %v727, %v726
      %v743 = vpack.c.bf16 %v729, %v728
      %v744 = vpack.c.bf16 %v731, %v730
      %v745 = vpack.c.bf16 %v733, %v732
      %v746 = vpack.c.bf16 %v735, %v734
      %v747 = vpack.c.bf16 %v737, %v736
      %v748 = vpack.c.bf16 %v739, %v738
      %v749 = vpack.c.bf16 %v741, %v740
      %v750 = vld [vmem:[%s4] sm:$0xf]
      %v751 = vld [vmem:[%s4 + $0x4] sm:$0xf]
      %v754 = vunpack.c.l.b16 %v750
      %v755 = vunpack.c.l.b16 %v751
      %v756 = vpack.c.b16 %v755, %v754
      %vm758 = vcmask 130048
      %v760 = vsel %vm758, %v742, 0
      %v763 = vsel %vm758, %v743, 0
      %v766 = vsel %vm758, %v744, 0
      %v769 = vsel %vm758, %v745, 0
      %v772 = vsel %vm758, %v746, 0
      %v775 = vsel %vm758, %v747, 0
      %v778 = vsel %vm758, %v748, 0
      %v781 = vsel %vm758, %v749, 0
      %783 = vmatprep.subr.bf16.mxu0 0
      %784 = vmatpush1.bf16.msra.mxu0 0
      %785 = vmatprep.subr.bf16.mxu0 0
      %786 = vmatpush1.bf16.msra.mxu0 0
      %787 = vmatprep.subr.bf16.mxu0 0
      %788 = vmatpush1.bf16.msra.mxu0 0
      %789 = vmatprep.subr.bf16.mxu0 0
      %790 = vmatpush1.bf16.msra.mxu0 0
      %791 = vmatprep.subr.bf16.mxu0 0
      %792 = vmatpush1.bf16.msra.mxu0 0
      %793 = vmatprep.subr.bf16.mxu0 0
      %794 = vmatpush1.bf16.msra.mxu0 0
      %795 = vmatprep.subr.bf16.mxu0 0
      %796 = vmatpush1.bf16.msra.mxu0 0
      %797 = vmatprep.subr.bf16.mxu0 0
      %798 = vmatpush1.bf16.msra.mxu0 %v756
      %799 = vmatprep.subr.bf16.mxu0 0
      %800 = vmatpush2.bf16.msra.mxu0 0
      %801 = vmatprep.subr.bf16.mxu0 0
      %802 = vmatpush2.bf16.msra.mxu0 0
      %803 = vmatprep.subr.bf16.mxu0 0
      %804 = vmatpush2.bf16.msra.mxu0 0
      %805 = vmatprep.subr.bf16.mxu0 0
      %806 = vmatpush2.bf16.msra.mxu0 0
      %807 = vmatprep.subr.bf16.mxu0 0
      %808 = vmatpush2.bf16.msra.mxu0 0
      %809 = vmatprep.subr.bf16.mxu0 0
      %810 = vmatpush2.bf16.msra.mxu0 0
      %811 = vmatprep.subr.bf16.mxu0 0
      %812 = vmatpush2.bf16.msra.mxu0 0
      %813 = vmatprep.subr.bf16.mxu0 0
      %814 = vmatpush2.bf16.msra.mxu0 0
      %815 = vmatprep.mubr.bf16.mxu0 0
      %816 = vmatmul.mubr.bf16.gmra.mxu0 %v760
      %v817 = vpop.f32.mrf.mxu0
      %v818 = vadd.f32 0.0, %v817
      %v819 = vpop.f32.mrf.mxu0
      %v820 = vpop.f32.mrf.mxu0
      %v821 = vadd.f32 0.0, %v820
      %v822 = vpop.f32.mrf.mxu0
      %823 = vmatprep.mubr.bf16.mxu0 0
      %824 = vmatmul.mubr.bf16.gmra.mxu0 %v763
      %v825 = vpop.f32.mrf.mxu0
      %v826 = vadd.f32 0.0, %v825
      %v827 = vpop.f32.mrf.mxu0
      %v828 = vpop.f32.mrf.mxu0
      %v829 = vadd.f32 0.0, %v828
      %v830 = vpop.f32.mrf.mxu0
      %831 = vmatprep.mubr.bf16.mxu0 0
      %832 = vmatmul.mubr.bf16.gmra.mxu0 %v766
      %v833 = vpop.f32.mrf.mxu0
      %v834 = vadd.f32 0.0, %v833
      %v835 = vpop.f32.mrf.mxu0
      %v836 = vpop.f32.mrf.mxu0
      %v837 = vadd.f32 0.0, %v836
      %v838 = vpop.f32.mrf.mxu0
      %839 = vmatprep.mubr.bf16.mxu0 0
      %840 = vmatmul.mubr.bf16.gmra.mxu0 %v769
      %v841 = vpop.f32.mrf.mxu0
      %v842 = vadd.f32 0.0, %v841
      %v843 = vpop.f32.mrf.mxu0
      %v844 = vpop.f32.mrf.mxu0
      %v845 = vadd.f32 0.0, %v844
      %v846 = vpop.f32.mrf.mxu0
      %847 = vmatprep.mubr.bf16.mxu0 0
      %848 = vmatmul.mubr.bf16.gmra.mxu0 %v772
      %v849 = vpop.f32.mrf.mxu0
      %v850 = vadd.f32 0.0, %v849
      %v851 = vpop.f32.mrf.mxu0
      %v852 = vpop.f32.mrf.mxu0
      %v853 = vadd.f32 0.0, %v852
      %v854 = vpop.f32.mrf.mxu0
      %855 = vmatprep.mubr.bf16.mxu0 0
      %856 = vmatmul.mubr.bf16.gmra.mxu0 %v775
      %v857 = vpop.f32.mrf.mxu0
      %v858 = vadd.f32 0.0, %v857
      %v859 = vpop.f32.mrf.mxu0
      %v860 = vpop.f32.mrf.mxu0
      %v861 = vadd.f32 0.0, %v860
      %v862 = vpop.f32.mrf.mxu0
      %863 = vmatprep.mubr.bf16.mxu0 0
      %864 = vmatmul.mubr.bf16.gmra.mxu0 %v778
      %v865 = vpop.f32.mrf.mxu0
      %v866 = vadd.f32 0.0, %v865
      %v867 = vpop.f32.mrf.mxu0
      %v868 = vpop.f32.mrf.mxu0
      %v869 = vadd.f32 0.0, %v868
      %v870 = vpop.f32.mrf.mxu0
      %871 = vmatprep.mubr.bf16.mxu0 0
      %872 = vmatmul.mubr.bf16.gmra.mxu0 %v781
      %v873 = vpop.f32.mrf.mxu0
      %v874 = vadd.f32 0.0, %v873
      %v875 = vpop.f32.mrf.mxu0
      %v876 = vpop.f32.mrf.mxu0
      %v877 = vadd.f32 0.0, %v876
      %v878 = vpop.f32.mrf.mxu0
      %879 = vdwg.mxu0
      %v880 = vld [vmem:[%s372] sm:$0xf]
      %v881 = vld [vmem:[%s372 + $0x4] sm:$0xf]
      %v882 = vld [vmem:[%s372 + $0x8] sm:$0xf]
      %v883 = vld [vmem:[%s372 + $0xc] sm:$0xf]
      %v884 = vld [vmem:[%s372 + $0x10] sm:$0xf]
      %v885 = vld [vmem:[%s372 + $0x14] sm:$0xf]
      %v886 = vld [vmem:[%s372 + $0x18] sm:$0xf]
      %v887 = vld [vmem:[%s372 + $0x1c] sm:$0xf]
      %v888 = vld [vmem:[%s372 + $0x20] sm:$0xf]
      %v889 = vld [vmem:[%s372 + $0x24] sm:$0xf]
      %v890 = vld [vmem:[%s372 + $0x28] sm:$0xf]
      %v891 = vld [vmem:[%s372 + $0x2c] sm:$0xf]
      %v892 = vld [vmem:[%s372 + $0x30] sm:$0xf]
      %v893 = vld [vmem:[%s372 + $0x34] sm:$0xf]
      %v894 = vld [vmem:[%s372 + $0x38] sm:$0xf]
      %v895 = vld [vmem:[%s372 + $0x3c] sm:$0xf]
      %v896 = vld [vmem:[%s5] sm:$0xf]
      %v897 = vld [vmem:[%s5 + $0x4] sm:$0xf]
      %v898 = vld [vmem:[%s5 + $0x8] sm:$0xf]
      %v899 = vld [vmem:[%s5 + $0xc] sm:$0xf]
      %v900 = vld [vmem:[%s5 + $0x10] sm:$0xf]
      %v901 = vld [vmem:[%s5 + $0x14] sm:$0xf]
      %v902 = vld [vmem:[%s5 + $0x18] sm:$0xf]
      %v903 = vld [vmem:[%s5 + $0x1c] sm:$0xf]
      %v904 = vld [vmem:[%s5 + $0x20] sm:$0xf]
      %v905 = vld [vmem:[%s5 + $0x24] sm:$0xf]
      %v906 = vld [vmem:[%s5 + $0x28] sm:$0xf]
      %v907 = vld [vmem:[%s5 + $0x2c] sm:$0xf]
      %v908 = vld [vmem:[%s5 + $0x30] sm:$0xf]
      %v909 = vld [vmem:[%s5 + $0x34] sm:$0xf]
      %v910 = vld [vmem:[%s5 + $0x38] sm:$0xf]
      %v911 = vld [vmem:[%s5 + $0x3c] sm:$0xf]
      %v912 = vpack.c.bf16 %v571, %v568
      %v913 = vpack.c.bf16 %v579, %v576
      %v914 = vpack.c.bf16 %v587, %v584
      %v915 = vpack.c.bf16 %v595, %v592
      %v916 = vpack.c.bf16 %v603, %v600
      %v917 = vpack.c.bf16 %v611, %v608
      %v918 = vpack.c.bf16 %v619, %v616
      %v919 = vpack.c.bf16 %v627, %v624
      %v920 = vld [vmem:[%s6] sm:$0xf]
      %v921 = vld [vmem:[%s6 + $0x4] sm:$0xf]
      %v922 = vld [vmem:[%s6 + $0x8] sm:$0xf]
      %v923 = vld [vmem:[%s6 + $0xc] sm:$0xf]
      %v924 = vld [vmem:[%s6 + $0x10] sm:$0xf]
      %v925 = vld [vmem:[%s6 + $0x14] sm:$0xf]
      %v926 = vld [vmem:[%s6 + $0x18] sm:$0xf]
      %v927 = vld [vmem:[%s6 + $0x1c] sm:$0xf]
      %v928 = vld [vmem:[%s6 + $0x20] sm:$0xf]
      %v929 = vld [vmem:[%s6 + $0x24] sm:$0xf]
      %v930 = vld [vmem:[%s6 + $0x28] sm:$0xf]
      %v931 = vld [vmem:[%s6 + $0x2c] sm:$0xf]
      %v932 = vld [vmem:[%s6 + $0x30] sm:$0xf]
      %v933 = vld [vmem:[%s6 + $0x34] sm:$0xf]
      %v934 = vld [vmem:[%s6 + $0x38] sm:$0xf]
      %v935 = vld [vmem:[%s6 + $0x3c] sm:$0xf]
      %v952 = vunpack.c.l.b16 %v920
      %v953 = vunpack.c.l.b16 %v921
      %v954 = vunpack.c.l.b16 %v922
      %v955 = vunpack.c.l.b16 %v923
      %v956 = vunpack.c.l.b16 %v924
      %v957 = vunpack.c.l.b16 %v925
      %v958 = vunpack.c.l.b16 %v926
      %v959 = vunpack.c.l.b16 %v927
      %v960 = vunpack.c.l.b16 %v928
      %v961 = vunpack.c.l.b16 %v929
      %v962 = vunpack.c.l.b16 %v930
      %v963 = vunpack.c.l.b16 %v931
      %v964 = vunpack.c.l.b16 %v932
      %v965 = vunpack.c.l.b16 %v933
      %v966 = vunpack.c.l.b16 %v934
      %v967 = vunpack.c.l.b16 %v935
      %v968 = vpack.c.b16 %v953, %v952
      %v969 = vpack.c.b16 %v955, %v954
      %v970 = vpack.c.b16 %v957, %v956
      %v971 = vpack.c.b16 %v959, %v958
      %v972 = vpack.c.b16 %v961, %v960
      %v973 = vpack.c.b16 %v963, %v962
      %v974 = vpack.c.b16 %v965, %v964
      %v975 = vpack.c.b16 %v967, %v966
      %984 = vmatprep.subr.bf16.mxu0 0
      %985 = vmatpush1.bf16.msra.mxu0 %v975
      %986 = vmatprep.subr.bf16.mxu0 0
      %987 = vmatpush1.bf16.msra.mxu0 %v974
      %988 = vmatprep.subr.bf16.mxu0 0
      %989 = vmatpush1.bf16.msra.mxu0 %v973
      %990 = vmatprep.subr.bf16.mxu0 0
      %991 = vmatpush1.bf16.msra.mxu0 %v972
      %992 = vmatprep.subr.bf16.mxu0 0
      %993 = vmatpush1.bf16.msra.mxu0 %v971
      %994 = vmatprep.subr.bf16.mxu0 0
      %995 = vmatpush1.bf16.msra.mxu0 %v970
      %996 = vmatprep.subr.bf16.mxu0 0
      %997 = vmatpush1.bf16.msra.mxu0 %v969
      %998 = vmatprep.subr.bf16.mxu0 0
      %999 = vmatpush1.bf16.msra.mxu0 %v968
      %1000 = vmatprep.subr.bf16.mxu0 0
      %1001 = vmatpush2.bf16.msra.mxu0 0
      %1002 = vmatprep.subr.bf16.mxu0 0
      %1003 = vmatpush2.bf16.msra.mxu0 0
      %1004 = vmatprep.subr.bf16.mxu0 0
      %1005 = vmatpush2.bf16.msra.mxu0 0
      %1006 = vmatprep.subr.bf16.mxu0 0
      %1007 = vmatpush2.bf16.msra.mxu0 0
      %1008 = vmatprep.subr.bf16.mxu0 0
      %1009 = vmatpush2.bf16.msra.mxu0 0
      %1010 = vmatprep.subr.bf16.mxu0 0
      %1011 = vmatpush2.bf16.msra.mxu0 0
      %1012 = vmatprep.subr.bf16.mxu0 0
      %1013 = vmatpush2.bf16.msra.mxu0 0
      %1014 = vmatprep.subr.bf16.mxu0 0
      %1015 = vmatpush2.bf16.msra.mxu0 0
      %1016 = vmatprep.mubr.bf16.mxu0 0
      %1017 = vmatmul.mubr.bf16.gmra.mxu0 %v912
      %v1018 = vpop.f32.mrf.mxu0
      %v1019 = vadd.f32 0.0, %v1018
      %v1020 = vpop.f32.mrf.mxu0
      %v1021 = vpop.f32.mrf.mxu0
      %v1022 = vadd.f32 0.0, %v1021
      %v1023 = vpop.f32.mrf.mxu0
      %1024 = vmatprep.mubr.bf16.mxu0 0
      %1025 = vmatmul.mubr.bf16.gmra.mxu0 %v913
      %v1026 = vpop.f32.mrf.mxu0
      %v1027 = vadd.f32 0.0, %v1026
      %v1028 = vpop.f32.mrf.mxu0
      %v1029 = vpop.f32.mrf.mxu0
      %v1030 = vadd.f32 0.0, %v1029
      %v1031 = vpop.f32.mrf.mxu0
      %1032 = vmatprep.mubr.bf16.mxu0 0
      %1033 = vmatmul.mubr.bf16.gmra.mxu0 %v914
      %v1034 = vpop.f32.mrf.mxu0
      %v1035 = vadd.f32 0.0, %v1034
      %v1036 = vpop.f32.mrf.mxu0
      %v1037 = vpop.f32.mrf.mxu0
      %v1038 = vadd.f32 0.0, %v1037
      %v1039 = vpop.f32.mrf.mxu0
      %1040 = vmatprep.mubr.bf16.mxu0 0
      %1041 = vmatmul.mubr.bf16.gmra.mxu0 %v915
      %v1042 = vpop.f32.mrf.mxu0
      %v1043 = vadd.f32 0.0, %v1042
      %v1044 = vpop.f32.mrf.mxu0
      %v1045 = vpop.f32.mrf.mxu0
      %v1046 = vadd.f32 0.0, %v1045
      %v1047 = vpop.f32.mrf.mxu0
      %1048 = vmatprep.mubr.bf16.mxu0 0
      %1049 = vmatmul.mubr.bf16.gmra.mxu0 %v916
      %v1050 = vpop.f32.mrf.mxu0
      %v1051 = vadd.f32 0.0, %v1050
      %v1052 = vpop.f32.mrf.mxu0
      %v1053 = vpop.f32.mrf.mxu0
      %v1054 = vadd.f32 0.0, %v1053
      %v1055 = vpop.f32.mrf.mxu0
      %1056 = vmatprep.mubr.bf16.mxu0 0
      %1057 = vmatmul.mubr.bf16.gmra.mxu0 %v917
      %v1058 = vpop.f32.mrf.mxu0
      %v1059 = vadd.f32 0.0, %v1058
      %v1060 = vpop.f32.mrf.mxu0
      %v1061 = vpop.f32.mrf.mxu0
      %v1062 = vadd.f32 0.0, %v1061
      %v1063 = vpop.f32.mrf.mxu0
      %1064 = vmatprep.mubr.bf16.mxu0 0
      %1065 = vmatmul.mubr.bf16.gmra.mxu0 %v918
      %v1066 = vpop.f32.mrf.mxu0
      %v1067 = vadd.f32 0.0, %v1066
      %v1068 = vpop.f32.mrf.mxu0
      %v1069 = vpop.f32.mrf.mxu0
      %v1070 = vadd.f32 0.0, %v1069
      %v1071 = vpop.f32.mrf.mxu0
      %1072 = vmatprep.mubr.bf16.mxu0 0
      %1073 = vmatmul.mubr.bf16.gmra.mxu0 %v919
      %v1074 = vpop.f32.mrf.mxu0
      %v1075 = vadd.f32 0.0, %v1074
      %v1076 = vpop.f32.mrf.mxu0
      %v1077 = vpop.f32.mrf.mxu0
      %v1078 = vadd.f32 0.0, %v1077
      %v1079 = vpop.f32.mrf.mxu0
      %1080 = vdwg.mxu0
      %v1097 = vunpack.c.l.b16 %v880
      %v1098 = vunpack.c.l.b16 %v881
      %v1099 = vunpack.c.l.b16 %v882
      %v1100 = vunpack.c.l.b16 %v883
      %v1101 = vunpack.c.l.b16 %v884
      %v1102 = vunpack.c.l.b16 %v885
      %v1103 = vunpack.c.l.b16 %v886
      %v1104 = vunpack.c.l.b16 %v887
      %v1105 = vunpack.c.l.b16 %v888
      %v1106 = vunpack.c.l.b16 %v889
      %v1107 = vunpack.c.l.b16 %v890
      %v1108 = vunpack.c.l.b16 %v891
      %v1109 = vunpack.c.l.b16 %v892
      %v1110 = vunpack.c.l.b16 %v893
      %v1111 = vunpack.c.l.b16 %v894
      %v1112 = vunpack.c.l.b16 %v895
      %v1113 = vpack.c.b16 %v1098, %v1097
      %v1114 = vpack.c.b16 %v1100, %v1099
      %v1115 = vpack.c.b16 %v1102, %v1101
      %v1116 = vpack.c.b16 %v1104, %v1103
      %v1117 = vpack.c.b16 %v1106, %v1105
      %v1118 = vpack.c.b16 %v1108, %v1107
      %v1119 = vpack.c.b16 %v1110, %v1109
      %v1120 = vpack.c.b16 %v1112, %v1111
      %v1145 = vunpack.c.l.b16 %v896
      %v1146 = vunpack.c.l.b16 %v897
      %v1147 = vunpack.c.l.b16 %v898
      %v1148 = vunpack.c.l.b16 %v899
      %v1149 = vunpack.c.l.b16 %v900
      %v1150 = vunpack.c.l.b16 %v901
      %v1151 = vunpack.c.l.b16 %v902
      %v1152 = vunpack.c.l.b16 %v903
      %v1153 = vunpack.c.l.b16 %v904
      %v1154 = vunpack.c.l.b16 %v905
      %v1155 = vunpack.c.l.b16 %v906
      %v1156 = vunpack.c.l.b16 %v907
      %v1157 = vunpack.c.l.b16 %v908
      %v1158 = vunpack.c.l.b16 %v909
      %v1159 = vunpack.c.l.b16 %v910
      %v1160 = vunpack.c.l.b16 %v911
      %v1161 = vpack.c.b16 %v1146, %v1145
      %v1162 = vpack.c.b16 %v1148, %v1147
      %v1163 = vpack.c.b16 %v1150, %v1149
      %v1164 = vpack.c.b16 %v1152, %v1151
      %v1165 = vpack.c.b16 %v1154, %v1153
      %v1166 = vpack.c.b16 %v1156, %v1155
      %v1167 = vpack.c.b16 %v1158, %v1157
      %v1168 = vpack.c.b16 %v1160, %v1159
      %1177 = vmatprep.subr.bf16.mxu0 0
      %1178 = vmatpush1.bf16.msra.mxu0 %v1168
      %1179 = vmatprep.subr.bf16.mxu0 0
      %1180 = vmatpush1.bf16.msra.mxu0 %v1167
      %1181 = vmatprep.subr.bf16.mxu0 0
      %1182 = vmatpush1.bf16.msra.mxu0 %v1166
      %1183 = vmatprep.subr.bf16.mxu0 0
      %1184 = vmatpush1.bf16.msra.mxu0 %v1165
      %1185 = vmatprep.subr.bf16.mxu0 0
      %1186 = vmatpush1.bf16.msra.mxu0 %v1164
      %1187 = vmatprep.subr.bf16.mxu0 0
      %1188 = vmatpush1.bf16.msra.mxu0 %v1163
      %1189 = vmatprep.subr.bf16.mxu0 0
      %1190 = vmatpush1.bf16.msra.mxu0 %v1162
      %1191 = vmatprep.subr.bf16.mxu0 0
      %1192 = vmatpush1.bf16.msra.mxu0 %v1161
      %1193 = vmatprep.subr.bf16.mxu0 0
      %1194 = vmatpush2.bf16.msra.mxu0 0
      %1195 = vmatprep.subr.bf16.mxu0 0
      %1196 = vmatpush2.bf16.msra.mxu0 0
      %1197 = vmatprep.subr.bf16.mxu0 0
      %1198 = vmatpush2.bf16.msra.mxu0 0
      %1199 = vmatprep.subr.bf16.mxu0 0
      %1200 = vmatpush2.bf16.msra.mxu0 0
      %1201 = vmatprep.subr.bf16.mxu0 0
      %1202 = vmatpush2.bf16.msra.mxu0 0
      %1203 = vmatprep.subr.bf16.mxu0 0
      %1204 = vmatpush2.bf16.msra.mxu0 0
      %1205 = vmatprep.subr.bf16.mxu0 0
      %1206 = vmatpush2.bf16.msra.mxu0 0
      %1207 = vmatprep.subr.bf16.mxu0 0
      %1208 = vmatpush2.bf16.msra.mxu0 0
      %1209 = vmatprep.mubr.bf16.mxu0 0
      %1210 = vmatmul.mubr.bf16.gmra.mxu0 %v1113
      %v1211 = vpop.f32.mrf.mxu0
      %v1212 = vadd.f32 %v1019, %v1211
      %v1213 = vpop.f32.mrf.mxu0
      %v1214 = vpop.f32.mrf.mxu0
      %v1215 = vadd.f32 %v1022, %v1214
      %v1216 = vpop.f32.mrf.mxu0
      %1217 = vmatprep.mubr.bf16.mxu0 0
      %1218 = vmatmul.mubr.bf16.gmra.mxu0 %v1114
      %v1219 = vpop.f32.mrf.mxu0
      %v1220 = vadd.f32 %v1027, %v1219
      %v1221 = vpop.f32.mrf.mxu0
      %v1222 = vpop.f32.mrf.mxu0
      %v1223 = vadd.f32 %v1030, %v1222
      %v1224 = vpop.f32.mrf.mxu0
      %1225 = vmatprep.mubr.bf16.mxu0 0
      %1226 = vmatmul.mubr.bf16.gmra.mxu0 %v1115
      %v1227 = vpop.f32.mrf.mxu0
      %v1228 = vadd.f32 %v1035, %v1227
      %v1229 = vpop.f32.mrf.mxu0
      %v1230 = vpop.f32.mrf.mxu0
      %v1231 = vadd.f32 %v1038, %v1230
      %v1232 = vpop.f32.mrf.mxu0
      %1233 = vmatprep.mubr.bf16.mxu0 0
      %1234 = vmatmul.mubr.bf16.gmra.mxu0 %v1116
      %v1235 = vpop.f32.mrf.mxu0
      %v1236 = vadd.f32 %v1043, %v1235
      %v1237 = vpop.f32.mrf.mxu0
      %v1238 = vpop.f32.mrf.mxu0
      %v1239 = vadd.f32 %v1046, %v1238
      %v1240 = vpop.f32.mrf.mxu0
      %1241 = vmatprep.mubr.bf16.mxu0 0
      %1242 = vmatmul.mubr.bf16.gmra.mxu0 %v1117
      %v1243 = vpop.f32.mrf.mxu0
      %v1244 = vadd.f32 %v1051, %v1243
      %v1245 = vpop.f32.mrf.mxu0
      %v1246 = vpop.f32.mrf.mxu0
      %v1247 = vadd.f32 %v1054, %v1246
      %v1248 = vpop.f32.mrf.mxu0
      %1249 = vmatprep.mubr.bf16.mxu0 0
      %1250 = vmatmul.mubr.bf16.gmra.mxu0 %v1118
      %v1251 = vpop.f32.mrf.mxu0
      %v1252 = vadd.f32 %v1059, %v1251
      %v1253 = vpop.f32.mrf.mxu0
      %v1254 = vpop.f32.mrf.mxu0
      %v1255 = vadd.f32 %v1062, %v1254
      %v1256 = vpop.f32.mrf.mxu0
      %1257 = vmatprep.mubr.bf16.mxu0 0
      %1258 = vmatmul.mubr.bf16.gmra.mxu0 %v1119
      %v1259 = vpop.f32.mrf.mxu0
      %v1260 = vadd.f32 %v1067, %v1259
      %v1261 = vpop.f32.mrf.mxu0
      %v1262 = vpop.f32.mrf.mxu0
      %v1263 = vadd.f32 %v1070, %v1262
      %v1264 = vpop.f32.mrf.mxu0
      %1265 = vmatprep.mubr.bf16.mxu0 0
      %1266 = vmatmul.mubr.bf16.gmra.mxu0 %v1120
      %v1267 = vpop.f32.mrf.mxu0
      %v1268 = vadd.f32 %v1075, %v1267
      %v1269 = vpop.f32.mrf.mxu0
      %v1270 = vpop.f32.mrf.mxu0
      %v1271 = vadd.f32 %v1078, %v1270
      %v1272 = vpop.f32.mrf.mxu0
      %1273 = vdwg.mxu0
      %v1274 = vpack.c.bf16 %v821, %v818
      %v1275 = vpack.c.bf16 %v829, %v826
      %v1276 = vpack.c.bf16 %v837, %v834
      %v1277 = vpack.c.bf16 %v845, %v842
      %v1278 = vpack.c.bf16 %v853, %v850
      %v1279 = vpack.c.bf16 %v861, %v858
      %v1280 = vpack.c.bf16 %v869, %v866
      %v1281 = vpack.c.bf16 %v877, %v874
      %v1282 = vld [vmem:[%s7] sm:$0xf]
      %v1283 = vld [vmem:[%s7 + $0x4] sm:$0xf]
      %v1284 = vld [vmem:[%s7 + $0x8] sm:$0xf]
      %v1285 = vld [vmem:[%s7 + $0xc] sm:$0xf]
      %v1286 = vld [vmem:[%s7 + $0x10] sm:$0xf]
      %v1287 = vld [vmem:[%s7 + $0x14] sm:$0xf]
      %v1288 = vld [vmem:[%s7 + $0x18] sm:$0xf]
      %v1289 = vld [vmem:[%s7 + $0x1c] sm:$0xf]
      %v1290 = vld [vmem:[%s7 + $0x20] sm:$0xf]
      %v1291 = vld [vmem:[%s7 + $0x24] sm:$0xf]
      %v1292 = vld [vmem:[%s7 + $0x28] sm:$0xf]
      %v1293 = vld [vmem:[%s7 + $0x2c] sm:$0xf]
      %v1294 = vld [vmem:[%s7 + $0x30] sm:$0xf]
      %v1295 = vld [vmem:[%s7 + $0x34] sm:$0xf]
      %v1296 = vld [vmem:[%s7 + $0x38] sm:$0xf]
      %v1297 = vld [vmem:[%s7 + $0x3c] sm:$0xf]
      %v1314 = vunpack.c.l.b16 %v1282
      %v1315 = vunpack.c.l.b16 %v1283
      %v1316 = vunpack.c.l.b16 %v1284
      %v1317 = vunpack.c.l.b16 %v1285
      %v1318 = vunpack.c.l.b16 %v1286
      %v1319 = vunpack.c.l.b16 %v1287
      %v1320 = vunpack.c.l.b16 %v1288
      %v1321 = vunpack.c.l.b16 %v1289
      %v1322 = vunpack.c.l.b16 %v1290
      %v1323 = vunpack.c.l.b16 %v1291
      %v1324 = vunpack.c.l.b16 %v1292
      %v1325 = vunpack.c.l.b16 %v1293
      %v1326 = vunpack.c.l.b16 %v1294
      %v1327 = vunpack.c.l.b16 %v1295
      %v1328 = vunpack.c.l.b16 %v1296
      %v1329 = vunpack.c.l.b16 %v1297
      %v1330 = vpack.c.b16 %v1315, %v1314
      %v1331 = vpack.c.b16 %v1317, %v1316
      %v1332 = vpack.c.b16 %v1319, %v1318
      %v1333 = vpack.c.b16 %v1321, %v1320
      %v1334 = vpack.c.b16 %v1323, %v1322
      %v1335 = vpack.c.b16 %v1325, %v1324
      %v1336 = vpack.c.b16 %v1327, %v1326
      %v1337 = vpack.c.b16 %v1329, %v1328
      %1346 = vmatprep.subr.bf16.mxu0 0
      %1347 = vmatpush1.bf16.msra.mxu0 %v1337
      %1348 = vmatprep.subr.bf16.mxu0 0
      %1349 = vmatpush1.bf16.msra.mxu0 %v1336
      %1350 = vmatprep.subr.bf16.mxu0 0
      %1351 = vmatpush1.bf16.msra.mxu0 %v1335
      %1352 = vmatprep.subr.bf16.mxu0 0
      %1353 = vmatpush1.bf16.msra.mxu0 %v1334
      %1354 = vmatprep.subr.bf16.mxu0 0
      %1355 = vmatpush1.bf16.msra.mxu0 %v1333
      %1356 = vmatprep.subr.bf16.mxu0 0
      %1357 = vmatpush1.bf16.msra.mxu0 %v1332
      %1358 = vmatprep.subr.bf16.mxu0 0
      %1359 = vmatpush1.bf16.msra.mxu0 %v1331
      %1360 = vmatprep.subr.bf16.mxu0 0
      %1361 = vmatpush1.bf16.msra.mxu0 %v1330
      %1362 = vmatprep.subr.bf16.mxu0 0
      %1363 = vmatpush2.bf16.msra.mxu0 0
      %1364 = vmatprep.subr.bf16.mxu0 0
      %1365 = vmatpush2.bf16.msra.mxu0 0
      %1366 = vmatprep.subr.bf16.mxu0 0
      %1367 = vmatpush2.bf16.msra.mxu0 0
      %1368 = vmatprep.subr.bf16.mxu0 0
      %1369 = vmatpush2.bf16.msra.mxu0 0
      %1370 = vmatprep.subr.bf16.mxu0 0
      %1371 = vmatpush2.bf16.msra.mxu0 0
      %1372 = vmatprep.subr.bf16.mxu0 0
      %1373 = vmatpush2.bf16.msra.mxu0 0
      %1374 = vmatprep.subr.bf16.mxu0 0
      %1375 = vmatpush2.bf16.msra.mxu0 0
      %1376 = vmatprep.subr.bf16.mxu0 0
      %1377 = vmatpush2.bf16.msra.mxu0 0
      %1378 = vmatprep.mubr.bf16.mxu0 0
      %1379 = vmatmul.mubr.bf16.gmra.mxu0 %v1274
      %v1380 = vpop.f32.mrf.mxu0
      %v1381 = vadd.f32 0.0, %v1380
      %v1382 = vpop.f32.mrf.mxu0
      %v1383 = vpop.f32.mrf.mxu0
      %v1384 = vadd.f32 0.0, %v1383
      %v1385 = vpop.f32.mrf.mxu0
      %1386 = vmatprep.mubr.bf16.mxu0 0
      %1387 = vmatmul.mubr.bf16.gmra.mxu0 %v1275
      %v1388 = vpop.f32.mrf.mxu0
      %v1389 = vadd.f32 0.0, %v1388
      %v1390 = vpop.f32.mrf.mxu0
      %v1391 = vpop.f32.mrf.mxu0
      %v1392 = vadd.f32 0.0, %v1391
      %v1393 = vpop.f32.mrf.mxu0
      %1394 = vmatprep.mubr.bf16.mxu0 0
      %1395 = vmatmul.mubr.bf16.gmra.mxu0 %v1276
      %v1396 = vpop.f32.mrf.mxu0
      %v1397 = vadd.f32 0.0, %v1396
      %v1398 = vpop.f32.mrf.mxu0
      %v1399 = vpop.f32.mrf.mxu0
      %v1400 = vadd.f32 0.0, %v1399
      %v1401 = vpop.f32.mrf.mxu0
      %1402 = vmatprep.mubr.bf16.mxu0 0
      %1403 = vmatmul.mubr.bf16.gmra.mxu0 %v1277
      %v1404 = vpop.f32.mrf.mxu0
      %v1405 = vadd.f32 0.0, %v1404
      %v1406 = vpop.f32.mrf.mxu0
      %v1407 = vpop.f32.mrf.mxu0
      %v1408 = vadd.f32 0.0, %v1407
      %v1409 = vpop.f32.mrf.mxu0
      %1410 = vmatprep.mubr.bf16.mxu0 0
      %1411 = vmatmul.mubr.bf16.gmra.mxu0 %v1278
      %v1412 = vpop.f32.mrf.mxu0
      %v1413 = vadd.f32 0.0, %v1412
      %v1414 = vpop.f32.mrf.mxu0
      %v1415 = vpop.f32.mrf.mxu0
      %v1416 = vadd.f32 0.0, %v1415
      %v1417 = vpop.f32.mrf.mxu0
      %1418 = vmatprep.mubr.bf16.mxu0 0
      %1419 = vmatmul.mubr.bf16.gmra.mxu0 %v1279
      %v1420 = vpop.f32.mrf.mxu0
      %v1421 = vadd.f32 0.0, %v1420
      %v1422 = vpop.f32.mrf.mxu0
      %v1423 = vpop.f32.mrf.mxu0
      %v1424 = vadd.f32 0.0, %v1423
      %v1425 = vpop.f32.mrf.mxu0
      %1426 = vmatprep.mubr.bf16.mxu0 0
      %1427 = vmatmul.mubr.bf16.gmra.mxu0 %v1280
      %v1428 = vpop.f32.mrf.mxu0
      %v1429 = vadd.f32 0.0, %v1428
      %v1430 = vpop.f32.mrf.mxu0
      %v1431 = vpop.f32.mrf.mxu0
      %v1432 = vadd.f32 0.0, %v1431
      %v1433 = vpop.f32.mrf.mxu0
      %1434 = vmatprep.mubr.bf16.mxu0 0
      %1435 = vmatmul.mubr.bf16.gmra.mxu0 %v1281
      %v1436 = vpop.f32.mrf.mxu0
      %v1437 = vadd.f32 0.0, %v1436
      %v1438 = vpop.f32.mrf.mxu0
      %v1439 = vpop.f32.mrf.mxu0
      %v1440 = vadd.f32 0.0, %v1439
      %v1441 = vpop.f32.mrf.mxu0
      %1442 = vdwg.mxu0
      %v1443 = vadd.f32 %v1212, %v1381
      %v1444 = vadd.f32 %v1215, %v1384
      %v1445 = vadd.f32 %v1220, %v1389
      %v1446 = vadd.f32 %v1223, %v1392
      %v1447 = vadd.f32 %v1228, %v1397
      %v1448 = vadd.f32 %v1231, %v1400
      %v1449 = vadd.f32 %v1236, %v1405
      %v1450 = vadd.f32 %v1239, %v1408
      %v1451 = vadd.f32 %v1244, %v1413
      %v1452 = vadd.f32 %v1247, %v1416
      %v1453 = vadd.f32 %v1252, %v1421
      %v1454 = vadd.f32 %v1255, %v1424
      %v1455 = vadd.f32 %v1260, %v1429
      %v1456 = vadd.f32 %v1263, %v1432
      %v1457 = vadd.f32 %v1268, %v1437
      %v1458 = vadd.f32 %v1271, %v1440
      %v1459 = vld [vmem:[%s8] sm:$0x1]
      %v1461 = vlaneseq
      %v1462 = vshrl.u32 %v1461, 7
      %v1463 = vsub.s32 0, %v1462
      %v1464 = vrot.slane %v1459, %v1463
      %v1466 = vadd.f32 %v1443, %v1464
      %v1467 = vadd.f32 %v1444, %v1464
      %v1468 = vadd.f32 %v1445, %v1464
      %v1469 = vadd.f32 %v1446, %v1464
      %v1470 = vadd.f32 %v1447, %v1464
      %v1471 = vadd.f32 %v1448, %v1464
      %v1472 = vadd.f32 %v1449, %v1464
      %v1473 = vadd.f32 %v1450, %v1464
      %v1474 = vadd.f32 %v1451, %v1464
      %v1475 = vadd.f32 %v1452, %v1464
      %v1476 = vadd.f32 %v1453, %v1464
      %v1477 = vadd.f32 %v1454, %v1464
      %v1478 = vadd.f32 %v1455, %v1464
      %v1479 = vadd.f32 %v1456, %v1464
      %v1480 = vadd.f32 %v1457, %v1464
      %v1481 = vadd.f32 %v1458, %v1464
      %1482 = vst [vmem:[%s378] sm:$0xff] %v1466
      %1483 = vst [vmem:[%s378 + $0x8] sm:$0xff] %v1467
      %1484 = vst [vmem:[%s378 + $0x10] sm:$0xff] %v1468
      %1485 = vst [vmem:[%s378 + $0x18] sm:$0xff] %v1469
      %1486 = vst [vmem:[%s378 + $0x20] sm:$0xff] %v1470
      %1487 = vst [vmem:[%s378 + $0x28] sm:$0xff] %v1471
      %1488 = vst [vmem:[%s378 + $0x30] sm:$0xff] %v1472
      %1489 = vst [vmem:[%s378 + $0x38] sm:$0xff] %v1473
      %1490 = vst [vmem:[%s378 + $0x40] sm:$0xff] %v1474
      %1491 = vst [vmem:[%s378 + $0x48] sm:$0xff] %v1475
      %1492 = vst [vmem:[%s378 + $0x50] sm:$0xff] %v1476
      %1493 = vst [vmem:[%s378 + $0x58] sm:$0xff] %v1477
      %1494 = vst [vmem:[%s378 + $0x60] sm:$0xff] %v1478
      %1495 = vst [vmem:[%s378 + $0x68] sm:$0xff] %v1479
      %1496 = vst [vmem:[%s378 + $0x70] sm:$0xff] %v1480
      %1497 = vst [vmem:[%s378 + $0x78] sm:$0xff] %v1481
      %s1498 = smul.u32 16, %s20
      %p1499 = scmp.lt.s32.totalorder %s1498, 31
      %s1500 = scalar_select %p1499, %s1498, 31
      %s1501 = smul.addr %s1500, 8
      %s1502 = scalar_lea.vmem %s9, %s1501
      // Predicated region
      $region57: #{gcn_block_forward.3} parent=55 // pred_check
        %p1503 = pneg %p242
      $region58: #{gcn_block_forward.3} parent=55 // pred_check_branch
        %1505 = sbr.rel (%p1503) target = $region60
      $region59: #{gcn_block_forward.3} parent=55 // pred_region
        %s1506 = smul.u32 16, %s20
      $region60: #{gcn_block_forward.3} parent=55 // pred_fallthru
        _
    $region56: #{gcn_block_forward.3} parent=5 // pred_fallthru
      _
    %p1507 = scmp.le.s32.totalorder 2, %s15
    // Predicated region
    $region61: #{gcn_block_forward.3} parent=5 // pred_check
      %p1508 = pneg %p1507
    $region62: #{gcn_block_forward.3} parent=5 // pred_check_branch
      %1510 = sbr.rel (%p1508) target = $region64
    $region63: #{gcn_block_forward.3} parent=5 // pred_region
      %s1511 = ssub.s32 %s15, 2
      // Predicated region
      $region65: #{gcn_block_forward.3} parent=63 // pred_check
        %p1512 = pneg %p248
      $region66: #{gcn_block_forward.3} parent=63 // pred_check_branch
        %1514 = sbr.rel (%p1512) target = $region68
      $region67: #{gcn_block_forward.3} parent=63 // pred_region
        %s1515 = smul.u32 16, %s21
        %p1516 = scmp.lt.s32.totalorder %s1515, 31
        %s1517 = scalar_select %p1516, %s1515, 31
        %s1518 = smul.addr %s1517, 8
        %s1519 = scalar_lea.vmem %s9, %s1518
      $region68: #{gcn_block_forward.3} parent=63 // pred_fallthru
        _
    $region64: #{gcn_block_forward.3} parent=5 // pred_fallthru
      _
  $region6: #{gcn_block_forward.3} parent=0 // loop_footer
    %s19 = sadd.s32 1, %s15
  $region7: #{gcn_block_forward.3} parent=0 // loop_footer_branch
    %14 = sbr.rel target = $region3
  $region8: #{gcn_block_forward.3} parent=0 // loop_exit
    _

// kernel: gcn_block_forward.2
$region0: #{gcn_block_forward.2}
  #allocation0 [shape = 'u32[]', space=smem, size = 0x4, offset = 0x4, fixed_abs, tag = 'smem constant byte address 0x4 - core index']
  #allocation1 [shape = 'u32[144,128]{1,0:T(1,128)}', space=vmem, size = 0x12000, scoped, tag = 'internal scratch']
  #allocation2 [shape = 'f32[8,128]{1,0:T(8,128)}', space=vmem, size = 0x1000, scoped, tag = 'scratch operand']
  #allocation3 [shape = 'f32[16,128]{1,0:T(8,128)}', space=vmem, size = 0x2000, scoped, tag = 'scratch operand']
  #allocation4 [shape = 'f32[8,1]{1,0:T(8,128)}', space=vmem, size = 0x1000, scoped, tag = 'scratch operand']
  #allocation5 [shape = 'f32[16,1]{1,0:T(8,128)}', space=vmem, size = 0x2000, scoped, tag = 'scratch operand']
  %s0 = inlined_call_operand.vmem [shape: s32[1,256], index: 0, kind: input, shape index: {}]
  %s1 = inlined_call_operand.vmem [shape: s32[1,256], index: 1, kind: input, shape index: {}]
  %s2 = inlined_call_operand.vmem [shape: s32[256,1], index: 2, kind: input, shape index: {}]
  %s3 = inlined_call_operand.vmem [shape: s32[256,1], index: 3, kind: input, shape index: {}]
  %s4 = inlined_call_operand.vmem [shape: bf16[256,128], index: 4, kind: input, shape index: {}]
  %s5 = inlined_call_operand.vmem [shape: bf16[8,128], index: 5, kind: input, shape index: {}]
  %s6 = inlined_call_operand.vmem [shape: bf16[16,128], index: 6, kind: input, shape index: {}]
  %s7 = inlined_call_operand.vmem [shape: bf16[128,128], index: 7, kind: input, shape index: {}]
  %s8 = inlined_call_operand.vmem [shape: bf16[128,128], index: 8, kind: input, shape index: {}]
  %s9 = inlined_call_operand.vmem [shape: f32[1,128], index: 9, kind: input, shape index: {}]
  %s10 = inlined_call_operand.vmem [shape: bf16[128,128], index: 10, kind: input, shape index: {}]
  %s11 = inlined_call_operand.vmem [shape: bf16[128,128], index: 11, kind: input, shape index: {}]
  %s12 = inlined_call_operand.vmem [shape: f32[1,128], index: 12, kind: input, shape index: {}]
  %s13 = inlined_call_operand.vmem [shape: bf16[128,128], index: 13, kind: input, shape index: {}]
  %s14 = inlined_call_operand.vmem [shape: bf16[128,128], index: 14, kind: input, shape index: {}]
  %s15 = inlined_call_operand.vmem [shape: f32[1,128], index: 15, kind: input, shape index: {}]
  %s16 = inlined_call_operand.vmem [shape: bf16[128,128], index: 16, kind: input, shape index: {}]
  %s17 = inlined_call_operand.vmem [shape: bf16[128,128], index: 17, kind: input, shape index: {}]
  %s18 = inlined_call_operand.vmem [shape: f32[1,128], index: 18, kind: input, shape index: {}]
  %s19 = inlined_call_operand.vmem [shape: f32[8,128], index: 19, kind: output, shape index: {0}]
  %s20 = inlined_call_operand.vmem [shape: f32[16,128], index: 20, kind: output, shape index: {1}]
  %21 = xla_tuple %s19, %s20
  %s22 = sld [smem:[#allocation0]]
  $region125: #{gcn_block_forward.2} parent=0
    _
  %s24 = ssub.s32 1, %s22
  %s25 = scalar_select 0, %s24, %s22
  loop: start=0, step=1, limit=4
  $region2: #{gcn_block_forward.2} parent=0 // loop_pre_header
    _
  $region3: #{gcn_block_forward.2} parent=0 // loop_header
    %s27 = sphi 0, %s31
    %p28 = scmp.ge.s32.totalorder %s27, 4
    %s37 = sphi 0, %s39
    %s40 = sphi 0, %s37
    %s41 = sphi 0, %s40
    %s57 = sphi 0, %s41
    %s63 = sphi 0, %s65
    %s66 = sphi 0, %s63
    %s67 = sphi 0, %s66
    %s83 = sphi 0, %s67
    %s89 = sphi 0, %s91
    %s92 = sphi 0, %s89
    %s93 = sphi 0, %s92
    %s109 = sphi 0, %s93
    %s115 = sphi 0, %s117
    %s118 = sphi 0, %s115
    %s119 = sphi 0, %s118
    %s135 = sphi 0, %s119
    %s141 = sphi 0, %s143
    %s144 = sphi 0, %s141
    %s145 = sphi 0, %s144
    %s161 = sphi 0, %s145
    %s165 = sphi 0, %s165
    %s167 = sphi 0, %s165
    %s168 = sphi 0, %s167
    %s182 = sphi 0, %s168
    %s186 = sphi 0, %s186
    %s188 = sphi 0, %s186
    %s189 = sphi 0, %s188
    %s203 = sphi 0, %s189
    %s207 = sphi 0, %s207
    %s209 = sphi 0, %s207
    %s210 = sphi 0, %s209
    %s224 = sphi 0, %s210
    %s228 = sphi 0, %s228
    %s230 = sphi 0, %s228
    %s231 = sphi 0, %s230
    %s245 = sphi 0, %s231
    %s249 = sphi 0, %s249
    %s251 = sphi 0, %s249
    %s252 = sphi 0, %s251
    %s266 = sphi 0, %s252
    %s270 = sphi 0, %s270
    %s272 = sphi 0, %s270
    %s273 = sphi 0, %s272
    %s287 = sphi 0, %s273
    %s291 = sphi 0, %s291
    %s293 = sphi 0, %s291
    %s294 = sphi 0, %s293
    %s308 = sphi 0, %s294
    %s312 = sphi 0, %s312
    %s314 = sphi 0, %s312
    %s315 = sphi 0, %s314
    %s329 = sphi 0, %s315
    %s333 = sphi 0, %s333
    %s335 = sphi 0, %s333
    %s336 = sphi 0, %s335
    %s350 = sphi 0, %s336
    %s354 = sphi 0, %s354
    %s356 = sphi 0, %s354
    %s357 = sphi 0, %s356
    %s371 = sphi 0, %s357
    %s375 = sphi 0, %s375
    %s377 = sphi 0, %s375
    %s378 = sphi 0, %s377
    %s392 = sphi 0, %s378
    %s396 = sphi 0, %s396
    %s398 = sphi 0, %s396
    %s399 = sphi 0, %s398
    %s413 = sphi 0, %s399
    %s417 = sphi 0, %s417
    %s419 = sphi 0, %s417
    %s420 = sphi 0, %s419
    %s434 = sphi 0, %s420
    %s438 = sphi 0, %s438
    %s440 = sphi 0, %s438
    %s441 = sphi 0, %s440
    %s455 = sphi 0, %s441
    %s459 = sphi 0, %s459
    %s461 = sphi 0, %s459
    %s462 = sphi 0, %s461
    %s476 = sphi 0, %s462
    %s480 = sphi 0, %s480
    %s482 = sphi 0, %s480
    %s483 = sphi 0, %s482
    %s497 = sphi 0, %s483
  $region4: #{gcn_block_forward.2} parent=0 // loop_header_branch
    %30 = sbr.rel (%p28) target = $region8
  $region5: #{gcn_block_forward.2} parent=0 // loop_body
    %s32 = ssub.s32 %s27, 1
    %s33 = ssub.s32 %s27, 2
    %s34 = sadd.s32 %s27, 1
    %s35 = ssub.s32 %s27, %s34
    %p36 = scmp.eq.s32.totalorder %s35, 0
    %s38 = sadd.s32 %s37, 1
    %s39 = scalar_select %p36, %s37, %s38
    %p42 = pneg %p36
    %p43 = scmp.eq.s32.totalorder %s27, 1
    %p44 = por %p42, %p43
    %p45 = scmp.ne.s32.totalorder %s37, %s40
    %p46 = scmp.eq.s32.totalorder %s27, 0
    %p47 = por %p45, %p46
    %p48 = scmp.ne.s32.totalorder %s37, %s40
    %p49 = scmp.eq.s32.totalorder %s32, 1
    %p50 = por %p48, %p49
    %p51 = scmp.ne.s32.totalorder %s40, %s41
    %p52 = scmp.eq.s32.totalorder %s32, 0
    %p53 = por %p51, %p52
    %p54 = scmp.ne.s32.totalorder %s40, %s41
    %p55 = scmp.eq.s32.totalorder %s33, 1
    %p56 = por %p54, %p55
    %p58 = scmp.ne.s32.totalorder %s41, %s57
    %p59 = scmp.eq.s32.totalorder %s33, 0
    %p60 = por %p58, %p59
    %s61 = ssub.s32 %s27, %s34
    %p62 = scmp.eq.s32.totalorder %s61, 0
    %s64 = sadd.s32 %s63, 1
    %s65 = scalar_select %p62, %s63, %s64
    %p68 = pneg %p62
    %p69 = scmp.eq.s32.totalorder %s27, 1
    %p70 = por %p68, %p69
    %p71 = scmp.ne.s32.totalorder %s63, %s66
    %p72 = scmp.eq.s32.totalorder %s27, 0
    %p73 = por %p71, %p72
    %p74 = scmp.ne.s32.totalorder %s63, %s66
    %p75 = scmp.eq.s32.totalorder %s32, 1
    %p76 = por %p74, %p75
    %p77 = scmp.ne.s32.totalorder %s66, %s67
    %p78 = scmp.eq.s32.totalorder %s32, 0
    %p79 = por %p77, %p78
    %p80 = scmp.ne.s32.totalorder %s66, %s67
    %p81 = scmp.eq.s32.totalorder %s33, 1
    %p82 = por %p80, %p81
    %p84 = scmp.ne.s32.totalorder %s67, %s83
    %p85 = scmp.eq.s32.totalorder %s33, 0
    %p86 = por %p84, %p85
    %s87 = ssub.s32 %s27, %s34
    %p88 = scmp.eq.s32.totalorder %s87, 0
    %s90 = sadd.s32 %s89, 1
    %s91 = scalar_select %p88, %s89, %s90
    %p94 = pneg %p88
    %p95 = scmp.eq.s32.totalorder %s27, 1
    %p96 = por %p94, %p95
    %p97 = scmp.ne.s32.totalorder %s89, %s92
    %p98 = scmp.eq.s32.totalorder %s27, 0
    %p99 = por %p97, %p98
    %p100 = scmp.ne.s32.totalorder %s89, %s92
    %p101 = scmp.eq.s32.totalorder %s32, 1
    %p102 = por %p100, %p101
    %p103 = scmp.ne.s32.totalorder %s92, %s93
    %p104 = scmp.eq.s32.totalorder %s32, 0
    %p105 = por %p103, %p104
    %p106 = scmp.ne.s32.totalorder %s92, %s93
    %p107 = scmp.eq.s32.totalorder %s33, 1
    %p108 = por %p106, %p107
    %p110 = scmp.ne.s32.totalorder %s93, %s109
    %p111 = scmp.eq.s32.totalorder %s33, 0
    %p112 = por %p110, %p111
    %s113 = ssub.s32 %s27, %s34
    %p114 = scmp.eq.s32.totalorder %s113, 0
    %s116 = sadd.s32 %s115, 1
    %s117 = scalar_select %p114, %s115, %s116
    %p120 = pneg %p114
    %p121 = scmp.eq.s32.totalorder %s27, 1
    %p122 = por %p120, %p121
    %p123 = scmp.ne.s32.totalorder %s115, %s118
    %p124 = scmp.eq.s32.totalorder %s27, 0
    %p125 = por %p123, %p124
    %p126 = scmp.ne.s32.totalorder %s115, %s118
    %p127 = scmp.eq.s32.totalorder %s32, 1
    %p128 = por %p126, %p127
    %p129 = scmp.ne.s32.totalorder %s118, %s119
    %p130 = scmp.eq.s32.totalorder %s32, 0
    %p131 = por %p129, %p130
    %p132 = scmp.ne.s32.totalorder %s118, %s119
    %p133 = scmp.eq.s32.totalorder %s33, 1
    %p134 = por %p132, %p133
    %p136 = scmp.ne.s32.totalorder %s119, %s135
    %p137 = scmp.eq.s32.totalorder %s33, 0
    %p138 = por %p136, %p137
    %s139 = ssub.s32 %s27, %s34
    %p140 = scmp.eq.s32.totalorder %s139, 0
    %s142 = sadd.s32 %s141, 1
    %s143 = scalar_select %p140, %s141, %s142
    %p146 = pneg %p140
    %p147 = scmp.eq.s32.totalorder %s27, 1
    %p148 = por %p146, %p147
    %p149 = scmp.ne.s32.totalorder %s141, %s144
    %p150 = scmp.eq.s32.totalorder %s27, 0
    %p151 = por %p149, %p150
    %p152 = scmp.ne.s32.totalorder %s141, %s144
    %p153 = scmp.eq.s32.totalorder %s32, 1
    %p154 = por %p152, %p153
    %p155 = scmp.ne.s32.totalorder %s144, %s145
    %p156 = scmp.eq.s32.totalorder %s32, 0
    %p157 = por %p155, %p156
    %p158 = scmp.ne.s32.totalorder %s144, %s145
    %p159 = scmp.eq.s32.totalorder %s33, 1
    %p160 = por %p158, %p159
    %p162 = scmp.ne.s32.totalorder %s145, %s161
    %p163 = scmp.eq.s32.totalorder %s33, 0
    %p164 = por %p162, %p163
    %s166 = sadd.s32 %s165, 1
    %p169 = scmp.eq.s32.totalorder %s27, 1
    %p170 = scmp.ne.s32.totalorder %s165, %s167
    %p171 = scmp.eq.s32.totalorder %s27, 0
    %p172 = por %p170, %p171
    %p173 = scmp.ne.s32.totalorder %s165, %s167
    %p174 = scmp.eq.s32.totalorder %s32, 1
    %p175 = por %p173, %p174
    %p176 = scmp.ne.s32.totalorder %s167, %s168
    %p177 = scmp.eq.s32.totalorder %s32, 0
    %p178 = por %p176, %p177
    %p179 = scmp.ne.s32.totalorder %s167, %s168
    %p180 = scmp.eq.s32.totalorder %s33, 1
    %p181 = por %p179, %p180
    %p183 = scmp.ne.s32.totalorder %s168, %s182
    %p184 = scmp.eq.s32.totalorder %s33, 0
    %p185 = por %p183, %p184
    %s187 = sadd.s32 %s186, 1
    %p190 = scmp.eq.s32.totalorder %s27, 1
    %p191 = scmp.ne.s32.totalorder %s186, %s188
    %p192 = scmp.eq.s32.totalorder %s27, 0
    %p193 = por %p191, %p192
    %p194 = scmp.ne.s32.totalorder %s186, %s188
    %p195 = scmp.eq.s32.totalorder %s32, 1
    %p196 = por %p194, %p195
    %p197 = scmp.ne.s32.totalorder %s188, %s189
    %p198 = scmp.eq.s32.totalorder %s32, 0
    %p199 = por %p197, %p198
    %p200 = scmp.ne.s32.totalorder %s188, %s189
    %p201 = scmp.eq.s32.totalorder %s33, 1
    %p202 = por %p200, %p201
    %p204 = scmp.ne.s32.totalorder %s189, %s203
    %p205 = scmp.eq.s32.totalorder %s33, 0
    %p206 = por %p204, %p205
    %s208 = sadd.s32 %s207, 1
    %p211 = scmp.eq.s32.totalorder %s27, 1
    %p212 = scmp.ne.s32.totalorder %s207, %s209
    %p213 = scmp.eq.s32.totalorder %s27, 0
    %p214 = por %p212, %p213
    %p215 = scmp.ne.s32.totalorder %s207, %s209
    %p216 = scmp.eq.s32.totalorder %s32, 1
    %p217 = por %p215, %p216
    %p218 = scmp.ne.s32.totalorder %s209, %s210
    %p219 = scmp.eq.s32.totalorder %s32, 0
    %p220 = por %p218, %p219
    %p221 = scmp.ne.s32.totalorder %s209, %s210
    %p222 = scmp.eq.s32.totalorder %s33, 1
    %p223 = por %p221, %p222
    %p225 = scmp.ne.s32.totalorder %s210, %s224
    %p226 = scmp.eq.s32.totalorder %s33, 0
    %p227 = por %p225, %p226
    %s229 = sadd.s32 %s228, 1
    %p232 = scmp.eq.s32.totalorder %s27, 1
    %p233 = scmp.ne.s32.totalorder %s228, %s230
    %p234 = scmp.eq.s32.totalorder %s27, 0
    %p235 = por %p233, %p234
    %p236 = scmp.ne.s32.totalorder %s228, %s230
    %p237 = scmp.eq.s32.totalorder %s32, 1
    %p238 = por %p236, %p237
    %p239 = scmp.ne.s32.totalorder %s230, %s231
    %p240 = scmp.eq.s32.totalorder %s32, 0
    %p241 = por %p239, %p240
    %p242 = scmp.ne.s32.totalorder %s230, %s231
    %p243 = scmp.eq.s32.totalorder %s33, 1
    %p244 = por %p242, %p243
    %p246 = scmp.ne.s32.totalorder %s231, %s245
    %p247 = scmp.eq.s32.totalorder %s33, 0
    %p248 = por %p246, %p247
    %s250 = sadd.s32 %s249, 1
    %p253 = scmp.eq.s32.totalorder %s27, 1
    %p254 = scmp.ne.s32.totalorder %s249, %s251
    %p255 = scmp.eq.s32.totalorder %s27, 0
    %p256 = por %p254, %p255
    %p257 = scmp.ne.s32.totalorder %s249, %s251
    %p258 = scmp.eq.s32.totalorder %s32, 1
    %p259 = por %p257, %p258
    %p260 = scmp.ne.s32.totalorder %s251, %s252
    %p261 = scmp.eq.s32.totalorder %s32, 0
    %p262 = por %p260, %p261
    %p263 = scmp.ne.s32.totalorder %s251, %s252
    %p264 = scmp.eq.s32.totalorder %s33, 1
    %p265 = por %p263, %p264
    %p267 = scmp.ne.s32.totalorder %s252, %s266
    %p268 = scmp.eq.s32.totalorder %s33, 0
    %p269 = por %p267, %p268
    %s271 = sadd.s32 %s270, 1
    %p274 = scmp.eq.s32.totalorder %s27, 1
    %p275 = scmp.ne.s32.totalorder %s270, %s272
    %p276 = scmp.eq.s32.totalorder %s27, 0
    %p277 = por %p275, %p276
    %p278 = scmp.ne.s32.totalorder %s270, %s272
    %p279 = scmp.eq.s32.totalorder %s32, 1
    %p280 = por %p278, %p279
    %p281 = scmp.ne.s32.totalorder %s272, %s273
    %p282 = scmp.eq.s32.totalorder %s32, 0
    %p283 = por %p281, %p282
    %p284 = scmp.ne.s32.totalorder %s272, %s273
    %p285 = scmp.eq.s32.totalorder %s33, 1
    %p286 = por %p284, %p285
    %p288 = scmp.ne.s32.totalorder %s273, %s287
    %p289 = scmp.eq.s32.totalorder %s33, 0
    %p290 = por %p288, %p289
    %s292 = sadd.s32 %s291, 1
    %p295 = scmp.eq.s32.totalorder %s27, 1
    %p296 = scmp.ne.s32.totalorder %s291, %s293
    %p297 = scmp.eq.s32.totalorder %s27, 0
    %p298 = por %p296, %p297
    %p299 = scmp.ne.s32.totalorder %s291, %s293
    %p300 = scmp.eq.s32.totalorder %s32, 1
    %p301 = por %p299, %p300
    %p302 = scmp.ne.s32.totalorder %s293, %s294
    %p303 = scmp.eq.s32.totalorder %s32, 0
    %p304 = por %p302, %p303
    %p305 = scmp.ne.s32.totalorder %s293, %s294
    %p306 = scmp.eq.s32.totalorder %s33, 1
    %p307 = por %p305, %p306
    %p309 = scmp.ne.s32.totalorder %s294, %s308
    %p310 = scmp.eq.s32.totalorder %s33, 0
    %p311 = por %p309, %p310
    %s313 = sadd.s32 %s312, 1
    %p316 = scmp.eq.s32.totalorder %s27, 1
    %p317 = scmp.ne.s32.totalorder %s312, %s314
    %p318 = scmp.eq.s32.totalorder %s27, 0
    %p319 = por %p317, %p318
    %p320 = scmp.ne.s32.totalorder %s312, %s314
    %p321 = scmp.eq.s32.totalorder %s32, 1
    %p322 = por %p320, %p321
    %p323 = scmp.ne.s32.totalorder %s314, %s315
    %p324 = scmp.eq.s32.totalorder %s32, 0
    %p325 = por %p323, %p324
    %p326 = scmp.ne.s32.totalorder %s314, %s315
    %p327 = scmp.eq.s32.totalorder %s33, 1
    %p328 = por %p326, %p327
    %p330 = scmp.ne.s32.totalorder %s315, %s329
    %p331 = scmp.eq.s32.totalorder %s33, 0
    %p332 = por %p330, %p331
    %s334 = sadd.s32 %s333, 1
    %p337 = scmp.eq.s32.totalorder %s27, 1
    %p338 = scmp.ne.s32.totalorder %s333, %s335
    %p339 = scmp.eq.s32.totalorder %s27, 0
    %p340 = por %p338, %p339
    %p341 = scmp.ne.s32.totalorder %s333, %s335
    %p342 = scmp.eq.s32.totalorder %s32, 1
    %p343 = por %p341, %p342
    %p344 = scmp.ne.s32.totalorder %s335, %s336
    %p345 = scmp.eq.s32.totalorder %s32, 0
    %p346 = por %p344, %p345
    %p347 = scmp.ne.s32.totalorder %s335, %s336
    %p348 = scmp.eq.s32.totalorder %s33, 1
    %p349 = por %p347, %p348
    %p351 = scmp.ne.s32.totalorder %s336, %s350
    %p352 = scmp.eq.s32.totalorder %s33, 0
    %p353 = por %p351, %p352
    %s355 = sadd.s32 %s354, 1
    %p358 = scmp.eq.s32.totalorder %s27, 1
    %p359 = scmp.ne.s32.totalorder %s354, %s356
    %p360 = scmp.eq.s32.totalorder %s27, 0
    %p361 = por %p359, %p360
    %p362 = scmp.ne.s32.totalorder %s354, %s356
    %p363 = scmp.eq.s32.totalorder %s32, 1
    %p364 = por %p362, %p363
    %p365 = scmp.ne.s32.totalorder %s356, %s357
    %p366 = scmp.eq.s32.totalorder %s32, 0
    %p367 = por %p365, %p366
    %p368 = scmp.ne.s32.totalorder %s356, %s357
    %p369 = scmp.eq.s32.totalorder %s33, 1
    %p370 = por %p368, %p369
    %p372 = scmp.ne.s32.totalorder %s357, %s371
    %p373 = scmp.eq.s32.totalorder %s33, 0
    %p374 = por %p372, %p373
    %s376 = sadd.s32 %s375, 1
    %p379 = scmp.eq.s32.totalorder %s27, 1
    %p380 = scmp.ne.s32.totalorder %s375, %s377
    %p381 = scmp.eq.s32.totalorder %s27, 0
    %p382 = por %p380, %p381
    %p383 = scmp.ne.s32.totalorder %s375, %s377
    %p384 = scmp.eq.s32.totalorder %s32, 1
    %p385 = por %p383, %p384
    %p386 = scmp.ne.s32.totalorder %s377, %s378
    %p387 = scmp.eq.s32.totalorder %s32, 0
    %p388 = por %p386, %p387
    %p389 = scmp.ne.s32.totalorder %s377, %s378
    %p390 = scmp.eq.s32.totalorder %s33, 1
    %p391 = por %p389, %p390
    %p393 = scmp.ne.s32.totalorder %s378, %s392
    %p394 = scmp.eq.s32.totalorder %s33, 0
    %p395 = por %p393, %p394
    %s397 = sadd.s32 %s396, 1
    %p400 = scmp.eq.s32.totalorder %s27, 1
    %p401 = scmp.ne.s32.totalorder %s396, %s398
    %p402 = scmp.eq.s32.totalorder %s27, 0
    %p403 = por %p401, %p402
    %p404 = scmp.ne.s32.totalorder %s396, %s398
    %p405 = scmp.eq.s32.totalorder %s32, 1
    %p406 = por %p404, %p405
    %p407 = scmp.ne.s32.totalorder %s398, %s399
    %p408 = scmp.eq.s32.totalorder %s32, 0
    %p409 = por %p407, %p408
    %p410 = scmp.ne.s32.totalorder %s398, %s399
    %p411 = scmp.eq.s32.totalorder %s33, 1
    %p412 = por %p410, %p411
    %p414 = scmp.ne.s32.totalorder %s399, %s413
    %p415 = scmp.eq.s32.totalorder %s33, 0
    %p416 = por %p414, %p415
    %s418 = sadd.s32 %s417, 1
    %p421 = scmp.eq.s32.totalorder %s27, 1
    %p422 = scmp.ne.s32.totalorder %s417, %s419
    %p423 = scmp.eq.s32.totalorder %s27, 0
    %p424 = por %p422, %p423
    %p425 = scmp.ne.s32.totalorder %s417, %s419
    %p426 = scmp.eq.s32.totalorder %s32, 1
    %p427 = por %p425, %p426
    %p428 = scmp.ne.s32.totalorder %s419, %s420
    %p429 = scmp.eq.s32.totalorder %s32, 0
    %p430 = por %p428, %p429
    %p431 = scmp.ne.s32.totalorder %s419, %s420
    %p432 = scmp.eq.s32.totalorder %s33, 1
    %p433 = por %p431, %p432
    %p435 = scmp.ne.s32.totalorder %s420, %s434
    %p436 = scmp.eq.s32.totalorder %s33, 0
    %p437 = por %p435, %p436
    %s439 = sadd.s32 %s438, 1
    %p442 = scmp.eq.s32.totalorder %s27, 1
    %p443 = scmp.ne.s32.totalorder %s438, %s440
    %p444 = scmp.eq.s32.totalorder %s27, 0
    %p445 = por %p443, %p444
    %p446 = scmp.ne.s32.totalorder %s438, %s440
    %p447 = scmp.eq.s32.totalorder %s32, 1
    %p448 = por %p446, %p447
    %p449 = scmp.ne.s32.totalorder %s440, %s441
    %p450 = scmp.eq.s32.totalorder %s32, 0
    %p451 = por %p449, %p450
    %p452 = scmp.ne.s32.totalorder %s440, %s441
    %p453 = scmp.eq.s32.totalorder %s33, 1
    %p454 = por %p452, %p453
    %p456 = scmp.ne.s32.totalorder %s441, %s455
    %p457 = scmp.eq.s32.totalorder %s33, 0
    %p458 = por %p456, %p457
    %s460 = sadd.s32 %s459, 1
    %p463 = scmp.eq.s32.totalorder %s27, 1
    %p464 = scmp.ne.s32.totalorder %s459, %s461
    %p465 = scmp.eq.s32.totalorder %s27, 0
    %p466 = por %p464, %p465
    %p467 = scmp.ne.s32.totalorder %s459, %s461
    %p468 = scmp.eq.s32.totalorder %s32, 1
    %p469 = por %p467, %p468
    %p470 = scmp.ne.s32.totalorder %s461, %s462
    %p471 = scmp.eq.s32.totalorder %s32, 0
    %p472 = por %p470, %p471
    %p473 = scmp.ne.s32.totalorder %s461, %s462
    %p474 = scmp.eq.s32.totalorder %s33, 1
    %p475 = por %p473, %p474
    %p477 = scmp.ne.s32.totalorder %s462, %s476
    %p478 = scmp.eq.s32.totalorder %s33, 0
    %p479 = por %p477, %p478
    %s481 = sadd.s32 %s480, 1
    %p484 = scmp.eq.s32.totalorder %s27, 1
    %p485 = scmp.ne.s32.totalorder %s480, %s482
    %p486 = scmp.eq.s32.totalorder %s27, 0
    %p487 = por %p485, %p486
    %p488 = scmp.ne.s32.totalorder %s480, %s482
    %p489 = scmp.eq.s32.totalorder %s32, 1
    %p490 = por %p488, %p489
    %p491 = scmp.ne.s32.totalorder %s482, %s483
    %p492 = scmp.eq.s32.totalorder %s32, 0
    %p493 = por %p491, %p492
    %p494 = scmp.ne.s32.totalorder %s482, %s483
    %p495 = scmp.eq.s32.totalorder %s33, 1
    %p496 = por %p494, %p495
    %p498 = scmp.ne.s32.totalorder %s483, %s497
    %p499 = scmp.eq.s32.totalorder %s33, 0
    %p500 = por %p498, %p499
    %p501 = scmp.le.s32.totalorder 1, %s27
    %p502 = scmp.lt.s32.totalorder %s27, 3
    %p503 = pnand %p501, %p502
    %p504 = pneg %p503
    // Predicated region
    $region9: #{gcn_block_forward.2} parent=5 // pred_check
      _
    $region10: #{gcn_block_forward.2} parent=5 // pred_check_branch
      %506 = sbr.rel (%p503) target = $region12
    $region11: #{gcn_block_forward.2} parent=5 // pred_region
      %s507 = ssub.s32 %s27, 1
      // Predicated region
      $region13: #{gcn_block_forward.2} parent=11 // pred_check
        %p508 = pneg %p178
      $region14: #{gcn_block_forward.2} parent=11 // pred_check_branch
        %510 = sbr.rel (%p508) target = $region16
      $region15: #{gcn_block_forward.2} parent=11 // pred_region
        _
      $region16: #{gcn_block_forward.2} parent=11 // pred_fallthru
        _
      // Predicated region
      $region17: #{gcn_block_forward.2} parent=11 // pred_check
        %p511 = pneg %p199
      $region18: #{gcn_block_forward.2} parent=11 // pred_check_branch
        %513 = sbr.rel (%p511) target = $region20
      $region19: #{gcn_block_forward.2} parent=11 // pred_region
        _
      $region20: #{gcn_block_forward.2} parent=11 // pred_fallthru
        _
      // Predicated region
      $region21: #{gcn_block_forward.2} parent=11 // pred_check
        %p514 = pneg %p220
      $region22: #{gcn_block_forward.2} parent=11 // pred_check_branch
        %516 = sbr.rel (%p514) target = $region24
      $region23: #{gcn_block_forward.2} parent=11 // pred_region
        _
      $region24: #{gcn_block_forward.2} parent=11 // pred_fallthru
        _
      // Predicated region
      $region25: #{gcn_block_forward.2} parent=11 // pred_check
        %p517 = pneg %p241
      $region26: #{gcn_block_forward.2} parent=11 // pred_check_branch
        %519 = sbr.rel (%p517) target = $region28
      $region27: #{gcn_block_forward.2} parent=11 // pred_region
        _
      $region28: #{gcn_block_forward.2} parent=11 // pred_fallthru
        _
      // Predicated region
      $region29: #{gcn_block_forward.2} parent=11 // pred_check
        %p520 = pneg %p262
      $region30: #{gcn_block_forward.2} parent=11 // pred_check_branch
        %522 = sbr.rel (%p520) target = $region32
      $region31: #{gcn_block_forward.2} parent=11 // pred_region
        _
      $region32: #{gcn_block_forward.2} parent=11 // pred_fallthru
        _
      // Predicated region
      $region33: #{gcn_block_forward.2} parent=11 // pred_check
        %p523 = pneg %p283
      $region34: #{gcn_block_forward.2} parent=11 // pred_check_branch
        %525 = sbr.rel (%p523) target = $region36
      $region35: #{gcn_block_forward.2} parent=11 // pred_region
        _
      $region36: #{gcn_block_forward.2} parent=11 // pred_fallthru
        _
      // Predicated region
      $region37: #{gcn_block_forward.2} parent=11 // pred_check
        %p526 = pneg %p304
      $region38: #{gcn_block_forward.2} parent=11 // pred_check_branch
        %528 = sbr.rel (%p526) target = $region40
      $region39: #{gcn_block_forward.2} parent=11 // pred_region
        _
      $region40: #{gcn_block_forward.2} parent=11 // pred_fallthru
        _
      // Predicated region
      $region41: #{gcn_block_forward.2} parent=11 // pred_check
        %p529 = pneg %p325
      $region42: #{gcn_block_forward.2} parent=11 // pred_check_branch
        %531 = sbr.rel (%p529) target = $region44
      $region43: #{gcn_block_forward.2} parent=11 // pred_region
        _
      $region44: #{gcn_block_forward.2} parent=11 // pred_fallthru
        _
      // Predicated region
      $region45: #{gcn_block_forward.2} parent=11 // pred_check
        %p532 = pneg %p346
      $region46: #{gcn_block_forward.2} parent=11 // pred_check_branch
        %534 = sbr.rel (%p532) target = $region48
      $region47: #{gcn_block_forward.2} parent=11 // pred_region
        _
      $region48: #{gcn_block_forward.2} parent=11 // pred_fallthru
        _
      // Predicated region
      $region49: #{gcn_block_forward.2} parent=11 // pred_check
        %p535 = pneg %p367
      $region50: #{gcn_block_forward.2} parent=11 // pred_check_branch
        %537 = sbr.rel (%p535) target = $region52
      $region51: #{gcn_block_forward.2} parent=11 // pred_region
        _
      $region52: #{gcn_block_forward.2} parent=11 // pred_fallthru
        _
      // Predicated region
      $region53: #{gcn_block_forward.2} parent=11 // pred_check
        %p538 = pneg %p388
      $region54: #{gcn_block_forward.2} parent=11 // pred_check_branch
        %540 = sbr.rel (%p538) target = $region56
      $region55: #{gcn_block_forward.2} parent=11 // pred_region
        _
      $region56: #{gcn_block_forward.2} parent=11 // pred_fallthru
        _
      // Predicated region
      $region57: #{gcn_block_forward.2} parent=11 // pred_check
        %p541 = pneg %p409
      $region58: #{gcn_block_forward.2} parent=11 // pred_check_branch
        %543 = sbr.rel (%p541) target = $region60
      $region59: #{gcn_block_forward.2} parent=11 // pred_region
        _
      $region60: #{gcn_block_forward.2} parent=11 // pred_fallthru
        _
      // Predicated region
      $region61: #{gcn_block_forward.2} parent=11 // pred_check
        %p544 = pneg %p430
      $region62: #{gcn_block_forward.2} parent=11 // pred_check_branch
        %546 = sbr.rel (%p544) target = $region64
      $region63: #{gcn_block_forward.2} parent=11 // pred_region
        _
      $region64: #{gcn_block_forward.2} parent=11 // pred_fallthru
        _
      // Predicated region
      $region65: #{gcn_block_forward.2} parent=11 // pred_check
        %p547 = pneg %p451
      $region66: #{gcn_block_forward.2} parent=11 // pred_check_branch
        %549 = sbr.rel (%p547) target = $region68
      $region67: #{gcn_block_forward.2} parent=11 // pred_region
        _
      $region68: #{gcn_block_forward.2} parent=11 // pred_fallthru
        _
    $region12: #{gcn_block_forward.2} parent=5 // pred_fallthru
      _
    %p550 = scmp.lt.s32.totalorder %s27, 2
    // Predicated region
    $region69: #{gcn_block_forward.2} parent=5 // pred_check
      %p551 = pneg %p550
    $region70: #{gcn_block_forward.2} parent=5 // pred_check_branch
      %553 = sbr.rel (%p551) target = $region72
    $region71: #{gcn_block_forward.2} parent=5 // pred_region
      // Predicated region
      $region73: #{gcn_block_forward.2} parent=71 // pred_check
        %p554 = pneg %p47
      $region74: #{gcn_block_forward.2} parent=71 // pred_check_branch
        %556 = sbr.rel (%p554) target = $region76
      $region75: #{gcn_block_forward.2} parent=71 // pred_region
        %p557 = scmp.lt.s32.totalorder %s27, 1
        %s558 = scalar_select %p557, %s27, 1
        %s559 = scalar_lea.vmem %s0, %s558
      $region76: #{gcn_block_forward.2} parent=71 // pred_fallthru
        _
      // Predicated region
      $region77: #{gcn_block_forward.2} parent=71 // pred_check
        %p560 = pneg %p73
      $region78: #{gcn_block_forward.2} parent=71 // pred_check_branch
        %562 = sbr.rel (%p560) target = $region80
      $region79: #{gcn_block_forward.2} parent=71 // pred_region
        %p563 = scmp.lt.s32.totalorder %s27, 1
        %s564 = scalar_select %p563, %s27, 1
        %s565 = scalar_lea.vmem %s1, %s564
      $region80: #{gcn_block_forward.2} parent=71 // pred_fallthru
        _
      // Predicated region
      $region81: #{gcn_block_forward.2} parent=71 // pred_check
        %p566 = pneg %p99
      $region82: #{gcn_block_forward.2} parent=71 // pred_check_branch
        %568 = sbr.rel (%p566) target = $region84
      $region83: #{gcn_block_forward.2} parent=71 // pred_region
        %s569 = smul.u32 16, %s27
        %p570 = scmp.lt.s32.totalorder %s569, 31
        %s571 = scalar_select %p570, %s569, 31
        %s572 = smul.addr %s571, 8
        %s573 = scalar_lea.vmem %s2, %s572
        %s574 = smul.u32 16, %s27
      $region84: #{gcn_block_forward.2} parent=71 // pred_fallthru
        _
      // Predicated region
      $region85: #{gcn_block_forward.2} parent=71 // pred_check
        %p575 = pneg %p125
      $region86: #{gcn_block_forward.2} parent=71 // pred_check_branch
        %577 = sbr.rel (%p575) target = $region88
      $region87: #{gcn_block_forward.2} parent=71 // pred_region
        %s578 = smul.u32 16, %s27
        %p579 = scmp.lt.s32.totalorder %s578, 31
        %s580 = scalar_select %p579, %s578, 31
        %s581 = smul.addr %s580, 8
        %s582 = scalar_lea.vmem %s3, %s581
        %s583 = smul.u32 16, %s27
      $region88: #{gcn_block_forward.2} parent=71 // pred_fallthru
        _
      // Predicated region
      $region89: #{gcn_block_forward.2} parent=71 // pred_check
        %p584 = pneg %p151
      $region90: #{gcn_block_forward.2} parent=71 // pred_check_branch
        %586 = sbr.rel (%p584) target = $region92
      $region91: #{gcn_block_forward.2} parent=71 // pred_region
        %s587 = smul.u32 16, %s27
        %p588 = scmp.lt.s32.totalorder %s587, 31
        %s589 = scalar_select %p588, %s587, 31
        %s590 = smul.addr %s589, 4
        %s591 = scalar_lea.vmem %s4, %s590
        %s592 = smul.u32 16, %s27
      $region92: #{gcn_block_forward.2} parent=71 // pred_fallthru
        _
    $region72: #{gcn_block_forward.2} parent=5 // pred_fallthru
      _
    %p593 = scmp.le.s32.totalorder 1, %s27
    %p594 = scmp.lt.s32.totalorder %s27, 3
    %p595 = pnand %p593, %p594
    %p596 = pneg %p595
    // Predicated region
    $region93: #{gcn_block_forward.2} parent=5 // pred_check
      _
    $region94: #{gcn_block_forward.2} parent=5 // pred_check_branch
      %598 = sbr.rel (%p595) target = $region96
    $region95: #{gcn_block_forward.2} parent=5 // pred_region
      %s599 = ssub.s32 %s27, 1
      %p600 = scmp.lt.s32.totalorder %s32, 1
      %s601 = scalar_select %p600, %s32, 1
      %s602 = scalar_lea.vmem %s0, %s601
      %p603 = pneg %p53
      %p604 = pneg %p50
      %p605 = scmp.lt.s32.totalorder %s32, 1
      %s606 = scalar_select %p605, %s32, 1
      %s607 = scalar_lea.vmem %s1, %s606
      %p608 = pneg %p79
      %p609 = pneg %p76
      %s610 = smul.u32 16, %s32
      %p611 = scmp.lt.s32.totalorder %s610, 31
      %s612 = scalar_select %p611, %s610, 31
      %s613 = smul.addr %s612, 8
      %s614 = scalar_lea.vmem %s2, %s613
      %p615 = pneg %p105
      %p616 = pneg %p102
      %s617 = smul.u32 16, %s32
      %p618 = scmp.lt.s32.totalorder %s617, 31
      %s619 = scalar_select %p618, %s617, 31
      %s620 = smul.addr %s619, 8
      %s621 = scalar_lea.vmem %s3, %s620
      %p622 = pneg %p131
      %p623 = pneg %p128
      %s624 = smul.u32 16, %s32
      %p625 = scmp.lt.s32.totalorder %s624, 31
      %s626 = scalar_select %p625, %s624, 31
      %s627 = smul.addr %s626, 4
      %s628 = scalar_lea.vmem %s4, %s627
      %p629 = pneg %p157
      %p630 = pneg %p154
      %p631 = pneg %p178
      %p632 = pneg %p175
      %p633 = pneg %p199
      %p634 = pneg %p196
      %p635 = pneg %p220
      %p636 = pneg %p217
      %p637 = pneg %p241
      %p638 = pneg %p238
      %p639 = pneg %p262
      %p640 = pneg %p259
      %p641 = pneg %p283
      %p642 = pneg %p280
      %p643 = pneg %p304
      %p644 = pneg %p301
      %p645 = pneg %p325
      %p646 = pneg %p322
      %p647 = pneg %p346
      %p648 = pneg %p343
      %p649 = pneg %p367
      %p650 = pneg %p364
      %p651 = pneg %p388
      %p652 = pneg %p385
      %p653 = pneg %p409
      %p654 = pneg %p406
      %p655 = pneg %p430
      %p656 = pneg %p427
      %p657 = pneg %p451
      %p658 = pneg %p448
      %p659 = pneg %p472
      %p660 = pneg %p469
      %p661 = pneg %p493
      %p662 = pneg %p490
      %p663 = scmp.lt.s32.totalorder %s32, 1
      %s664 = scalar_select %p663, %s32, 1
      %s665 = scalar_lea.vmem %s0, %s664
      %p666 = scmp.lt.s32.totalorder %s32, 1
      %s667 = scalar_select %p666, %s32, 1
      %s668 = scalar_lea.vmem %s1, %s667
      %s669 = smul.u32 16, %s32
      %p670 = scmp.lt.s32.totalorder %s669, 31
      %s671 = scalar_select %p670, %s669, 31
      %s672 = smul.addr %s671, 8
      %s673 = scalar_lea.vmem %s2, %s672
      %s674 = smul.u32 16, %s32
      %s675 = smul.u32 16, %s32
      %p676 = scmp.lt.s32.totalorder %s675, 31
      %s677 = scalar_select %p676, %s675, 31
      %s678 = smul.addr %s677, 8
      %s679 = scalar_lea.vmem %s3, %s678
      %s680 = smul.u32 16, %s32
      %s681 = smul.u32 16, %s32
      %p682 = scmp.lt.s32.totalorder %s681, 31
      %s683 = scalar_select %p682, %s681, 31
      %s684 = smul.addr %s683, 4
      %s685 = scalar_lea.vmem %s4, %s684
      %s686 = smul.u32 16, %s32
      %p688 = scmp.eq.s32.totalorder %s32, 0
      // Predicated region
      $region97: #{gcn_block_forward.2} parent=95 // pred_check
        %p689 = pneg %p688
      $region98: #{gcn_block_forward.2} parent=95 // pred_check_branch
        %691 = sbr.rel (%p689) target = $region100
      $region99: #{gcn_block_forward.2} parent=95 // pred_region
        %692 = vst [vmem:[#allocation2] sm:$0xff] 0.0
        %693 = vst [vmem:[#allocation3] sm:$0xff] 0.0
        %694 = vst [vmem:[#allocation3 + $0x8] sm:$0xff] 0.0
        %vm695 = vcmask 7168
        %696 = vst.msk [vmem:[#allocation4] sm:$0xff] %vm695, 0.0
        %697 = vst.msk [vmem:[#allocation5] sm:$0xff] %vm695, 0.0
        %698 = vst.msk [vmem:[#allocation5 + $0x8] sm:$0xff] %vm695, 0.0
      $region100: #{gcn_block_forward.2} parent=95 // pred_fallthru
        _
      %v699 = vld [vmem:[%s685] sm:$0xf]
      %v700 = vld [vmem:[%s685 + $0x4] sm:$0xf]
      %v701 = vld [vmem:[%s685 + $0x8] sm:$0xf]
      %v702 = vld [vmem:[%s685 + $0xc] sm:$0xf]
      %v703 = vld [vmem:[%s685 + $0x10] sm:$0xf]
      %v704 = vld [vmem:[%s685 + $0x14] sm:$0xf]
      %v705 = vld [vmem:[%s685 + $0x18] sm:$0xf]
      %v706 = vld [vmem:[%s685 + $0x1c] sm:$0xf]
      %v707 = vld [vmem:[%s685 + $0x20] sm:$0xf]
      %v708 = vld [vmem:[%s685 + $0x24] sm:$0xf]
      %v709 = vld [vmem:[%s685 + $0x28] sm:$0xf]
      %v710 = vld [vmem:[%s685 + $0x2c] sm:$0xf]
      %v711 = vld [vmem:[%s685 + $0x30] sm:$0xf]
      %v712 = vld [vmem:[%s685 + $0x34] sm:$0xf]
      %v713 = vld [vmem:[%s685 + $0x38] sm:$0xf]
      %v714 = vld [vmem:[%s685 + $0x3c] sm:$0xf]
      %v715 = vld [vmem:[%s673] sm:$0xff]
      %v716 = vld [vmem:[%s673 + $0x8] sm:$0xff]
      %v717 = vld [vmem:[%s673 + $0x10] sm:$0xff]
      %v718 = vld [vmem:[%s673 + $0x18] sm:$0xff]
      %v719 = vld [vmem:[%s673 + $0x20] sm:$0xff]
      %v720 = vld [vmem:[%s673 + $0x28] sm:$0xff]
      %v721 = vld [vmem:[%s673 + $0x30] sm:$0xff]
      %v722 = vld [vmem:[%s673 + $0x38] sm:$0xff]
      %v723 = vld [vmem:[%s673 + $0x40] sm:$0xff]
      %v724 = vld [vmem:[%s673 + $0x48] sm:$0xff]
      %v725 = vld [vmem:[%s673 + $0x50] sm:$0xff]
      %v726 = vld [vmem:[%s673 + $0x58] sm:$0xff]
      %v727 = vld [vmem:[%s673 + $0x60] sm:$0xff]
      %v728 = vld [vmem:[%s673 + $0x68] sm:$0xff]
      %v729 = vld [vmem:[%s673 + $0x70] sm:$0xff]
      %v730 = vld [vmem:[%s673 + $0x78] sm:$0xff]
      %v731 = vld [vmem:[%s679] sm:$0xff]
      %v732 = vld [vmem:[%s679 + $0x8] sm:$0xff]
      %v733 = vld [vmem:[%s679 + $0x10] sm:$0xff]
      %v734 = vld [vmem:[%s679 + $0x18] sm:$0xff]
      %v735 = vld [vmem:[%s679 + $0x20] sm:$0xff]
      %v736 = vld [vmem:[%s679 + $0x28] sm:$0xff]
      %v737 = vld [vmem:[%s679 + $0x30] sm:$0xff]
      %v738 = vld [vmem:[%s679 + $0x38] sm:$0xff]
      %v739 = vld [vmem:[%s679 + $0x40] sm:$0xff]
      %v740 = vld [vmem:[%s679 + $0x48] sm:$0xff]
      %v741 = vld [vmem:[%s679 + $0x50] sm:$0xff]
      %v742 = vld [vmem:[%s679 + $0x58] sm:$0xff]
      %v743 = vld [vmem:[%s679 + $0x60] sm:$0xff]
      %v744 = vld [vmem:[%s679 + $0x68] sm:$0xff]
      %v745 = vld [vmem:[%s679 + $0x70] sm:$0xff]
      %v746 = vld [vmem:[%s679 + $0x78] sm:$0xff]
      %v747 = vld [vmem:[%s665] sm:$0x1]
      %v748 = vld [vmem:[%s668] sm:$0x1]
      %v749 = vlaneseq
      %v750 = vand.u32 %v749, 127
      %751 = vset.pattern.permute.xlu0 0
      %752 = vperm.xlu0 %751, %v731
      %v753 = vpop.permute.xlu0 %752
      %754 = vset.pattern.permute.xlu0 0
      %755 = vperm.xlu0 %754, %v732
      %v756 = vpop.permute.xlu0 %755
      %757 = vset.pattern.permute.xlu0 0
      %758 = vperm.xlu0 %757, %v733
      %v759 = vpop.permute.xlu0 %758
      %760 = vset.pattern.permute.xlu0 0
      %761 = vperm.xlu0 %760, %v734
      %v762 = vpop.permute.xlu0 %761
      %763 = vset.pattern.permute.xlu0 0
      %764 = vperm.xlu0 %763, %v735
      %v765 = vpop.permute.xlu0 %764
      %766 = vset.pattern.permute.xlu0 0
      %767 = vperm.xlu0 %766, %v736
      %v768 = vpop.permute.xlu0 %767
      %769 = vset.pattern.permute.xlu0 0
      %770 = vperm.xlu0 %769, %v737
      %v771 = vpop.permute.xlu0 %770
      %772 = vset.pattern.permute.xlu0 0
      %773 = vperm.xlu0 %772, %v738
      %v774 = vpop.permute.xlu0 %773
      %775 = vset.pattern.permute.xlu0 0
      %776 = vperm.xlu0 %775, %v739
      %v777 = vpop.permute.xlu0 %776
      %778 = vset.pattern.permute.xlu0 0
      %779 = vperm.xlu0 %778, %v740
      %v780 = vpop.permute.xlu0 %779
      %781 = vset.pattern.permute.xlu0 0
      %782 = vperm.xlu0 %781, %v741
      %v783 = vpop.permute.xlu0 %782
      %784 = vset.pattern.permute.xlu0 0
      %785 = vperm.xlu0 %784, %v742
      %v786 = vpop.permute.xlu0 %785
      %787 = vset.pattern.permute.xlu0 0
      %788 = vperm.xlu0 %787, %v743
      %v789 = vpop.permute.xlu0 %788
      %790 = vset.pattern.permute.xlu0 0
      %791 = vperm.xlu0 %790, %v744
      %v792 = vpop.permute.xlu0 %791
      %793 = vset.pattern.permute.xlu0 0
      %794 = vperm.xlu0 %793, %v745
      %v795 = vpop.permute.xlu0 %794
      %796 = vset.pattern.permute.xlu0 0
      %797 = vperm.xlu0 %796, %v746
      %v798 = vpop.permute.xlu0 %797
      %vm799 = vcmp.eq.s32.totalorder %v753, %v750
      %vm800 = vcmp.eq.s32.totalorder %v756, %v750
      %vm801 = vcmp.eq.s32.totalorder %v759, %v750
      %vm802 = vcmp.eq.s32.totalorder %v762, %v750
      %vm803 = vcmp.eq.s32.totalorder %v765, %v750
      %vm804 = vcmp.eq.s32.totalorder %v768, %v750
      %vm805 = vcmp.eq.s32.totalorder %v771, %v750
      %vm806 = vcmp.eq.s32.totalorder %v774, %v750
      %vm807 = vcmp.eq.s32.totalorder %v777, %v750
      %vm808 = vcmp.eq.s32.totalorder %v780, %v750
      %vm809 = vcmp.eq.s32.totalorder %v783, %v750
      %vm810 = vcmp.eq.s32.totalorder %v786, %v750
      %vm811 = vcmp.eq.s32.totalorder %v789, %v750
      %vm812 = vcmp.eq.s32.totalorder %v792, %v750
      %vm813 = vcmp.eq.s32.totalorder %v795, %v750
      %vm814 = vcmp.eq.s32.totalorder %v798, %v750
      %v815 = vsel %vm799, 1, 0
      %v816 = vsel %vm800, 1, 0
      %v817 = vsel %vm801, 1, 0
      %v818 = vsel %vm802, 1, 0
      %v819 = vsel %vm803, 1, 0
      %v820 = vsel %vm804, 1, 0
      %v821 = vsel %vm805, 1, 0
      %v822 = vsel %vm806, 1, 0
      %v823 = vsel %vm807, 1, 0
      %v824 = vsel %vm808, 1, 0
      %v825 = vsel %vm809, 1, 0
      %v826 = vsel %vm810, 1, 0
      %v827 = vsel %vm811, 1, 0
      %v828 = vsel %vm812, 1, 0
      %v829 = vsel %vm813, 1, 0
      %v830 = vsel %vm814, 1, 0
      %v831 = vcvt.s32.f32 %v815
      %v832 = vcvt.s32.f32 %v816
      %v833 = vcvt.s32.f32 %v817
      %v834 = vcvt.s32.f32 %v818
      %v835 = vcvt.s32.f32 %v819
      %v836 = vcvt.s32.f32 %v820
      %v837 = vcvt.s32.f32 %v821
      %v838 = vcvt.s32.f32 %v822
      %v839 = vcvt.s32.f32 %v823
      %v840 = vcvt.s32.f32 %v824
      %v841 = vcvt.s32.f32 %v825
      %v842 = vcvt.s32.f32 %v826
      %v843 = vcvt.s32.f32 %v827
      %v844 = vcvt.s32.f32 %v828
      %v845 = vcvt.s32.f32 %v829
      %v846 = vcvt.s32.f32 %v830
      %v847 = vpack.c.bf16 %v832, %v831
      %v848 = vpack.c.bf16 %v834, %v833
      %v849 = vpack.c.bf16 %v836, %v835
      %v850 = vpack.c.bf16 %v838, %v837
      %v851 = vpack.c.bf16 %v840, %v839
      %v852 = vpack.c.bf16 %v842, %v841
      %v853 = vpack.c.bf16 %v844, %v843
      %v854 = vpack.c.bf16 %v846, %v845
      %v855 = vld [vmem:[%s6] sm:$0xf]
      %v856 = vld [vmem:[%s6 + $0x4] sm:$0xf]
      %v859 = vunpack.c.l.b16 %v855
      %v860 = vunpack.c.l.b16 %v856
      %v861 = vpack.c.b16 %v860, %v859
      %vm863 = vcmask 130048
      %v865 = vsel %vm863, %v847, 0
      %v868 = vsel %vm863, %v848, 0
      %v871 = vsel %vm863, %v849, 0
      %v874 = vsel %vm863, %v850, 0
      %v877 = vsel %vm863, %v851, 0
      %v880 = vsel %vm863, %v852, 0
      %v883 = vsel %vm863, %v853, 0
      %v886 = vsel %vm863, %v854, 0
      %888 = vmatprep.subr.bf16.mxu0 0
      %889 = vmatpush1.bf16.msra.mxu0 0
      %890 = vmatprep.subr.bf16.mxu0 0
      %891 = vmatpush1.bf16.msra.mxu0 0
      %892 = vmatprep.subr.bf16.mxu0 0
      %893 = vmatpush1.bf16.msra.mxu0 0
      %894 = vmatprep.subr.bf16.mxu0 0
      %895 = vmatpush1.bf16.msra.mxu0 0
      %896 = vmatprep.subr.bf16.mxu0 0
      %897 = vmatpush1.bf16.msra.mxu0 0
      %898 = vmatprep.subr.bf16.mxu0 0
      %899 = vmatpush1.bf16.msra.mxu0 0
      %900 = vmatprep.subr.bf16.mxu0 0
      %901 = vmatpush1.bf16.msra.mxu0 0
      %902 = vmatprep.subr.bf16.mxu0 0
      %903 = vmatpush1.bf16.msra.mxu0 %v861
      %904 = vmatprep.subr.bf16.mxu0 0
      %905 = vmatpush2.bf16.msra.mxu0 0
      %906 = vmatprep.subr.bf16.mxu0 0
      %907 = vmatpush2.bf16.msra.mxu0 0
      %908 = vmatprep.subr.bf16.mxu0 0
      %909 = vmatpush2.bf16.msra.mxu0 0
      %910 = vmatprep.subr.bf16.mxu0 0
      %911 = vmatpush2.bf16.msra.mxu0 0
      %912 = vmatprep.subr.bf16.mxu0 0
      %913 = vmatpush2.bf16.msra.mxu0 0
      %914 = vmatprep.subr.bf16.mxu0 0
      %915 = vmatpush2.bf16.msra.mxu0 0
      %916 = vmatprep.subr.bf16.mxu0 0
      %917 = vmatpush2.bf16.msra.mxu0 0
      %918 = vmatprep.subr.bf16.mxu0 0
      %919 = vmatpush2.bf16.msra.mxu0 0
      %920 = vmatprep.mubr.bf16.mxu0 0
      %921 = vmatmul.mubr.bf16.gmra.mxu0 %v865
      %v922 = vpop.f32.mrf.mxu0
      %v923 = vadd.f32 0.0, %v922
      %v924 = vpop.f32.mrf.mxu0
      %v925 = vpop.f32.mrf.mxu0
      %v926 = vadd.f32 0.0, %v925
      %v927 = vpop.f32.mrf.mxu0
      %928 = vmatprep.mubr.bf16.mxu0 0
      %929 = vmatmul.mubr.bf16.gmra.mxu0 %v868
      %v930 = vpop.f32.mrf.mxu0
      %v931 = vadd.f32 0.0, %v930
      %v932 = vpop.f32.mrf.mxu0
      %v933 = vpop.f32.mrf.mxu0
      %v934 = vadd.f32 0.0, %v933
      %v935 = vpop.f32.mrf.mxu0
      %936 = vmatprep.mubr.bf16.mxu0 0
      %937 = vmatmul.mubr.bf16.gmra.mxu0 %v871
      %v938 = vpop.f32.mrf.mxu0
      %v939 = vadd.f32 0.0, %v938
      %v940 = vpop.f32.mrf.mxu0
      %v941 = vpop.f32.mrf.mxu0
      %v942 = vadd.f32 0.0, %v941
      %v943 = vpop.f32.mrf.mxu0
      %944 = vmatprep.mubr.bf16.mxu0 0
      %945 = vmatmul.mubr.bf16.gmra.mxu0 %v874
      %v946 = vpop.f32.mrf.mxu0
      %v947 = vadd.f32 0.0, %v946
      %v948 = vpop.f32.mrf.mxu0
      %v949 = vpop.f32.mrf.mxu0
      %v950 = vadd.f32 0.0, %v949
      %v951 = vpop.f32.mrf.mxu0
      %952 = vmatprep.mubr.bf16.mxu0 0
      %953 = vmatmul.mubr.bf16.gmra.mxu0 %v877
      %v954 = vpop.f32.mrf.mxu0
      %v955 = vadd.f32 0.0, %v954
      %v956 = vpop.f32.mrf.mxu0
      %v957 = vpop.f32.mrf.mxu0
      %v958 = vadd.f32 0.0, %v957
      %v959 = vpop.f32.mrf.mxu0
      %960 = vmatprep.mubr.bf16.mxu0 0
      %961 = vmatmul.mubr.bf16.gmra.mxu0 %v880
      %v962 = vpop.f32.mrf.mxu0
      %v963 = vadd.f32 0.0, %v962
      %v964 = vpop.f32.mrf.mxu0
      %v965 = vpop.f32.mrf.mxu0
      %v966 = vadd.f32 0.0, %v965
      %v967 = vpop.f32.mrf.mxu0
      %968 = vmatprep.mubr.bf16.mxu0 0
      %969 = vmatmul.mubr.bf16.gmra.mxu0 %v883
      %v970 = vpop.f32.mrf.mxu0
      %v971 = vadd.f32 0.0, %v970
      %v972 = vpop.f32.mrf.mxu0
      %v973 = vpop.f32.mrf.mxu0
      %v974 = vadd.f32 0.0, %v973
      %v975 = vpop.f32.mrf.mxu0
      %976 = vmatprep.mubr.bf16.mxu0 0
      %977 = vmatmul.mubr.bf16.gmra.mxu0 %v886
      %v978 = vpop.f32.mrf.mxu0
      %v979 = vadd.f32 0.0, %v978
      %v980 = vpop.f32.mrf.mxu0
      %v981 = vpop.f32.mrf.mxu0
      %v982 = vadd.f32 0.0, %v981
      %v983 = vpop.f32.mrf.mxu0
      %984 = vdwg.mxu0
      %v985 = vpack.c.bf16 %v926, %v923
      %v986 = vpack.c.bf16 %v934, %v931
      %v987 = vpack.c.bf16 %v942, %v939
      %v988 = vpack.c.bf16 %v950, %v947
      %v989 = vpack.c.bf16 %v958, %v955
      %v990 = vpack.c.bf16 %v966, %v963
      %v991 = vpack.c.bf16 %v974, %v971
      %v992 = vpack.c.bf16 %v982, %v979
      %v993 = vld [vmem:[%s7] sm:$0xf]
      %v994 = vld [vmem:[%s7 + $0x4] sm:$0xf]
      %v995 = vld [vmem:[%s7 + $0x8] sm:$0xf]
      %v996 = vld [vmem:[%s7 + $0xc] sm:$0xf]
      %v997 = vld [vmem:[%s7 + $0x10] sm:$0xf]
      %v998 = vld [vmem:[%s7 + $0x14] sm:$0xf]
      %v999 = vld [vmem:[%s7 + $0x18] sm:$0xf]
      %v1000 = vld [vmem:[%s7 + $0x1c] sm:$0xf]
      %v1001 = vld [vmem:[%s7 + $0x20] sm:$0xf]
      %v1002 = vld [vmem:[%s7 + $0x24] sm:$0xf]
      %v1003 = vld [vmem:[%s7 + $0x28] sm:$0xf]
      %v1004 = vld [vmem:[%s7 + $0x2c] sm:$0xf]
      %v1005 = vld [vmem:[%s7 + $0x30] sm:$0xf]
      %v1006 = vld [vmem:[%s7 + $0x34] sm:$0xf]
      %v1007 = vld [vmem:[%s7 + $0x38] sm:$0xf]
      %v1008 = vld [vmem:[%s7 + $0x3c] sm:$0xf]
      %v1009 = vld [vmem:[%s8] sm:$0xf]
      %v1010 = vld [vmem:[%s8 + $0x4] sm:$0xf]
      %v1011 = vld [vmem:[%s8 + $0x8] sm:$0xf]
      %v1012 = vld [vmem:[%s8 + $0xc] sm:$0xf]
      %v1013 = vld [vmem:[%s8 + $0x10] sm:$0xf]
      %v1014 = vld [vmem:[%s8 + $0x14] sm:$0xf]
      %v1015 = vld [vmem:[%s8 + $0x18] sm:$0xf]
      %v1016 = vld [vmem:[%s8 + $0x1c] sm:$0xf]
      %v1017 = vld [vmem:[%s8 + $0x20] sm:$0xf]
      %v1018 = vld [vmem:[%s8 + $0x24] sm:$0xf]
      %v1019 = vld [vmem:[%s8 + $0x28] sm:$0xf]
      %v1020 = vld [vmem:[%s8 + $0x2c] sm:$0xf]
      %v1021 = vld [vmem:[%s8 + $0x30] sm:$0xf]
      %v1022 = vld [vmem:[%s8 + $0x34] sm:$0xf]
      %v1023 = vld [vmem:[%s8 + $0x38] sm:$0xf]
      %v1024 = vld [vmem:[%s8 + $0x3c] sm:$0xf]
      %v1041 = vunpack.c.l.b16 %v699
      %v1042 = vunpack.c.l.b16 %v700
      %v1043 = vunpack.c.l.b16 %v701
      %v1044 = vunpack.c.l.b16 %v702
      %v1045 = vunpack.c.l.b16 %v703
      %v1046 = vunpack.c.l.b16 %v704
      %v1047 = vunpack.c.l.b16 %v705
      %v1048 = vunpack.c.l.b16 %v706
      %v1049 = vunpack.c.l.b16 %v707
      %v1050 = vunpack.c.l.b16 %v708
      %v1051 = vunpack.c.l.b16 %v709
      %v1052 = vunpack.c.l.b16 %v710
      %v1053 = vunpack.c.l.b16 %v711
      %v1054 = vunpack.c.l.b16 %v712
      %v1055 = vunpack.c.l.b16 %v713
      %v1056 = vunpack.c.l.b16 %v714
      %v1057 = vpack.c.b16 %v1042, %v1041
      %v1058 = vpack.c.b16 %v1044, %v1043
      %v1059 = vpack.c.b16 %v1046, %v1045
      %v1060 = vpack.c.b16 %v1048, %v1047
      %v1061 = vpack.c.b16 %v1050, %v1049
      %v1062 = vpack.c.b16 %v1052, %v1051
      %v1063 = vpack.c.b16 %v1054, %v1053
      %v1064 = vpack.c.b16 %v1056, %v1055
      %v1089 = vunpack.c.l.b16 %v1009
      %v1090 = vunpack.c.l.b16 %v1010
      %v1091 = vunpack.c.l.b16 %v1011
      %v1092 = vunpack.c.l.b16 %v1012
      %v1093 = vunpack.c.l.b16 %v1013
      %v1094 = vunpack.c.l.b16 %v1014
      %v1095 = vunpack.c.l.b16 %v1015
      %v1096 = vunpack.c.l.b16 %v1016
      %v1097 = vunpack.c.l.b16 %v1017
      %v1098 = vunpack.c.l.b16 %v1018
      %v1099 = vunpack.c.l.b16 %v1019
      %v1100 = vunpack.c.l.b16 %v1020
      %v1101 = vunpack.c.l.b16 %v1021
      %v1102 = vunpack.c.l.b16 %v1022
      %v1103 = vunpack.c.l.b16 %v1023
      %v1104 = vunpack.c.l.b16 %v1024
      %v1105 = vpack.c.b16 %v1090, %v1089
      %v1106 = vpack.c.b16 %v1092, %v1091
      %v1107 = vpack.c.b16 %v1094, %v1093
      %v1108 = vpack.c.b16 %v1096, %v1095
      %v1109 = vpack.c.b16 %v1098, %v1097
      %v1110 = vpack.c.b16 %v1100, %v1099
      %v1111 = vpack.c.b16 %v1102, %v1101
      %v1112 = vpack.c.b16 %v1104, %v1103
      %1121 = vmatprep.subr.bf16.mxu0 0
      %1122 = vmatpush1.bf16.msra.mxu0 %v1112
      %1123 = vmatprep.subr.bf16.mxu0 0
      %1124 = vmatpush1.bf16.msra.mxu0 %v1111
      %1125 = vmatprep.subr.bf16.mxu0 0
      %1126 = vmatpush1.bf16.msra.mxu0 %v1110
      %1127 = vmatprep.subr.bf16.mxu0 0
      %1128 = vmatpush1.bf16.msra.mxu0 %v1109
      %1129 = vmatprep.subr.bf16.mxu0 0
      %1130 = vmatpush1.bf16.msra.mxu0 %v1108
      %1131 = vmatprep.subr.bf16.mxu0 0
      %1132 = vmatpush1.bf16.msra.mxu0 %v1107
      %1133 = vmatprep.subr.bf16.mxu0 0
      %1134 = vmatpush1.bf16.msra.mxu0 %v1106
      %1135 = vmatprep.subr.bf16.mxu0 0
      %1136 = vmatpush1.bf16.msra.mxu0 %v1105
      %1137 = vmatprep.subr.bf16.mxu0 0
      %1138 = vmatpush2.bf16.msra.mxu0 0
      %1139 = vmatprep.subr.bf16.mxu0 0
      %1140 = vmatpush2.bf16.msra.mxu0 0
      %1141 = vmatprep.subr.bf16.mxu0 0
      %1142 = vmatpush2.bf16.msra.mxu0 0
      %1143 = vmatprep.subr.bf16.mxu0 0
      %1144 = vmatpush2.bf16.msra.mxu0 0
      %1145 = vmatprep.subr.bf16.mxu0 0
      %1146 = vmatpush2.bf16.msra.mxu0 0
      %1147 = vmatprep.subr.bf16.mxu0 0
      %1148 = vmatpush2.bf16.msra.mxu0 0
      %1149 = vmatprep.subr.bf16.mxu0 0
      %1150 = vmatpush2.bf16.msra.mxu0 0
      %1151 = vmatprep.subr.bf16.mxu0 0
      %1152 = vmatpush2.bf16.msra.mxu0 0
      %1153 = vmatprep.mubr.bf16.mxu0 0
      %1154 = vmatmul.mubr.bf16.gmra.mxu0 %v1057
      %v1155 = vpop.f32.mrf.mxu0
      %v1156 = vadd.f32 0.0, %v1155
      %v1157 = vpop.f32.mrf.mxu0
      %v1158 = vpop.f32.mrf.mxu0
      %v1159 = vadd.f32 0.0, %v1158
      %v1160 = vpop.f32.mrf.mxu0
      %1161 = vmatprep.mubr.bf16.mxu0 0
      %1162 = vmatmul.mubr.bf16.gmra.mxu0 %v1058
      %v1163 = vpop.f32.mrf.mxu0
      %v1164 = vadd.f32 0.0, %v1163
      %v1165 = vpop.f32.mrf.mxu0
      %v1166 = vpop.f32.mrf.mxu0
      %v1167 = vadd.f32 0.0, %v1166
      %v1168 = vpop.f32.mrf.mxu0
      %1169 = vmatprep.mubr.bf16.mxu0 0
      %1170 = vmatmul.mubr.bf16.gmra.mxu0 %v1059
      %v1171 = vpop.f32.mrf.mxu0
      %v1172 = vadd.f32 0.0, %v1171
      %v1173 = vpop.f32.mrf.mxu0
      %v1174 = vpop.f32.mrf.mxu0
      %v1175 = vadd.f32 0.0, %v1174
      %v1176 = vpop.f32.mrf.mxu0
      %1177 = vmatprep.mubr.bf16.mxu0 0
      %1178 = vmatmul.mubr.bf16.gmra.mxu0 %v1060
      %v1179 = vpop.f32.mrf.mxu0
      %v1180 = vadd.f32 0.0, %v1179
      %v1181 = vpop.f32.mrf.mxu0
      %v1182 = vpop.f32.mrf.mxu0
      %v1183 = vadd.f32 0.0, %v1182
      %v1184 = vpop.f32.mrf.mxu0
      %1185 = vmatprep.mubr.bf16.mxu0 0
      %1186 = vmatmul.mubr.bf16.gmra.mxu0 %v1061
      %v1187 = vpop.f32.mrf.mxu0
      %v1188 = vadd.f32 0.0, %v1187
      %v1189 = vpop.f32.mrf.mxu0
      %v1190 = vpop.f32.mrf.mxu0
      %v1191 = vadd.f32 0.0, %v1190
      %v1192 = vpop.f32.mrf.mxu0
      %1193 = vmatprep.mubr.bf16.mxu0 0
      %1194 = vmatmul.mubr.bf16.gmra.mxu0 %v1062
      %v1195 = vpop.f32.mrf.mxu0
      %v1196 = vadd.f32 0.0, %v1195
      %v1197 = vpop.f32.mrf.mxu0
      %v1198 = vpop.f32.mrf.mxu0
      %v1199 = vadd.f32 0.0, %v1198
      %v1200 = vpop.f32.mrf.mxu0
      %1201 = vmatprep.mubr.bf16.mxu0 0
      %1202 = vmatmul.mubr.bf16.gmra.mxu0 %v1063
      %v1203 = vpop.f32.mrf.mxu0
      %v1204 = vadd.f32 0.0, %v1203
      %v1205 = vpop.f32.mrf.mxu0
      %v1206 = vpop.f32.mrf.mxu0
      %v1207 = vadd.f32 0.0, %v1206
      %v1208 = vpop.f32.mrf.mxu0
      %1209 = vmatprep.mubr.bf16.mxu0 0
      %1210 = vmatmul.mubr.bf16.gmra.mxu0 %v1064
      %v1211 = vpop.f32.mrf.mxu0
      %v1212 = vadd.f32 0.0, %v1211
      %v1213 = vpop.f32.mrf.mxu0
      %v1214 = vpop.f32.mrf.mxu0
      %v1215 = vadd.f32 0.0, %v1214
      %v1216 = vpop.f32.mrf.mxu0
      %1217 = vdwg.mxu0
      %v1234 = vunpack.c.l.b16 %v993
      %v1235 = vunpack.c.l.b16 %v994
      %v1236 = vunpack.c.l.b16 %v995
      %v1237 = vunpack.c.l.b16 %v996
      %v1238 = vunpack.c.l.b16 %v997
      %v1239 = vunpack.c.l.b16 %v998
      %v1240 = vunpack.c.l.b16 %v999
      %v1241 = vunpack.c.l.b16 %v1000
      %v1242 = vunpack.c.l.b16 %v1001
      %v1243 = vunpack.c.l.b16 %v1002
      %v1244 = vunpack.c.l.b16 %v1003
      %v1245 = vunpack.c.l.b16 %v1004
      %v1246 = vunpack.c.l.b16 %v1005
      %v1247 = vunpack.c.l.b16 %v1006
      %v1248 = vunpack.c.l.b16 %v1007
      %v1249 = vunpack.c.l.b16 %v1008
      %v1250 = vpack.c.b16 %v1235, %v1234
      %v1251 = vpack.c.b16 %v1237, %v1236
      %v1252 = vpack.c.b16 %v1239, %v1238
      %v1253 = vpack.c.b16 %v1241, %v1240
      %v1254 = vpack.c.b16 %v1243, %v1242
      %v1255 = vpack.c.b16 %v1245, %v1244
      %v1256 = vpack.c.b16 %v1247, %v1246
      %v1257 = vpack.c.b16 %v1249, %v1248
      %1266 = vmatprep.subr.bf16.mxu0 0
      %1267 = vmatpush1.bf16.msra.mxu0 %v1257
      %1268 = vmatprep.subr.bf16.mxu0 0
      %1269 = vmatpush1.bf16.msra.mxu0 %v1256
      %1270 = vmatprep.subr.bf16.mxu0 0
      %1271 = vmatpush1.bf16.msra.mxu0 %v1255
      %1272 = vmatprep.subr.bf16.mxu0 0
      %1273 = vmatpush1.bf16.msra.mxu0 %v1254
      %1274 = vmatprep.subr.bf16.mxu0 0
      %1275 = vmatpush1.bf16.msra.mxu0 %v1253
      %1276 = vmatprep.subr.bf16.mxu0 0
      %1277 = vmatpush1.bf16.msra.mxu0 %v1252
      %1278 = vmatprep.subr.bf16.mxu0 0
      %1279 = vmatpush1.bf16.msra.mxu0 %v1251
      %1280 = vmatprep.subr.bf16.mxu0 0
      %1281 = vmatpush1.bf16.msra.mxu0 %v1250
      %1282 = vmatprep.subr.bf16.mxu0 0
      %1283 = vmatpush2.bf16.msra.mxu0 0
      %1284 = vmatprep.subr.bf16.mxu0 0
      %1285 = vmatpush2.bf16.msra.mxu0 0
      %1286 = vmatprep.subr.bf16.mxu0 0
      %1287 = vmatpush2.bf16.msra.mxu0 0
      %1288 = vmatprep.subr.bf16.mxu0 0
      %1289 = vmatpush2.bf16.msra.mxu0 0
      %1290 = vmatprep.subr.bf16.mxu0 0
      %1291 = vmatpush2.bf16.msra.mxu0 0
      %1292 = vmatprep.subr.bf16.mxu0 0
      %1293 = vmatpush2.bf16.msra.mxu0 0
      %1294 = vmatprep.subr.bf16.mxu0 0
      %1295 = vmatpush2.bf16.msra.mxu0 0
      %1296 = vmatprep.subr.bf16.mxu0 0
      %1297 = vmatpush2.bf16.msra.mxu0 0
      %1298 = vmatprep.mubr.bf16.mxu0 0
      %1299 = vmatmul.mubr.bf16.gmra.mxu0 %v985
      %v1300 = vpop.f32.mrf.mxu0
      %v1301 = vadd.f32 %v1156, %v1300
      %v1302 = vpop.f32.mrf.mxu0
      %v1303 = vpop.f32.mrf.mxu0
      %v1304 = vadd.f32 %v1159, %v1303
      %v1305 = vpop.f32.mrf.mxu0
      %1306 = vmatprep.mubr.bf16.mxu0 0
      %1307 = vmatmul.mubr.bf16.gmra.mxu0 %v986
      %v1308 = vpop.f32.mrf.mxu0
      %v1309 = vadd.f32 %v1164, %v1308
      %v1310 = vpop.f32.mrf.mxu0
      %v1311 = vpop.f32.mrf.mxu0
      %v1312 = vadd.f32 %v1167, %v1311
      %v1313 = vpop.f32.mrf.mxu0
      %1314 = vmatprep.mubr.bf16.mxu0 0
      %1315 = vmatmul.mubr.bf16.gmra.mxu0 %v987
      %v1316 = vpop.f32.mrf.mxu0
      %v1317 = vadd.f32 %v1172, %v1316
      %v1318 = vpop.f32.mrf.mxu0
      %v1319 = vpop.f32.mrf.mxu0
      %v1320 = vadd.f32 %v1175, %v1319
      %v1321 = vpop.f32.mrf.mxu0
      %1322 = vmatprep.mubr.bf16.mxu0 0
      %1323 = vmatmul.mubr.bf16.gmra.mxu0 %v988
      %v1324 = vpop.f32.mrf.mxu0
      %v1325 = vadd.f32 %v1180, %v1324
      %v1326 = vpop.f32.mrf.mxu0
      %v1327 = vpop.f32.mrf.mxu0
      %v1328 = vadd.f32 %v1183, %v1327
      %v1329 = vpop.f32.mrf.mxu0
      %1330 = vmatprep.mubr.bf16.mxu0 0
      %1331 = vmatmul.mubr.bf16.gmra.mxu0 %v989
      %v1332 = vpop.f32.mrf.mxu0
      %v1333 = vadd.f32 %v1188, %v1332
      %v1334 = vpop.f32.mrf.mxu0
      %v1335 = vpop.f32.mrf.mxu0
      %v1336 = vadd.f32 %v1191, %v1335
      %v1337 = vpop.f32.mrf.mxu0
      %1338 = vmatprep.mubr.bf16.mxu0 0
      %1339 = vmatmul.mubr.bf16.gmra.mxu0 %v990
      %v1340 = vpop.f32.mrf.mxu0
      %v1341 = vadd.f32 %v1196, %v1340
      %v1342 = vpop.f32.mrf.mxu0
      %v1343 = vpop.f32.mrf.mxu0
      %v1344 = vadd.f32 %v1199, %v1343
      %v1345 = vpop.f32.mrf.mxu0
      %1346 = vmatprep.mubr.bf16.mxu0 0
      %1347 = vmatmul.mubr.bf16.gmra.mxu0 %v991
      %v1348 = vpop.f32.mrf.mxu0
      %v1349 = vadd.f32 %v1204, %v1348
      %v1350 = vpop.f32.mrf.mxu0
      %v1351 = vpop.f32.mrf.mxu0
      %v1352 = vadd.f32 %v1207, %v1351
      %v1353 = vpop.f32.mrf.mxu0
      %1354 = vmatprep.mubr.bf16.mxu0 0
      %1355 = vmatmul.mubr.bf16.gmra.mxu0 %v992
      %v1356 = vpop.f32.mrf.mxu0
      %v1357 = vadd.f32 %v1212, %v1356
      %v1358 = vpop.f32.mrf.mxu0
      %v1359 = vpop.f32.mrf.mxu0
      %v1360 = vadd.f32 %v1215, %v1359
      %v1361 = vpop.f32.mrf.mxu0
      %1362 = vdwg.mxu0
      %v1363 = vld [vmem:[%s9] sm:$0x1]
      %v1365 = vlaneseq
      %v1366 = vshrl.u32 %v1365, 7
      %v1367 = vsub.s32 0, %v1366
      %v1368 = vrot.slane %v1363, %v1367
      %v1370 = vadd.f32 %v1301, %v1368
      %v1371 = vadd.f32 %v1304, %v1368
      %v1372 = vadd.f32 %v1309, %v1368
      %v1373 = vadd.f32 %v1312, %v1368
      %v1374 = vadd.f32 %v1317, %v1368
      %v1375 = vadd.f32 %v1320, %v1368
      %v1376 = vadd.f32 %v1325, %v1368
      %v1377 = vadd.f32 %v1328, %v1368
      %v1378 = vadd.f32 %v1333, %v1368
      %v1379 = vadd.f32 %v1336, %v1368
      %v1380 = vadd.f32 %v1341, %v1368
      %v1381 = vadd.f32 %v1344, %v1368
      %v1382 = vadd.f32 %v1349, %v1368
      %v1383 = vadd.f32 %v1352, %v1368
      %v1384 = vadd.f32 %v1357, %v1368
      %v1385 = vadd.f32 %v1360, %v1368
      %vm1386 = vcmp.gt.f32.partialorder %v1370, 0.0
      %vm1387 = vcmp.gt.f32.partialorder %v1371, 0.0
      %vm1388 = vcmp.gt.f32.partialorder %v1372, 0.0
      %vm1389 = vcmp.gt.f32.partialorder %v1373, 0.0
      %vm1390 = vcmp.gt.f32.partialorder %v1374, 0.0
      %vm1391 = vcmp.gt.f32.partialorder %v1375, 0.0
      %vm1392 = vcmp.gt.f32.partialorder %v1376, 0.0
      %vm1393 = vcmp.gt.f32.partialorder %v1377, 0.0
      %vm1394 = vcmp.gt.f32.partialorder %v1378, 0.0
      %vm1395 = vcmp.gt.f32.partialorder %v1379, 0.0
      %vm1396 = vcmp.gt.f32.partialorder %v1380, 0.0
      %vm1397 = vcmp.gt.f32.partialorder %v1381, 0.0
      %vm1398 = vcmp.gt.f32.partialorder %v1382, 0.0
      %vm1399 = vcmp.gt.f32.partialorder %v1383, 0.0
      %vm1400 = vcmp.gt.f32.partialorder %v1384, 0.0
      %vm1401 = vcmp.gt.f32.partialorder %v1385, 0.0
      %v1402 = vmul.f32 %v1370, 0.01
      %v1403 = vmul.f32 %v1371, 0.01
      %v1404 = vmul.f32 %v1372, 0.01
      %v1405 = vmul.f32 %v1373, 0.01
      %v1406 = vmul.f32 %v1374, 0.01
      %v1407 = vmul.f32 %v1375, 0.01
      %v1408 = vmul.f32 %v1376, 0.01
      %v1409 = vmul.f32 %v1377, 0.01
      %v1410 = vmul.f32 %v1378, 0.01
      %v1411 = vmul.f32 %v1379, 0.01
      %v1412 = vmul.f32 %v1380, 0.01
      %v1413 = vmul.f32 %v1381, 0.01
      %v1414 = vmul.f32 %v1382, 0.01
      %v1415 = vmul.f32 %v1383, 0.01
      %v1416 = vmul.f32 %v1384, 0.01
      %v1417 = vmul.f32 %v1385, 0.01
      %v1418 = vsel %vm1386, %v1370, %v1402
      %v1419 = vsel %vm1387, %v1371, %v1403
      %v1420 = vsel %vm1388, %v1372, %v1404
      %v1421 = vsel %vm1389, %v1373, %v1405
      %v1422 = vsel %vm1390, %v1374, %v1406
      %v1423 = vsel %vm1391, %v1375, %v1407
      %v1424 = vsel %vm1392, %v1376, %v1408
      %v1425 = vsel %vm1393, %v1377, %v1409
      %v1426 = vsel %vm1394, %v1378, %v1410
      %v1427 = vsel %vm1395, %v1379, %v1411
      %v1428 = vsel %vm1396, %v1380, %v1412
      %v1429 = vsel %vm1397, %v1381, %v1413
      %v1430 = vsel %vm1398, %v1382, %v1414
      %v1431 = vsel %vm1399, %v1383, %v1415
      %v1432 = vsel %vm1400, %v1384, %v1416
      %v1433 = vsel %vm1401, %v1385, %v1417
      %v1434 = vlaneseq
      %v1435 = vshrl.u32 %v1434, 7
      %v1436 = vlaneseq
      %v1437 = vshrl.u32 %v1436, 7
      %v1438 = vsub.s32 0, %v1437
      %v1439 = vrot.slane %v747, %v1438
      %vm1440 = vcmp.eq.s32.totalorder %v1439, %v1435
      %v1441 = vld [vmem:[#allocation2] sm:$0xff]
      %v1442 = vsel %vm1440, 1, 0
      %v1443 = vcvt.s32.f32 %v1442
      %v1444 = vpack.c.bf16 %v1443, %v1443
      %v1445 = vpack.c.bf16 %v1419, %v1418
      %v1446 = vpack.c.bf16 %v1421, %v1420
      %v1447 = vpack.c.bf16 %v1423, %v1422
      %v1448 = vpack.c.bf16 %v1425, %v1424
      %v1449 = vpack.c.bf16 %v1427, %v1426
      %v1450 = vpack.c.bf16 %v1429, %v1428
      %v1451 = vpack.c.bf16 %v1431, %v1430
      %v1452 = vpack.c.bf16 %v1433, %v1432
      %1453 = vmatprep.subr.bf16.mxu0 0
      %1454 = vmatpush1.bf16.msra.mxu0 %v1452
      %1455 = vmatprep.subr.bf16.mxu0 0
      %1456 = vmatpush1.bf16.msra.mxu0 %v1451
      %1457 = vmatprep.subr.bf16.mxu0 0
      %1458 = vmatpush1.bf16.msra.mxu0 %v1450
      %1459 = vmatprep.subr.bf16.mxu0 0
      %1460 = vmatpush1.bf16.msra.mxu0 %v1449
      %1461 = vmatprep.subr.bf16.mxu0 0
      %1462 = vmatpush1.bf16.msra.mxu0 %v1448
      %1463 = vmatprep.subr.bf16.mxu0 0
      %1464 = vmatpush1.bf16.msra.mxu0 %v1447
      %1465 = vmatprep.subr.bf16.mxu0 0
      %1466 = vmatpush1.bf16.msra.mxu0 %v1446
      %1467 = vmatprep.subr.bf16.mxu0 0
      %1468 = vmatpush1.bf16.msra.mxu0 %v1445
      %1469 = vmatprep.subr.bf16.mxu0 0
      %1470 = vmatpush2.bf16.msra.mxu0 0
      %1471 = vmatprep.subr.bf16.mxu0 0
      %1472 = vmatpush2.bf16.msra.mxu0 0
      %1473 = vmatprep.subr.bf16.mxu0 0
      %1474 = vmatpush2.bf16.msra.mxu0 0
      %1475 = vmatprep.subr.bf16.mxu0 0
      %1476 = vmatpush2.bf16.msra.mxu0 0
      %1477 = vmatprep.subr.bf16.mxu0 0
      %1478 = vmatpush2.bf16.msra.mxu0 0
      %1479 = vmatprep.subr.bf16.mxu0 0
      %1480 = vmatpush2.bf16.msra.mxu0 0
      %1481 = vmatprep.subr.bf16.mxu0 0
      %1482 = vmatpush2.bf16.msra.mxu0 0
      %1483 = vmatprep.subr.bf16.mxu0 0
      %1484 = vmatpush2.bf16.msra.mxu0 0
      %1485 = vmatprep.mubr.bf16.mxu0 0
      %1486 = vmatmul.mubr.bf16.gmra.mxu0 %v1444
      %v1487 = vpop.f32.mrf.mxu0
      %v1488 = vadd.f32 0.0, %v1487
      %v1489 = vpop.f32.mrf.mxu0
      %v1490 = vpop.f32.mrf.mxu0
      %v1491 = vpop.f32.mrf.mxu0
      %1492 = vdwg.mxu0
      %v1493 = vadd.f32 %v1441, %v1488
      %1494 = vst [vmem:[#allocation2] sm:$0xff] %v1493
      %v1495 = vld [vmem:[#allocation4] sm:$0xff]
      %1496 = vadd.xlane.f32.xlu0 %v1443
      %v1497 = vpop.xlane.xlu0 %1496
      %v1498 = vadd.f32 %v1495, %v1497
      %vm1499 = vcmask 7168
      %1500 = vst.msk [vmem:[#allocation4] sm:$0xff] %vm1499, %v1498
      %1501 = vset.pattern.permute.xlu0 0
      %1502 = vperm.xlu0 %1501, %v715
      %v1503 = vpop.permute.xlu0 %1502
      %1504 = vset.pattern.permute.xlu0 0
      %1505 = vperm.xlu0 %1504, %v716
      %v1506 = vpop.permute.xlu0 %1505
      %1507 = vset.pattern.permute.xlu0 0
      %1508 = vperm.xlu0 %1507, %v717
      %v1509 = vpop.permute.xlu0 %1508
      %1510 = vset.pattern.permute.xlu0 0
      %1511 = vperm.xlu0 %1510, %v718
      %v1512 = vpop.permute.xlu0 %1511
      %1513 = vset.pattern.permute.xlu0 0
      %1514 = vperm.xlu0 %1513, %v719
      %v1515 = vpop.permute.xlu0 %1514
      %1516 = vset.pattern.permute.xlu0 0
      %1517 = vperm.xlu0 %1516, %v720
      %v1518 = vpop.permute.xlu0 %1517
      %1519 = vset.pattern.permute.xlu0 0
      %1520 = vperm.xlu0 %1519, %v721
      %v1521 = vpop.permute.xlu0 %1520
      %1522 = vset.pattern.permute.xlu0 0
      %1523 = vperm.xlu0 %1522, %v722
      %v1524 = vpop.permute.xlu0 %1523
      %1525 = vset.pattern.permute.xlu0 0
      %1526 = vperm.xlu0 %1525, %v723
      %v1527 = vpop.permute.xlu0 %1526
      %1528 = vset.pattern.permute.xlu0 0
      %1529 = vperm.xlu0 %1528, %v724
      %v1530 = vpop.permute.xlu0 %1529
      %1531 = vset.pattern.permute.xlu0 0
      %1532 = vperm.xlu0 %1531, %v725
      %v1533 = vpop.permute.xlu0 %1532
      %1534 = vset.pattern.permute.xlu0 0
      %1535 = vperm.xlu0 %1534, %v726
      %v1536 = vpop.permute.xlu0 %1535
      %1537 = vset.pattern.permute.xlu0 0
      %1538 = vperm.xlu0 %1537, %v727
      %v1539 = vpop.permute.xlu0 %1538
      %1540 = vset.pattern.permute.xlu0 0
      %1541 = vperm.xlu0 %1540, %v728
      %v1542 = vpop.permute.xlu0 %1541
      %1543 = vset.pattern.permute.xlu0 0
      %1544 = vperm.xlu0 %1543, %v729
      %v1545 = vpop.permute.xlu0 %1544
      %1546 = vset.pattern.permute.xlu0 0
      %1547 = vperm.xlu0 %1546, %v730
      %v1548 = vpop.permute.xlu0 %1547
      %vm1549 = vcmp.eq.s32.totalorder %v1503, %v750
      %vm1550 = vcmp.eq.s32.totalorder %v1506, %v750
      %vm1551 = vcmp.eq.s32.totalorder %v1509, %v750
      %vm1552 = vcmp.eq.s32.totalorder %v1512, %v750
      %vm1553 = vcmp.eq.s32.totalorder %v1515, %v750
      %vm1554 = vcmp.eq.s32.totalorder %v1518, %v750
      %vm1555 = vcmp.eq.s32.totalorder %v1521, %v750
      %vm1556 = vcmp.eq.s32.totalorder %v1524, %v750
      %vm1557 = vcmp.eq.s32.totalorder %v1527, %v750
      %vm1558 = vcmp.eq.s32.totalorder %v1530, %v750
      %vm1559 = vcmp.eq.s32.totalorder %v1533, %v750
      %vm1560 = vcmp.eq.s32.totalorder %v1536, %v750
      %vm1561 = vcmp.eq.s32.totalorder %v1539, %v750
      %vm1562 = vcmp.eq.s32.totalorder %v1542, %v750
      %vm1563 = vcmp.eq.s32.totalorder %v1545, %v750
      %vm1564 = vcmp.eq.s32.totalorder %v1548, %v750
      %v1565 = vsel %vm1549, 1, 0
      %v1566 = vsel %vm1550, 1, 0
      %v1567 = vsel %vm1551, 1, 0
      %v1568 = vsel %vm1552, 1, 0
      %v1569 = vsel %vm1553, 1, 0
      %v1570 = vsel %vm1554, 1, 0
      %v1571 = vsel %vm1555, 1, 0
      %v1572 = vsel %vm1556, 1, 0
      %v1573 = vsel %vm1557, 1, 0
      %v1574 = vsel %vm1558, 1, 0
      %v1575 = vsel %vm1559, 1, 0
      %v1576 = vsel %vm1560, 1, 0
      %v1577 = vsel %vm1561, 1, 0
      %v1578 = vsel %vm1562, 1, 0
      %v1579 = vsel %vm1563, 1, 0
      %v1580 = vsel %vm1564, 1, 0
      %v1581 = vcvt.s32.f32 %v1565
      %v1582 = vcvt.s32.f32 %v1566
      %v1583 = vcvt.s32.f32 %v1567
      %v1584 = vcvt.s32.f32 %v1568
      %v1585 = vcvt.s32.f32 %v1569
      %v1586 = vcvt.s32.f32 %v1570
      %v1587 = vcvt.s32.f32 %v1571
      %v1588 = vcvt.s32.f32 %v1572
      %v1589 = vcvt.s32.f32 %v1573
      %v1590 = vcvt.s32.f32 %v1574
      %v1591 = vcvt.s32.f32 %v1575
      %v1592 = vcvt.s32.f32 %v1576
      %v1593 = vcvt.s32.f32 %v1577
      %v1594 = vcvt.s32.f32 %v1578
      %v1595 = vcvt.s32.f32 %v1579
      %v1596 = vcvt.s32.f32 %v1580
      %v1597 = vpack.c.bf16 %v1582, %v1581
      %v1598 = vpack.c.bf16 %v1584, %v1583
      %v1599 = vpack.c.bf16 %v1586, %v1585
      %v1600 = vpack.c.bf16 %v1588, %v1587
      %v1601 = vpack.c.bf16 %v1590, %v1589
      %v1602 = vpack.c.bf16 %v1592, %v1591
      %v1603 = vpack.c.bf16 %v1594, %v1593
      %v1604 = vpack.c.bf16 %v1596, %v1595
      %v1605 = vld [vmem:[%s5] sm:$0xf]
      %vm1606 = vcmask 64512
      %v1608 = vsel %vm1606, %v1597, 0
      %v1611 = vsel %vm1606, %v1598, 0
      %v1614 = vsel %vm1606, %v1599, 0
      %v1617 = vsel %vm1606, %v1600, 0
      %v1620 = vsel %vm1606, %v1601, 0
      %v1623 = vsel %vm1606, %v1602, 0
      %v1626 = vsel %vm1606, %v1603, 0
      %v1629 = vsel %vm1606, %v1604, 0
      %vm1631 = vcmask 1043456
      %v1633 = vsel %vm1631, %v1605, 0
      %1635 = vmatprep.subr.bf16.mxu0 0
      %1636 = vmatpush1.bf16.msra.mxu0 0
      %1637 = vmatprep.subr.bf16.mxu0 0
      %1638 = vmatpush1.bf16.msra.mxu0 0
      %1639 = vmatprep.subr.bf16.mxu0 0
      %1640 = vmatpush1.bf16.msra.mxu0 0
      %1641 = vmatprep.subr.bf16.mxu0 0
      %1642 = vmatpush1.bf16.msra.mxu0 0
      %1643 = vmatprep.subr.bf16.mxu0 0
      %1644 = vmatpush1.bf16.msra.mxu0 0
      %1645 = vmatprep.subr.bf16.mxu0 0
      %1646 = vmatpush1.bf16.msra.mxu0 0
      %1647 = vmatprep.subr.bf16.mxu0 0
      %1648 = vmatpush1.bf16.msra.mxu0 0
      %1649 = vmatprep.subr.bf16.mxu0 0
      %1650 = vmatpush1.bf16.msra.mxu0 %v1633
      %1651 = vmatprep.subr.bf16.mxu0 0
      %1652 = vmatpush2.bf16.msra.mxu0 0
      %1653 = vmatprep.subr.bf16.mxu0 0
      %1654 = vmatpush2.bf16.msra.mxu0 0
      %1655 = vmatprep.subr.bf16.mxu0 0
      %1656 = vmatpush2.bf16.msra.mxu0 0
      %1657 = vmatprep.subr.bf16.mxu0 0
      %1658 = vmatpush2.bf16.msra.mxu0 0
      %1659 = vmatprep.subr.bf16.mxu0 0
      %1660 = vmatpush2.bf16.msra.mxu0 0
      %1661 = vmatprep.subr.bf16.mxu0 0
      %1662 = vmatpush2.bf16.msra.mxu0 0
      %1663 = vmatprep.subr.bf16.mxu0 0
      %1664 = vmatpush2.bf16.msra.mxu0 0
      %1665 = vmatprep.subr.bf16.mxu0 0
      %1666 = vmatpush2.bf16.msra.mxu0 0
      %1667 = vmatprep.mubr.bf16.mxu0 0
      %1668 = vmatmul.mubr.bf16.gmra.mxu0 %v1608
      %v1669 = vpop.f32.mrf.mxu0
      %v1670 = vadd.f32 0.0, %v1669
      %v1671 = vpop.f32.mrf.mxu0
      %v1672 = vpop.f32.mrf.mxu0
      %v1673 = vadd.f32 0.0, %v1672
      %v1674 = vpop.f32.mrf.mxu0
      %1675 = vmatprep.mubr.bf16.mxu0 0
      %1676 = vmatmul.mubr.bf16.gmra.mxu0 %v1611
      %v1677 = vpop.f32.mrf.mxu0
      %v1678 = vadd.f32 0.0, %v1677
      %v1679 = vpop.f32.mrf.mxu0
      %v1680 = vpop.f32.mrf.mxu0
      %v1681 = vadd.f32 0.0, %v1680
      %v1682 = vpop.f32.mrf.mxu0
      %1683 = vmatprep.mubr.bf16.mxu0 0
      %1684 = vmatmul.mubr.bf16.gmra.mxu0 %v1614
      %v1685 = vpop.f32.mrf.mxu0
      %v1686 = vadd.f32 0.0, %v1685
      %v1687 = vpop.f32.mrf.mxu0
      %v1688 = vpop.f32.mrf.mxu0
      %v1689 = vadd.f32 0.0, %v1688
      %v1690 = vpop.f32.mrf.mxu0
      %1691 = vmatprep.mubr.bf16.mxu0 0
      %1692 = vmatmul.mubr.bf16.gmra.mxu0 %v1617
      %v1693 = vpop.f32.mrf.mxu0
      %v1694 = vadd.f32 0.0, %v1693
      %v1695 = vpop.f32.mrf.mxu0
      %v1696 = vpop.f32.mrf.mxu0
      %v1697 = vadd.f32 0.0, %v1696
      %v1698 = vpop.f32.mrf.mxu0
      %1699 = vmatprep.mubr.bf16.mxu0 0
      %1700 = vmatmul.mubr.bf16.gmra.mxu0 %v1620
      %v1701 = vpop.f32.mrf.mxu0
      %v1702 = vadd.f32 0.0, %v1701
      %v1703 = vpop.f32.mrf.mxu0
      %v1704 = vpop.f32.mrf.mxu0
      %v1705 = vadd.f32 0.0, %v1704
      %v1706 = vpop.f32.mrf.mxu0
      %1707 = vmatprep.mubr.bf16.mxu0 0
      %1708 = vmatmul.mubr.bf16.gmra.mxu0 %v1623
      %v1709 = vpop.f32.mrf.mxu0
      %v1710 = vadd.f32 0.0, %v1709
      %v1711 = vpop.f32.mrf.mxu0
      %v1712 = vpop.f32.mrf.mxu0
      %v1713 = vadd.f32 0.0, %v1712
      %v1714 = vpop.f32.mrf.mxu0
      %1715 = vmatprep.mubr.bf16.mxu0 0
      %1716 = vmatmul.mubr.bf16.gmra.mxu0 %v1626
      %v1717 = vpop.f32.mrf.mxu0
      %v1718 = vadd.f32 0.0, %v1717
      %v1719 = vpop.f32.mrf.mxu0
      %v1720 = vpop.f32.mrf.mxu0
      %v1721 = vadd.f32 0.0, %v1720
      %v1722 = vpop.f32.mrf.mxu0
      %1723 = vmatprep.mubr.bf16.mxu0 0
      %1724 = vmatmul.mubr.bf16.gmra.mxu0 %v1629
      %v1725 = vpop.f32.mrf.mxu0
      %v1726 = vadd.f32 0.0, %v1725
      %v1727 = vpop.f32.mrf.mxu0
      %v1728 = vpop.f32.mrf.mxu0
      %v1729 = vadd.f32 0.0, %v1728
      %v1730 = vpop.f32.mrf.mxu0
      %1731 = vdwg.mxu0
      %v1732 = vpack.c.bf16 %v1673, %v1670
      %v1733 = vpack.c.bf16 %v1681, %v1678
      %v1734 = vpack.c.bf16 %v1689, %v1686
      %v1735 = vpack.c.bf16 %v1697, %v1694
      %v1736 = vpack.c.bf16 %v1705, %v1702
      %v1737 = vpack.c.bf16 %v1713, %v1710
      %v1738 = vpack.c.bf16 %v1721, %v1718
      %v1739 = vpack.c.bf16 %v1729, %v1726
      %v1740 = vld [vmem:[%s10] sm:$0xf]
      %v1741 = vld [vmem:[%s10 + $0x4] sm:$0xf]
      %v1742 = vld [vmem:[%s10 + $0x8] sm:$0xf]
      %v1743 = vld [vmem:[%s10 + $0xc] sm:$0xf]
      %v1744 = vld [vmem:[%s10 + $0x10] sm:$0xf]
      %v1745 = vld [vmem:[%s10 + $0x14] sm:$0xf]
      %v1746 = vld [vmem:[%s10 + $0x18] sm:$0xf]
      %v1747 = vld [vmem:[%s10 + $0x1c] sm:$0xf]
      %v1748 = vld [vmem:[%s10 + $0x20] sm:$0xf]
      %v1749 = vld [vmem:[%s10 + $0x24] sm:$0xf]
      %v1750 = vld [vmem:[%s10 + $0x28] sm:$0xf]
      %v1751 = vld [vmem:[%s10 + $0x2c] sm:$0xf]
      %v1752 = vld [vmem:[%s10 + $0x30] sm:$0xf]
      %v1753 = vld [vmem:[%s10 + $0x34] sm:$0xf]
      %v1754 = vld [vmem:[%s10 + $0x38] sm:$0xf]
      %v1755 = vld [vmem:[%s10 + $0x3c] sm:$0xf]
      %v1756 = vld [vmem:[%s11] sm:$0xf]
      %v1757 = vld [vmem:[%s11 + $0x4] sm:$0xf]
      %v1758 = vld [vmem:[%s11 + $0x8] sm:$0xf]
      %v1759 = vld [vmem:[%s11 + $0xc] sm:$0xf]
      %v1760 = vld [vmem:[%s11 + $0x10] sm:$0xf]
      %v1761 = vld [vmem:[%s11 + $0x14] sm:$0xf]
      %v1762 = vld [vmem:[%s11 + $0x18] sm:$0xf]
      %v1763 = vld [vmem:[%s11 + $0x1c] sm:$0xf]
      %v1764 = vld [vmem:[%s11 + $0x20] sm:$0xf]
      %v1765 = vld [vmem:[%s11 + $0x24] sm:$0xf]
      %v1766 = vld [vmem:[%s11 + $0x28] sm:$0xf]
      %v1767 = vld [vmem:[%s11 + $0x2c] sm:$0xf]
      %v1768 = vld [vmem:[%s11 + $0x30] sm:$0xf]
      %v1769 = vld [vmem:[%s11 + $0x34] sm:$0xf]
      %v1770 = vld [vmem:[%s11 + $0x38] sm:$0xf]
      %v1771 = vld [vmem:[%s11 + $0x3c] sm:$0xf]
      %v1788 = vunpack.c.l.b16 %v1756
      %v1789 = vunpack.c.l.b16 %v1757
      %v1790 = vunpack.c.l.b16 %v1758
      %v1791 = vunpack.c.l.b16 %v1759
      %v1792 = vunpack.c.l.b16 %v1760
      %v1793 = vunpack.c.l.b16 %v1761
      %v1794 = vunpack.c.l.b16 %v1762
      %v1795 = vunpack.c.l.b16 %v1763
      %v1796 = vunpack.c.l.b16 %v1764
      %v1797 = vunpack.c.l.b16 %v1765
      %v1798 = vunpack.c.l.b16 %v1766
      %v1799 = vunpack.c.l.b16 %v1767
      %v1800 = vunpack.c.l.b16 %v1768
      %v1801 = vunpack.c.l.b16 %v1769
      %v1802 = vunpack.c.l.b16 %v1770
      %v1803 = vunpack.c.l.b16 %v1771
      %v1804 = vpack.c.b16 %v1789, %v1788
      %v1805 = vpack.c.b16 %v1791, %v1790
      %v1806 = vpack.c.b16 %v1793, %v1792
      %v1807 = vpack.c.b16 %v1795, %v1794
      %v1808 = vpack.c.b16 %v1797, %v1796
      %v1809 = vpack.c.b16 %v1799, %v1798
      %v1810 = vpack.c.b16 %v1801, %v1800
      %v1811 = vpack.c.b16 %v1803, %v1802
      %1820 = vmatprep.subr.bf16.mxu0 0
      %1821 = vmatpush1.bf16.msra.mxu0 %v1811
      %1822 = vmatprep.subr.bf16.mxu0 0
      %1823 = vmatpush1.bf16.msra.mxu0 %v1810
      %1824 = vmatprep.subr.bf16.mxu0 0
      %1825 = vmatpush1.bf16.msra.mxu0 %v1809
      %1826 = vmatprep.subr.bf16.mxu0 0
      %1827 = vmatpush1.bf16.msra.mxu0 %v1808
      %1828 = vmatprep.subr.bf16.mxu0 0
      %1829 = vmatpush1.bf16.msra.mxu0 %v1807
      %1830 = vmatprep.subr.bf16.mxu0 0
      %1831 = vmatpush1.bf16.msra.mxu0 %v1806
      %1832 = vmatprep.subr.bf16.mxu0 0
      %1833 = vmatpush1.bf16.msra.mxu0 %v1805
      %1834 = vmatprep.subr.bf16.mxu0 0
      %1835 = vmatpush1.bf16.msra.mxu0 %v1804
      %1836 = vmatprep.subr.bf16.mxu0 0
      %1837 = vmatpush2.bf16.msra.mxu0 0
      %1838 = vmatprep.subr.bf16.mxu0 0
      %1839 = vmatpush2.bf16.msra.mxu0 0
      %1840 = vmatprep.subr.bf16.mxu0 0
      %1841 = vmatpush2.bf16.msra.mxu0 0
      %1842 = vmatprep.subr.bf16.mxu0 0
      %1843 = vmatpush2.bf16.msra.mxu0 0
      %1844 = vmatprep.subr.bf16.mxu0 0
      %1845 = vmatpush2.bf16.msra.mxu0 0
      %1846 = vmatprep.subr.bf16.mxu0 0
      %1847 = vmatpush2.bf16.msra.mxu0 0
      %1848 = vmatprep.subr.bf16.mxu0 0
      %1849 = vmatpush2.bf16.msra.mxu0 0
      %1850 = vmatprep.subr.bf16.mxu0 0
      %1851 = vmatpush2.bf16.msra.mxu0 0
      %1852 = vmatprep.mubr.bf16.mxu0 0
      %1853 = vmatmul.mubr.bf16.gmra.mxu0 %v1057
      %v1854 = vpop.f32.mrf.mxu0
      %v1855 = vadd.f32 0.0, %v1854
      %v1856 = vpop.f32.mrf.mxu0
      %v1857 = vpop.f32.mrf.mxu0
      %v1858 = vadd.f32 0.0, %v1857
      %v1859 = vpop.f32.mrf.mxu0
      %1860 = vmatprep.mubr.bf16.mxu0 0
      %1861 = vmatmul.mubr.bf16.gmra.mxu0 %v1058
      %v1862 = vpop.f32.mrf.mxu0
      %v1863 = vadd.f32 0.0, %v1862
      %v1864 = vpop.f32.mrf.mxu0
      %v1865 = vpop.f32.mrf.mxu0
      %v1866 = vadd.f32 0.0, %v1865
      %v1867 = vpop.f32.mrf.mxu0
      %1868 = vmatprep.mubr.bf16.mxu0 0
      %1869 = vmatmul.mubr.bf16.gmra.mxu0 %v1059
      %v1870 = vpop.f32.mrf.mxu0
      %v1871 = vadd.f32 0.0, %v1870
      %v1872 = vpop.f32.mrf.mxu0
      %v1873 = vpop.f32.mrf.mxu0
      %v1874 = vadd.f32 0.0, %v1873
      %v1875 = vpop.f32.mrf.mxu0
      %1876 = vmatprep.mubr.bf16.mxu0 0
      %1877 = vmatmul.mubr.bf16.gmra.mxu0 %v1060
      %v1878 = vpop.f32.mrf.mxu0
      %v1879 = vadd.f32 0.0, %v1878
      %v1880 = vpop.f32.mrf.mxu0
      %v1881 = vpop.f32.mrf.mxu0
      %v1882 = vadd.f32 0.0, %v1881
      %v1883 = vpop.f32.mrf.mxu0
      %1884 = vmatprep.mubr.bf16.mxu0 0
      %1885 = vmatmul.mubr.bf16.gmra.mxu0 %v1061
      %v1886 = vpop.f32.mrf.mxu0
      %v1887 = vadd.f32 0.0, %v1886
      %v1888 = vpop.f32.mrf.mxu0
      %v1889 = vpop.f32.mrf.mxu0
      %v1890 = vadd.f32 0.0, %v1889
      %v1891 = vpop.f32.mrf.mxu0
      %1892 = vmatprep.mubr.bf16.mxu0 0
      %1893 = vmatmul.mubr.bf16.gmra.mxu0 %v1062
      %v1894 = vpop.f32.mrf.mxu0
      %v1895 = vadd.f32 0.0, %v1894
      %v1896 = vpop.f32.mrf.mxu0
      %v1897 = vpop.f32.mrf.mxu0
      %v1898 = vadd.f32 0.0, %v1897
      %v1899 = vpop.f32.mrf.mxu0
      %1900 = vmatprep.mubr.bf16.mxu0 0
      %1901 = vmatmul.mubr.bf16.gmra.mxu0 %v1063
      %v1902 = vpop.f32.mrf.mxu0
      %v1903 = vadd.f32 0.0, %v1902
      %v1904 = vpop.f32.mrf.mxu0
      %v1905 = vpop.f32.mrf.mxu0
      %v1906 = vadd.f32 0.0, %v1905
      %v1907 = vpop.f32.mrf.mxu0
      %1908 = vmatprep.mubr.bf16.mxu0 0
      %1909 = vmatmul.mubr.bf16.gmra.mxu0 %v1064
      %v1910 = vpop.f32.mrf.mxu0
      %v1911 = vadd.f32 0.0, %v1910
      %v1912 = vpop.f32.mrf.mxu0
      %v1913 = vpop.f32.mrf.mxu0
      %v1914 = vadd.f32 0.0, %v1913
      %v1915 = vpop.f32.mrf.mxu0
      %1916 = vdwg.mxu0
      %v1933 = vunpack.c.l.b16 %v1740
      %v1934 = vunpack.c.l.b16 %v1741
      %v1935 = vunpack.c.l.b16 %v1742
      %v1936 = vunpack.c.l.b16 %v1743
      %v1937 = vunpack.c.l.b16 %v1744
      %v1938 = vunpack.c.l.b16 %v1745
      %v1939 = vunpack.c.l.b16 %v1746
      %v1940 = vunpack.c.l.b16 %v1747
      %v1941 = vunpack.c.l.b16 %v1748
      %v1942 = vunpack.c.l.b16 %v1749
      %v1943 = vunpack.c.l.b16 %v1750
      %v1944 = vunpack.c.l.b16 %v1751
      %v1945 = vunpack.c.l.b16 %v1752
      %v1946 = vunpack.c.l.b16 %v1753
      %v1947 = vunpack.c.l.b16 %v1754
      %v1948 = vunpack.c.l.b16 %v1755
      %v1949 = vpack.c.b16 %v1934, %v1933
      %v1950 = vpack.c.b16 %v1936, %v1935
      %v1951 = vpack.c.b16 %v1938, %v1937
      %v1952 = vpack.c.b16 %v1940, %v1939
      %v1953 = vpack.c.b16 %v1942, %v1941
      %v1954 = vpack.c.b16 %v1944, %v1943
      %v1955 = vpack.c.b16 %v1946, %v1945
      %v1956 = vpack.c.b16 %v1948, %v1947
      %1965 = vmatprep.subr.bf16.mxu0 0
      %1966 = vmatpush1.bf16.msra.mxu0 %v1956
      %1967 = vmatprep.subr.bf16.mxu0 0
      %1968 = vmatpush1.bf16.msra.mxu0 %v1955
      %1969 = vmatprep.subr.bf16.mxu0 0
      %1970 = vmatpush1.bf16.msra.mxu0 %v1954
      %1971 = vmatprep.subr.bf16.mxu0 0
      %1972 = vmatpush1.bf16.msra.mxu0 %v1953
      %1973 = vmatprep.subr.bf16.mxu0 0
      %1974 = vmatpush1.bf16.msra.mxu0 %v1952
      %1975 = vmatprep.subr.bf16.mxu0 0
      %1976 = vmatpush1.bf16.msra.mxu0 %v1951
      %1977 = vmatprep.subr.bf16.mxu0 0
      %1978 = vmatpush1.bf16.msra.mxu0 %v1950
      %1979 = vmatprep.subr.bf16.mxu0 0
      %1980 = vmatpush1.bf16.msra.mxu0 %v1949
      %1981 = vmatprep.subr.bf16.mxu0 0
      %1982 = vmatpush2.bf16.msra.mxu0 0
      %1983 = vmatprep.subr.bf16.mxu0 0
      %1984 = vmatpush2.bf16.msra.mxu0 0
      %1985 = vmatprep.subr.bf16.mxu0 0
      %1986 = vmatpush2.bf16.msra.mxu0 0
      %1987 = vmatprep.subr.bf16.mxu0 0
      %1988 = vmatpush2.bf16.msra.mxu0 0
      %1989 = vmatprep.subr.bf16.mxu0 0
      %1990 = vmatpush2.bf16.msra.mxu0 0
      %1991 = vmatprep.subr.bf16.mxu0 0
      %1992 = vmatpush2.bf16.msra.mxu0 0
      %1993 = vmatprep.subr.bf16.mxu0 0
      %1994 = vmatpush2.bf16.msra.mxu0 0
      %1995 = vmatprep.subr.bf16.mxu0 0
      %1996 = vmatpush2.bf16.msra.mxu0 0
      %1997 = vmatprep.mubr.bf16.mxu0 0
      %1998 = vmatmul.mubr.bf16.gmra.mxu0 %v1732
      %v1999 = vpop.f32.mrf.mxu0
      %v2000 = vadd.f32 %v1855, %v1999
      %v2001 = vpop.f32.mrf.mxu0
      %v2002 = vpop.f32.mrf.mxu0
      %v2003 = vadd.f32 %v1858, %v2002
      %v2004 = vpop.f32.mrf.mxu0
      %2005 = vmatprep.mubr.bf16.mxu0 0
      %2006 = vmatmul.mubr.bf16.gmra.mxu0 %v1733
      %v2007 = vpop.f32.mrf.mxu0
      %v2008 = vadd.f32 %v1863, %v2007
      %v2009 = vpop.f32.mrf.mxu0
      %v2010 = vpop.f32.mrf.mxu0
      %v2011 = vadd.f32 %v1866, %v2010
      %v2012 = vpop.f32.mrf.mxu0
      %2013 = vmatprep.mubr.bf16.mxu0 0
      %2014 = vmatmul.mubr.bf16.gmra.mxu0 %v1734
      %v2015 = vpop.f32.mrf.mxu0
      %v2016 = vadd.f32 %v1871, %v2015
      %v2017 = vpop.f32.mrf.mxu0
      %v2018 = vpop.f32.mrf.mxu0
      %v2019 = vadd.f32 %v1874, %v2018
      %v2020 = vpop.f32.mrf.mxu0
      %2021 = vmatprep.mubr.bf16.mxu0 0
      %2022 = vmatmul.mubr.bf16.gmra.mxu0 %v1735
      %v2023 = vpop.f32.mrf.mxu0
      %v2024 = vadd.f32 %v1879, %v2023
      %v2025 = vpop.f32.mrf.mxu0
      %v2026 = vpop.f32.mrf.mxu0
      %v2027 = vadd.f32 %v1882, %v2026
      %v2028 = vpop.f32.mrf.mxu0
      %2029 = vmatprep.mubr.bf16.mxu0 0
      %2030 = vmatmul.mubr.bf16.gmra.mxu0 %v1736
      %v2031 = vpop.f32.mrf.mxu0
      %v2032 = vadd.f32 %v1887, %v2031
      %v2033 = vpop.f32.mrf.mxu0
      %v2034 = vpop.f32.mrf.mxu0
      %v2035 = vadd.f32 %v1890, %v2034
      %v2036 = vpop.f32.mrf.mxu0
      %2037 = vmatprep.mubr.bf16.mxu0 0
      %2038 = vmatmul.mubr.bf16.gmra.mxu0 %v1737
      %v2039 = vpop.f32.mrf.mxu0
      %v2040 = vadd.f32 %v1895, %v2039
      %v2041 = vpop.f32.mrf.mxu0
      %v2042 = vpop.f32.mrf.mxu0
      %v2043 = vadd.f32 %v1898, %v2042
      %v2044 = vpop.f32.mrf.mxu0
      %2045 = vmatprep.mubr.bf16.mxu0 0
      %2046 = vmatmul.mubr.bf16.gmra.mxu0 %v1738
      %v2047 = vpop.f32.mrf.mxu0
      %v2048 = vadd.f32 %v1903, %v2047
      %v2049 = vpop.f32.mrf.mxu0
      %v2050 = vpop.f32.mrf.mxu0
      %v2051 = vadd.f32 %v1906, %v2050
      %v2052 = vpop.f32.mrf.mxu0
      %2053 = vmatprep.mubr.bf16.mxu0 0
      %2054 = vmatmul.mubr.bf16.gmra.mxu0 %v1739
      %v2055 = vpop.f32.mrf.mxu0
      %v2056 = vadd.f32 %v1911, %v2055
      %v2057 = vpop.f32.mrf.mxu0
      %v2058 = vpop.f32.mrf.mxu0
      %v2059 = vadd.f32 %v1914, %v2058
      %v2060 = vpop.f32.mrf.mxu0
      %2061 = vdwg.mxu0
      %v2062 = vld [vmem:[%s12] sm:$0x1]
      %v2064 = vlaneseq
      %v2065 = vshrl.u32 %v2064, 7
      %v2066 = vsub.s32 0, %v2065
      %v2067 = vrot.slane %v2062, %v2066
      %v2069 = vadd.f32 %v2000, %v2067
      %v2070 = vadd.f32 %v2003, %v2067
      %v2071 = vadd.f32 %v2008, %v2067
      %v2072 = vadd.f32 %v2011, %v2067
      %v2073 = vadd.f32 %v2016, %v2067
      %v2074 = vadd.f32 %v2019, %v2067
      %v2075 = vadd.f32 %v2024, %v2067
      %v2076 = vadd.f32 %v2027, %v2067
      %v2077 = vadd.f32 %v2032, %v2067
      %v2078 = vadd.f32 %v2035, %v2067
      %v2079 = vadd.f32 %v2040, %v2067
      %v2080 = vadd.f32 %v2043, %v2067
      %v2081 = vadd.f32 %v2048, %v2067
      %v2082 = vadd.f32 %v2051, %v2067
      %v2083 = vadd.f32 %v2056, %v2067
      %v2084 = vadd.f32 %v2059, %v2067
      %vm2085 = vcmp.gt.f32.partialorder %v2069, 0.0
      %vm2086 = vcmp.gt.f32.partialorder %v2070, 0.0
      %vm2087 = vcmp.gt.f32.partialorder %v2071, 0.0
      %vm2088 = vcmp.gt.f32.partialorder %v2072, 0.0
      %vm2089 = vcmp.gt.f32.partialorder %v2073, 0.0
      %vm2090 = vcmp.gt.f32.partialorder %v2074, 0.0
      %vm2091 = vcmp.gt.f32.partialorder %v2075, 0.0
      %vm2092 = vcmp.gt.f32.partialorder %v2076, 0.0
      %vm2093 = vcmp.gt.f32.partialorder %v2077, 0.0
      %vm2094 = vcmp.gt.f32.partialorder %v2078, 0.0
      %vm2095 = vcmp.gt.f32.partialorder %v2079, 0.0
      %vm2096 = vcmp.gt.f32.partialorder %v2080, 0.0
      %vm2097 = vcmp.gt.f32.partialorder %v2081, 0.0
      %vm2098 = vcmp.gt.f32.partialorder %v2082, 0.0
      %vm2099 = vcmp.gt.f32.partialorder %v2083, 0.0
      %vm2100 = vcmp.gt.f32.partialorder %v2084, 0.0
      %v2101 = vmul.f32 %v2069, 0.01
      %v2102 = vmul.f32 %v2070, 0.01
      %v2103 = vmul.f32 %v2071, 0.01
      %v2104 = vmul.f32 %v2072, 0.01
      %v2105 = vmul.f32 %v2073, 0.01
      %v2106 = vmul.f32 %v2074, 0.01
      %v2107 = vmul.f32 %v2075, 0.01
      %v2108 = vmul.f32 %v2076, 0.01
      %v2109 = vmul.f32 %v2077, 0.01
      %v2110 = vmul.f32 %v2078, 0.01
      %v2111 = vmul.f32 %v2079, 0.01
      %v2112 = vmul.f32 %v2080, 0.01
      %v2113 = vmul.f32 %v2081, 0.01
      %v2114 = vmul.f32 %v2082, 0.01
      %v2115 = vmul.f32 %v2083, 0.01
      %v2116 = vmul.f32 %v2084, 0.01
      %v2117 = vsel %vm2085, %v2069, %v2101
      %v2118 = vsel %vm2086, %v2070, %v2102
      %v2119 = vsel %vm2087, %v2071, %v2103
      %v2120 = vsel %vm2088, %v2072, %v2104
      %v2121 = vsel %vm2089, %v2073, %v2105
      %v2122 = vsel %vm2090, %v2074, %v2106
      %v2123 = vsel %vm2091, %v2075, %v2107
      %v2124 = vsel %vm2092, %v2076, %v2108
      %v2125 = vsel %vm2093, %v2077, %v2109
      %v2126 = vsel %vm2094, %v2078, %v2110
      %v2127 = vsel %vm2095, %v2079, %v2111
      %v2128 = vsel %vm2096, %v2080, %v2112
      %v2129 = vsel %vm2097, %v2081, %v2113
      %v2130 = vsel %vm2098, %v2082, %v2114
      %v2131 = vsel %vm2099, %v2083, %v2115
      %v2132 = vsel %vm2100, %v2084, %v2116
      %v2133 = vadd.s32 %v1435, 8
      %v2134 = vlaneseq
      %v2135 = vshrl.u32 %v2134, 7
      %v2136 = vsub.s32 0, %v2135
      %v2137 = vrot.slane %v748, %v2136
      %vm2138 = vcmp.eq.s32.totalorder %v2137, %v1435
      %vm2139 = vcmp.eq.s32.totalorder %v2137, %v2133
      %v2140 = vld [vmem:[#allocation3] sm:$0xff]
      %v2141 = vld [vmem:[#allocation3 + $0x8] sm:$0xff]
      %v2142 = vsel %vm2138, 1, 0
      %v2143 = vsel %vm2139, 1, 0
      %v2144 = vcvt.s32.f32 %v2142
      %v2145 = vcvt.s32.f32 %v2143
      %v2146 = vpack.c.bf16 %v2145, %v2144
      %v2147 = vpack.c.bf16 %v2118, %v2117
      %v2148 = vpack.c.bf16 %v2120, %v2119
      %v2149 = vpack.c.bf16 %v2122, %v2121
      %v2150 = vpack.c.bf16 %v2124, %v2123
      %v2151 = vpack.c.bf16 %v2126, %v2125
      %v2152 = vpack.c.bf16 %v2128, %v2127
      %v2153 = vpack.c.bf16 %v2130, %v2129
      %v2154 = vpack.c.bf16 %v2132, %v2131
      %2155 = vmatprep.subr.bf16.mxu0 0
      %2156 = vmatpush1.bf16.msra.mxu0 %v2154
      %2157 = vmatprep.subr.bf16.mxu0 0
      %2158 = vmatpush1.bf16.msra.mxu0 %v2153
      %2159 = vmatprep.subr.bf16.mxu0 0
      %2160 = vmatpush1.bf16.msra.mxu0 %v2152
      %2161 = vmatprep.subr.bf16.mxu0 0
      %2162 = vmatpush1.bf16.msra.mxu0 %v2151
      %2163 = vmatprep.subr.bf16.mxu0 0
      %2164 = vmatpush1.bf16.msra.mxu0 %v2150
      %2165 = vmatprep.subr.bf16.mxu0 0
      %2166 = vmatpush1.bf16.msra.mxu0 %v2149
      %2167 = vmatprep.subr.bf16.mxu0 0
      %2168 = vmatpush1.bf16.msra.mxu0 %v2148
      %2169 = vmatprep.subr.bf16.mxu0 0
      %2170 = vmatpush1.bf16.msra.mxu0 %v2147
      %2171 = vmatprep.subr.bf16.mxu0 0
      %2172 = vmatpush2.bf16.msra.mxu0 0
      %2173 = vmatprep.subr.bf16.mxu0 0
      %2174 = vmatpush2.bf16.msra.mxu0 0
      %2175 = vmatprep.subr.bf16.mxu0 0
      %2176 = vmatpush2.bf16.msra.mxu0 0
      %2177 = vmatprep.subr.bf16.mxu0 0
      %2178 = vmatpush2.bf16.msra.mxu0 0
      %2179 = vmatprep.subr.bf16.mxu0 0
      %2180 = vmatpush2.bf16.msra.mxu0 0
      %2181 = vmatprep.subr.bf16.mxu0 0
      %2182 = vmatpush2.bf16.msra.mxu0 0
      %2183 = vmatprep.subr.bf16.mxu0 0
      %2184 = vmatpush2.bf16.msra.mxu0 0
      %2185 = vmatprep.subr.bf16.mxu0 0
      %2186 = vmatpush2.bf16.msra.mxu0 0
      %2187 = vmatprep.mubr.bf16.mxu0 0
      %2188 = vmatmul.mubr.bf16.gmra.mxu0 %v2146
      %v2189 = vpop.f32.mrf.mxu0
      %v2190 = vadd.f32 0.0, %v2189
      %v2191 = vpop.f32.mrf.mxu0
      %v2192 = vpop.f32.mrf.mxu0
      %v2193 = vadd.f32 0.0, %v2192
      %v2194 = vpop.f32.mrf.mxu0
      %2195 = vdwg.mxu0
      %v2196 = vadd.f32 %v2140, %v2190
      %v2197 = vadd.f32 %v2141, %v2193
      %2198 = vst [vmem:[#allocation3] sm:$0xff] %v2196
      %2199 = vst [vmem:[#allocation3 + $0x8] sm:$0xff] %v2197
      %v2200 = vld [vmem:[#allocation5] sm:$0xff]
      %v2201 = vld [vmem:[#allocation5 + $0x8] sm:$0xff]
      %2202 = vadd.xlane.f32.xlu0 %v2144
      %v2203 = vpop.xlane.xlu0 %2202
      %2204 = vadd.xlane.f32.xlu0 %v2145
      %v2205 = vpop.xlane.xlu0 %2204
      %v2206 = vadd.f32 %v2200, %v2203
      %v2207 = vadd.f32 %v2201, %v2205
      %2208 = vst.msk [vmem:[#allocation5] sm:$0xff] %vm1499, %v2206
      %2209 = vst.msk [vmem:[#allocation5 + $0x8] sm:$0xff] %vm1499, %v2207
      %p2210 = scmp.eq.s32.totalorder %s32, 1
      // Predicated region
      $region101: #{gcn_block_forward.2} parent=95 // pred_check
        %p2211 = pneg %p2210
      $region102: #{gcn_block_forward.2} parent=95 // pred_check_branch
        %2213 = sbr.rel (%p2211) target = $region104
      $region103: #{gcn_block_forward.2} parent=95 // pred_region
        %v2214 = vld [vmem:[#allocation2] sm:$0xff]
        %v2215 = vld [vmem:[#allocation4] sm:$0xff]
        %v2216 = vmax.f32 %v2215, 1.0
        %2218 = vset.pattern.permute.xlu0 0
        %2219 = vperm.xlu0 %2218, %v2216
        %v2220 = vpop.permute.xlu0 %2219
        %v2222 = vrcp.pop %v2220
        %v2223 = vmul.f32 %v2214, %v2222
        %v2224 = vld [vmem:[#allocation3] sm:$0xff]
        %v2225 = vld [vmem:[#allocation3 + $0x8] sm:$0xff]
        %v2226 = vld [vmem:[#allocation5] sm:$0xff]
        %v2227 = vld [vmem:[#allocation5 + $0x8] sm:$0xff]
        %v2228 = vmax.f32 %v2226, 1.0
        %v2229 = vmax.f32 %v2227, 1.0
        %2231 = vset.pattern.permute.xlu0 0
        %2232 = vperm.xlu0 %2231, %v2228
        %v2233 = vpop.permute.xlu0 %2232
        %2236 = vset.pattern.permute.xlu0 0
        %2237 = vperm.xlu0 %2236, %v2229
        %v2238 = vpop.permute.xlu0 %2237
        %v2240 = vrcp.pop %v2233
        %v2241 = vmul.f32 %v2224, %v2240
        %v2242 = vrcp.pop %v2238
        %v2243 = vmul.f32 %v2225, %v2242
        %v2244 = vld [vmem:[%s5] sm:$0xf]
        %v2245 = vld [vmem:[%s13] sm:$0xf]
        %v2246 = vld [vmem:[%s13 + $0x4] sm:$0xf]
        %v2247 = vld [vmem:[%s13 + $0x8] sm:$0xf]
        %v2248 = vld [vmem:[%s13 + $0xc] sm:$0xf]
        %v2249 = vld [vmem:[%s13 + $0x10] sm:$0xf]
        %v2250 = vld [vmem:[%s13 + $0x14] sm:$0xf]
        %v2251 = vld [vmem:[%s13 + $0x18] sm:$0xf]
        %v2252 = vld [vmem:[%s13 + $0x1c] sm:$0xf]
        %v2253 = vld [vmem:[%s13 + $0x20] sm:$0xf]
        %v2254 = vld [vmem:[%s13 + $0x24] sm:$0xf]
        %v2255 = vld [vmem:[%s13 + $0x28] sm:$0xf]
        %v2256 = vld [vmem:[%s13 + $0x2c] sm:$0xf]
        %v2257 = vld [vmem:[%s13 + $0x30] sm:$0xf]
        %v2258 = vld [vmem:[%s13 + $0x34] sm:$0xf]
        %v2259 = vld [vmem:[%s13 + $0x38] sm:$0xf]
        %v2260 = vld [vmem:[%s13 + $0x3c] sm:$0xf]
        %v2261 = vpack.c.bf16 %v2223, %v2223
        %v2262 = vld [vmem:[%s14] sm:$0xf]
        %v2263 = vld [vmem:[%s14 + $0x4] sm:$0xf]
        %v2264 = vld [vmem:[%s14 + $0x8] sm:$0xf]
        %v2265 = vld [vmem:[%s14 + $0xc] sm:$0xf]
        %v2266 = vld [vmem:[%s14 + $0x10] sm:$0xf]
        %v2267 = vld [vmem:[%s14 + $0x14] sm:$0xf]
        %v2268 = vld [vmem:[%s14 + $0x18] sm:$0xf]
        %v2269 = vld [vmem:[%s14 + $0x1c] sm:$0xf]
        %v2270 = vld [vmem:[%s14 + $0x20] sm:$0xf]
        %v2271 = vld [vmem:[%s14 + $0x24] sm:$0xf]
        %v2272 = vld [vmem:[%s14 + $0x28] sm:$0xf]
        %v2273 = vld [vmem:[%s14 + $0x2c] sm:$0xf]
        %v2274 = vld [vmem:[%s14 + $0x30] sm:$0xf]
        %v2275 = vld [vmem:[%s14 + $0x34] sm:$0xf]
        %v2276 = vld [vmem:[%s14 + $0x38] sm:$0xf]
        %v2277 = vld [vmem:[%s14 + $0x3c] sm:$0xf]
        %v2294 = vunpack.c.l.b16 %v2262
        %v2295 = vunpack.c.l.b16 %v2263
        %v2296 = vunpack.c.l.b16 %v2264
        %v2297 = vunpack.c.l.b16 %v2265
        %v2298 = vunpack.c.l.b16 %v2266
        %v2299 = vunpack.c.l.b16 %v2267
        %v2300 = vunpack.c.l.b16 %v2268
        %v2301 = vunpack.c.l.b16 %v2269
        %v2302 = vunpack.c.l.b16 %v2270
        %v2303 = vunpack.c.l.b16 %v2271
        %v2304 = vunpack.c.l.b16 %v2272
        %v2305 = vunpack.c.l.b16 %v2273
        %v2306 = vunpack.c.l.b16 %v2274
        %v2307 = vunpack.c.l.b16 %v2275
        %v2308 = vunpack.c.l.b16 %v2276
        %v2309 = vunpack.c.l.b16 %v2277
        %v2310 = vpack.c.b16 %v2295, %v2294
        %v2311 = vpack.c.b16 %v2297, %v2296
        %v2312 = vpack.c.b16 %v2299, %v2298
        %v2313 = vpack.c.b16 %v2301, %v2300
        %v2314 = vpack.c.b16 %v2303, %v2302
        %v2315 = vpack.c.b16 %v2305, %v2304
        %v2316 = vpack.c.b16 %v2307, %v2306
        %v2317 = vpack.c.b16 %v2309, %v2308
        %2326 = vmatprep.subr.bf16.mxu0 0
        %2327 = vmatpush1.bf16.msra.mxu0 %v2317
        %2328 = vmatprep.subr.bf16.mxu0 0
        %2329 = vmatpush1.bf16.msra.mxu0 %v2316
        %2330 = vmatprep.subr.bf16.mxu0 0
        %2331 = vmatpush1.bf16.msra.mxu0 %v2315
        %2332 = vmatprep.subr.bf16.mxu0 0
        %2333 = vmatpush1.bf16.msra.mxu0 %v2314
        %2334 = vmatprep.subr.bf16.mxu0 0
        %2335 = vmatpush1.bf16.msra.mxu0 %v2313
        %2336 = vmatprep.subr.bf16.mxu0 0
        %2337 = vmatpush1.bf16.msra.mxu0 %v2312
        %2338 = vmatprep.subr.bf16.mxu0 0
        %2339 = vmatpush1.bf16.msra.mxu0 %v2311
        %2340 = vmatprep.subr.bf16.mxu0 0
        %2341 = vmatpush1.bf16.msra.mxu0 %v2310
        %2342 = vmatprep.subr.bf16.mxu0 0
        %2343 = vmatpush2.bf16.msra.mxu0 0
        %2344 = vmatprep.subr.bf16.mxu0 0
        %2345 = vmatpush2.bf16.msra.mxu0 0
        %2346 = vmatprep.subr.bf16.mxu0 0
        %2347 = vmatpush2.bf16.msra.mxu0 0
        %2348 = vmatprep.subr.bf16.mxu0 0
        %2349 = vmatpush2.bf16.msra.mxu0 0
        %2350 = vmatprep.subr.bf16.mxu0 0
        %2351 = vmatpush2.bf16.msra.mxu0 0
        %2352 = vmatprep.subr.bf16.mxu0 0
        %2353 = vmatpush2.bf16.msra.mxu0 0
        %2354 = vmatprep.subr.bf16.mxu0 0
        %2355 = vmatpush2.bf16.msra.mxu0 0
        %2356 = vmatprep.subr.bf16.mxu0 0
        %2357 = vmatpush2.bf16.msra.mxu0 0
        %2358 = vmatprep.mubr.bf16.mxu0 0
        %2359 = vmatmul.mubr.bf16.gmra.mxu0 %v2261
        %v2360 = vpop.f32.mrf.mxu0
        %v2361 = vadd.f32 0.0, %v2360
        %v2362 = vpop.f32.mrf.mxu0
        %v2363 = vpop.f32.mrf.mxu0
        %v2364 = vpop.f32.mrf.mxu0
        %2365 = vdwg.mxu0
        %v2382 = vunpack.c.l.b16 %v2245
        %v2383 = vunpack.c.l.b16 %v2246
        %v2384 = vunpack.c.l.b16 %v2247
        %v2385 = vunpack.c.l.b16 %v2248
        %v2386 = vunpack.c.l.b16 %v2249
        %v2387 = vunpack.c.l.b16 %v2250
        %v2388 = vunpack.c.l.b16 %v2251
        %v2389 = vunpack.c.l.b16 %v2252
        %v2390 = vunpack.c.l.b16 %v2253
        %v2391 = vunpack.c.l.b16 %v2254
        %v2392 = vunpack.c.l.b16 %v2255
        %v2393 = vunpack.c.l.b16 %v2256
        %v2394 = vunpack.c.l.b16 %v2257
        %v2395 = vunpack.c.l.b16 %v2258
        %v2396 = vunpack.c.l.b16 %v2259
        %v2397 = vunpack.c.l.b16 %v2260
        %v2398 = vpack.c.b16 %v2383, %v2382
        %v2399 = vpack.c.b16 %v2385, %v2384
        %v2400 = vpack.c.b16 %v2387, %v2386
        %v2401 = vpack.c.b16 %v2389, %v2388
        %v2402 = vpack.c.b16 %v2391, %v2390
        %v2403 = vpack.c.b16 %v2393, %v2392
        %v2404 = vpack.c.b16 %v2395, %v2394
        %v2405 = vpack.c.b16 %v2397, %v2396
        %2414 = vmatprep.subr.bf16.mxu0 0
        %2415 = vmatpush1.bf16.msra.mxu0 %v2405
        %2416 = vmatprep.subr.bf16.mxu0 0
        %2417 = vmatpush1.bf16.msra.mxu0 %v2404
        %2418 = vmatprep.subr.bf16.mxu0 0
        %2419 = vmatpush1.bf16.msra.mxu0 %v2403
        %2420 = vmatprep.subr.bf16.mxu0 0
        %2421 = vmatpush1.bf16.msra.mxu0 %v2402
        %2422 = vmatprep.subr.bf16.mxu0 0
        %2423 = vmatpush1.bf16.msra.mxu0 %v2401
        %2424 = vmatprep.subr.bf16.mxu0 0
        %2425 = vmatpush1.bf16.msra.mxu0 %v2400
        %2426 = vmatprep.subr.bf16.mxu0 0
        %2427 = vmatpush1.bf16.msra.mxu0 %v2399
        %2428 = vmatprep.subr.bf16.mxu0 0
        %2429 = vmatpush1.bf16.msra.mxu0 %v2398
        %2430 = vmatprep.subr.bf16.mxu0 0
        %2431 = vmatpush2.bf16.msra.mxu0 0
        %2432 = vmatprep.subr.bf16.mxu0 0
        %2433 = vmatpush2.bf16.msra.mxu0 0
        %2434 = vmatprep.subr.bf16.mxu0 0
        %2435 = vmatpush2.bf16.msra.mxu0 0
        %2436 = vmatprep.subr.bf16.mxu0 0
        %2437 = vmatpush2.bf16.msra.mxu0 0
        %2438 = vmatprep.subr.bf16.mxu0 0
        %2439 = vmatpush2.bf16.msra.mxu0 0
        %2440 = vmatprep.subr.bf16.mxu0 0
        %2441 = vmatpush2.bf16.msra.mxu0 0
        %2442 = vmatprep.subr.bf16.mxu0 0
        %2443 = vmatpush2.bf16.msra.mxu0 0
        %2444 = vmatprep.subr.bf16.mxu0 0
        %2445 = vmatpush2.bf16.msra.mxu0 0
        %2446 = vmatprep.mubr.bf16.mxu0 0
        %2447 = vmatmul.mubr.bf16.gmra.mxu0 %v2244
        %v2448 = vpop.f32.mrf.mxu0
        %v2449 = vadd.f32 %v2361, %v2448
        %v2450 = vpop.f32.mrf.mxu0
        %v2451 = vpop.f32.mrf.mxu0
        %v2452 = vpop.f32.mrf.mxu0
        %2453 = vdwg.mxu0
        %v2454 = vld [vmem:[%s15] sm:$0x1]
        %v2456 = vlaneseq
        %v2457 = vshrl.u32 %v2456, 7
        %v2458 = vsub.s32 0, %v2457
        %v2459 = vrot.slane %v2454, %v2458
        %v2461 = vadd.f32 %v2449, %v2459
        %v2462 = vld [vmem:[%s6] sm:$0xf]
        %v2463 = vld [vmem:[%s6 + $0x4] sm:$0xf]
        %v2464 = vld [vmem:[%s16] sm:$0xf]
        %v2465 = vld [vmem:[%s16 + $0x4] sm:$0xf]
        %v2466 = vld [vmem:[%s16 + $0x8] sm:$0xf]
        %v2467 = vld [vmem:[%s16 + $0xc] sm:$0xf]
        %v2468 = vld [vmem:[%s16 + $0x10] sm:$0xf]
        %v2469 = vld [vmem:[%s16 + $0x14] sm:$0xf]
        %v2470 = vld [vmem:[%s16 + $0x18] sm:$0xf]
        %v2471 = vld [vmem:[%s16 + $0x1c] sm:$0xf]
        %v2472 = vld [vmem:[%s16 + $0x20] sm:$0xf]
        %v2473 = vld [vmem:[%s16 + $0x24] sm:$0xf]
        %v2474 = vld [vmem:[%s16 + $0x28] sm:$0xf]
        %v2475 = vld [vmem:[%s16 + $0x2c] sm:$0xf]
        %v2476 = vld [vmem:[%s16 + $0x30] sm:$0xf]
        %v2477 = vld [vmem:[%s16 + $0x34] sm:$0xf]
        %v2478 = vld [vmem:[%s16 + $0x38] sm:$0xf]
        %v2479 = vld [vmem:[%s16 + $0x3c] sm:$0xf]
        %v2480 = vpack.c.bf16 %v2243, %v2241
        %v2481 = vld [vmem:[%s17] sm:$0xf]
        %v2482 = vld [vmem:[%s17 + $0x4] sm:$0xf]
        %v2483 = vld [vmem:[%s17 + $0x8] sm:$0xf]
        %v2484 = vld [vmem:[%s17 + $0xc] sm:$0xf]
        %v2485 = vld [vmem:[%s17 + $0x10] sm:$0xf]
        %v2486 = vld [vmem:[%s17 + $0x14] sm:$0xf]
        %v2487 = vld [vmem:[%s17 + $0x18] sm:$0xf]
        %v2488 = vld [vmem:[%s17 + $0x1c] sm:$0xf]
        %v2489 = vld [vmem:[%s17 + $0x20] sm:$0xf]
        %v2490 = vld [vmem:[%s17 + $0x24] sm:$0xf]
        %v2491 = vld [vmem:[%s17 + $0x28] sm:$0xf]
        %v2492 = vld [vmem:[%s17 + $0x2c] sm:$0xf]
        %v2493 = vld [vmem:[%s17 + $0x30] sm:$0xf]
        %v2494 = vld [vmem:[%s17 + $0x34] sm:$0xf]
        %v2495 = vld [vmem:[%s17 + $0x38] sm:$0xf]
        %v2496 = vld [vmem:[%s17 + $0x3c] sm:$0xf]
        %v2513 = vunpack.c.l.b16 %v2481
        %v2514 = vunpack.c.l.b16 %v2482
        %v2515 = vunpack.c.l.b16 %v2483
        %v2516 = vunpack.c.l.b16 %v2484
        %v2517 = vunpack.c.l.b16 %v2485
        %v2518 = vunpack.c.l.b16 %v2486
        %v2519 = vunpack.c.l.b16 %v2487
        %v2520 = vunpack.c.l.b16 %v2488
        %v2521 = vunpack.c.l.b16 %v2489
        %v2522 = vunpack.c.l.b16 %v2490
        %v2523 = vunpack.c.l.b16 %v2491
        %v2524 = vunpack.c.l.b16 %v2492
        %v2525 = vunpack.c.l.b16 %v2493
        %v2526 = vunpack.c.l.b16 %v2494
        %v2527 = vunpack.c.l.b16 %v2495
        %v2528 = vunpack.c.l.b16 %v2496
        %v2529 = vpack.c.b16 %v2514, %v2513
        %v2530 = vpack.c.b16 %v2516, %v2515
        %v2531 = vpack.c.b16 %v2518, %v2517
        %v2532 = vpack.c.b16 %v2520, %v2519
        %v2533 = vpack.c.b16 %v2522, %v2521
        %v2534 = vpack.c.b16 %v2524, %v2523
        %v2535 = vpack.c.b16 %v2526, %v2525
        %v2536 = vpack.c.b16 %v2528, %v2527
        %2545 = vmatprep.subr.bf16.mxu0 0
        %2546 = vmatpush1.bf16.msra.mxu0 %v2536
        %2547 = vmatprep.subr.bf16.mxu0 0
        %2548 = vmatpush1.bf16.msra.mxu0 %v2535
        %2549 = vmatprep.subr.bf16.mxu0 0
        %2550 = vmatpush1.bf16.msra.mxu0 %v2534
        %2551 = vmatprep.subr.bf16.mxu0 0
        %2552 = vmatpush1.bf16.msra.mxu0 %v2533
        %2553 = vmatprep.subr.bf16.mxu0 0
        %2554 = vmatpush1.bf16.msra.mxu0 %v2532
        %2555 = vmatprep.subr.bf16.mxu0 0
        %2556 = vmatpush1.bf16.msra.mxu0 %v2531
        %2557 = vmatprep.subr.bf16.mxu0 0
        %2558 = vmatpush1.bf16.msra.mxu0 %v2530
        %2559 = vmatprep.subr.bf16.mxu0 0
        %2560 = vmatpush1.bf16.msra.mxu0 %v2529
        %2561 = vmatprep.subr.bf16.mxu0 0
        %2562 = vmatpush2.bf16.msra.mxu0 0
        %2563 = vmatprep.subr.bf16.mxu0 0
        %2564 = vmatpush2.bf16.msra.mxu0 0
        %2565 = vmatprep.subr.bf16.mxu0 0
        %2566 = vmatpush2.bf16.msra.mxu0 0
        %2567 = vmatprep.subr.bf16.mxu0 0
        %2568 = vmatpush2.bf16.msra.mxu0 0
        %2569 = vmatprep.subr.bf16.mxu0 0
        %2570 = vmatpush2.bf16.msra.mxu0 0
        %2571 = vmatprep.subr.bf16.mxu0 0
        %2572 = vmatpush2.bf16.msra.mxu0 0
        %2573 = vmatprep.subr.bf16.mxu0 0
        %2574 = vmatpush2.bf16.msra.mxu0 0
        %2575 = vmatprep.subr.bf16.mxu0 0
        %2576 = vmatpush2.bf16.msra.mxu0 0
        %2577 = vmatprep.mubr.bf16.mxu0 0
        %2578 = vmatmul.mubr.bf16.gmra.mxu0 %v2480
        %v2579 = vpop.f32.mrf.mxu0
        %v2580 = vadd.f32 0.0, %v2579
        %v2581 = vpop.f32.mrf.mxu0
        %v2582 = vpop.f32.mrf.mxu0
        %v2583 = vadd.f32 0.0, %v2582
        %v2584 = vpop.f32.mrf.mxu0
        %2585 = vdwg.mxu0
        %v2588 = vunpack.c.l.b16 %v2462
        %v2589 = vunpack.c.l.b16 %v2463
        %v2590 = vpack.c.b16 %v2589, %v2588
        %v2608 = vunpack.c.l.b16 %v2464
        %v2609 = vunpack.c.l.b16 %v2465
        %v2610 = vunpack.c.l.b16 %v2466
        %v2611 = vunpack.c.l.b16 %v2467
        %v2612 = vunpack.c.l.b16 %v2468
        %v2613 = vunpack.c.l.b16 %v2469
        %v2614 = vunpack.c.l.b16 %v2470
        %v2615 = vunpack.c.l.b16 %v2471
        %v2616 = vunpack.c.l.b16 %v2472
        %v2617 = vunpack.c.l.b16 %v2473
        %v2618 = vunpack.c.l.b16 %v2474
        %v2619 = vunpack.c.l.b16 %v2475
        %v2620 = vunpack.c.l.b16 %v2476
        %v2621 = vunpack.c.l.b16 %v2477
        %v2622 = vunpack.c.l.b16 %v2478
        %v2623 = vunpack.c.l.b16 %v2479
        %v2624 = vpack.c.b16 %v2609, %v2608
        %v2625 = vpack.c.b16 %v2611, %v2610
        %v2626 = vpack.c.b16 %v2613, %v2612
        %v2627 = vpack.c.b16 %v2615, %v2614
        %v2628 = vpack.c.b16 %v2617, %v2616
        %v2629 = vpack.c.b16 %v2619, %v2618
        %v2630 = vpack.c.b16 %v2621, %v2620
        %v2631 = vpack.c.b16 %v2623, %v2622
        %2640 = vmatprep.subr.bf16.mxu0 0
        %2641 = vmatpush1.bf16.msra.mxu0 %v2631
        %2642 = vmatprep.subr.bf16.mxu0 0
        %2643 = vmatpush1.bf16.msra.mxu0 %v2630
        %2644 = vmatprep.subr.bf16.mxu0 0
        %2645 = vmatpush1.bf16.msra.mxu0 %v2629
        %2646 = vmatprep.subr.bf16.mxu0 0
        %2647 = vmatpush1.bf16.msra.mxu0 %v2628
        %2648 = vmatprep.subr.bf16.mxu0 0
        %2649 = vmatpush1.bf16.msra.mxu0 %v2627
        %2650 = vmatprep.subr.bf16.mxu0 0
        %2651 = vmatpush1.bf16.msra.mxu0 %v2626
        %2652 = vmatprep.subr.bf16.mxu0 0
        %2653 = vmatpush1.bf16.msra.mxu0 %v2625
        %2654 = vmatprep.subr.bf16.mxu0 0
        %2655 = vmatpush1.bf16.msra.mxu0 %v2624
        %2656 = vmatprep.subr.bf16.mxu0 0
        %2657 = vmatpush2.bf16.msra.mxu0 0
        %2658 = vmatprep.subr.bf16.mxu0 0
        %2659 = vmatpush2.bf16.msra.mxu0 0
        %2660 = vmatprep.subr.bf16.mxu0 0
        %2661 = vmatpush2.bf16.msra.mxu0 0
        %2662 = vmatprep.subr.bf16.mxu0 0
        %2663 = vmatpush2.bf16.msra.mxu0 0
        %2664 = vmatprep.subr.bf16.mxu0 0
        %2665 = vmatpush2.bf16.msra.mxu0 0
        %2666 = vmatprep.subr.bf16.mxu0 0
        %2667 = vmatpush2.bf16.msra.mxu0 0
        %2668 = vmatprep.subr.bf16.mxu0 0
        %2669 = vmatpush2.bf16.msra.mxu0 0
        %2670 = vmatprep.subr.bf16.mxu0 0
        %2671 = vmatpush2.bf16.msra.mxu0 0
        %2672 = vmatprep.mubr.bf16.mxu0 0
        %2673 = vmatmul.mubr.bf16.gmra.mxu0 %v2590
        %v2674 = vpop.f32.mrf.mxu0
        %v2675 = vadd.f32 %v2580, %v2674
        %v2676 = vpop.f32.mrf.mxu0
        %v2677 = vpop.f32.mrf.mxu0
        %v2678 = vadd.f32 %v2583, %v2677
        %v2679 = vpop.f32.mrf.mxu0
        %2680 = vdwg.mxu0
        %v2681 = vld [vmem:[%s18] sm:$0x1]
        %v2683 = vlaneseq
        %v2684 = vshrl.u32 %v2683, 7
        %v2685 = vsub.s32 0, %v2684
        %v2686 = vrot.slane %v2681, %v2685
        %v2688 = vadd.f32 %v2675, %v2686
        %v2689 = vadd.f32 %v2678, %v2686
        %2690 = vst [vmem:[%s19] sm:$0xff] %v2461
        %2691 = vst [vmem:[%s20] sm:$0xff] %v2688
        %2692 = vst [vmem:[%s20 + $0x8] sm:$0xff] %v2689
      $region104: #{gcn_block_forward.2} parent=95 // pred_fallthru
        _
      // Predicated region
      $region105: #{gcn_block_forward.2} parent=95 // pred_check
        %p2693 = pneg %p469
      $region106: #{gcn_block_forward.2} parent=95 // pred_check_branch
        %2695 = sbr.rel (%p2693) target = $region108
      $region107: #{gcn_block_forward.2} parent=95 // pred_region
        _
      $region108: #{gcn_block_forward.2} parent=95 // pred_fallthru
        _
      // Predicated region
      $region109: #{gcn_block_forward.2} parent=95 // pred_check
        %p2696 = pneg %p490
      $region110: #{gcn_block_forward.2} parent=95 // pred_check_branch
        %2698 = sbr.rel (%p2696) target = $region112
      $region111: #{gcn_block_forward.2} parent=95 // pred_region
        _
      $region112: #{gcn_block_forward.2} parent=95 // pred_fallthru
        _
      // Predicated region
      $region113: #{gcn_block_forward.2} parent=95 // pred_check
        %p2699 = pneg %p469
      $region114: #{gcn_block_forward.2} parent=95 // pred_check_branch
        %2701 = sbr.rel (%p2699) target = $region116
      $region115: #{gcn_block_forward.2} parent=95 // pred_region
        _
      $region116: #{gcn_block_forward.2} parent=95 // pred_fallthru
        _
      // Predicated region
      $region117: #{gcn_block_forward.2} parent=95 // pred_check
        %p2702 = pneg %p490
      $region118: #{gcn_block_forward.2} parent=95 // pred_check_branch
        %2704 = sbr.rel (%p2702) target = $region120
      $region119: #{gcn_block_forward.2} parent=95 // pred_region
        _
      $region120: #{gcn_block_forward.2} parent=95 // pred_fallthru
        _
    $region96: #{gcn_block_forward.2} parent=5 // pred_fallthru
      _
    %p2705 = scmp.le.s32.totalorder 2, %s27
    // Predicated region
    $region121: #{gcn_block_forward.2} parent=5 // pred_check
      %p2706 = pneg %p2705
    $region122: #{gcn_block_forward.2} parent=5 // pred_check_branch
      %2708 = sbr.rel (%p2706) target = $region124
    $region123: #{gcn_block_forward.2} parent=5 // pred_region
      %s2709 = ssub.s32 %s27, 2
    $region124: #{gcn_block_forward.2} parent=5 // pred_fallthru
      _
  $region6: #{gcn_block_forward.2} parent=0 // loop_footer
    %s31 = sadd.s32 1, %s27
  $region7: #{gcn_block_forward.2} parent=0 // loop_footer_branch
    %26 = sbr.rel target = $region3
  $region8: #{gcn_block_forward.2} parent=0 // loop_exit
    _

</llo_original>
